<compile_context>
chip_gen: v7x
topology: tpu7x:2x2x1
jax: 0.10.0
libtpu: 0.0.40
codegen_flags: <defaults>
</compile_context>

<pallas_src>
import math
import functools

import jax
import jax.numpy as jnp
from jax.experimental import pallas as pl
from jax.experimental.pallas import tpu as pltpu

# ----- model config (small shapes, consistent with the module's constructor) -----
KEY_EMBED = 32
VAL_EMBED = 32
EMBED = KEY_EMBED + VAL_EMBED        # d_model = key_embed_size + val_embed_size = 64
N_HEADS = 8                          # head_dim = 8
HEAD_DIM = EMBED // N_HEADS
HIDDEN = 64                          # dim_feedforward (module default 512; kept small)
N_LAYERS = 4                         # module default num_layers = 4
N_CATEGORICAL = 2                    # Indvidual_Decoder: Linear(E, 2) per categorical target
N_CONTINUOUS = 3                     # Indvidual_Decoder: Linear(E, 1) per continuous target
N_OUT = 2 * N_CATEGORICAL + N_CONTINUOUS   # = 7 = n_outputs
N_OUT_PAD = 8                        # lane-padded decoder width (sliced back to 7 outside)
LN_EPS = 1e-5
# Additive key-padding bias. torch uses -inf (all-padded rows -> NaN); -1e9 keeps
# finite math and exp() of masked entries underflows to exactly 0.
MASK_BIAS = -1e9


def _layer_norm(z, g, b):
    mean = jnp.mean(z, axis=-1, keepdims=True)
    var = jnp.mean((z - mean) ** 2, axis=-1, keepdims=True)
    return (z - mean) * jax.lax.rsqrt(var + LN_EPS) * g + b


def _bf16(x):
    return x.astype(jnp.bfloat16)


# ---------------- fused Pallas kernel ----------------
def _fused_transformer_kernel(x_ref, bias_ref, hmask_ref,
                              wqkv_ref, bqkv_ref, wo_ref, bo_ref,
                              ln1g_ref, ln1b_ref,
                              w1_ref, b1_ref, w2_ref, b2_ref,
                              ln2g_ref, ln2b_ref,
                              wdec_ref, bdec_ref,
                              o_ref, *, n_layers, n_heads):
    B, S, E = x_ref.shape
    BS = B * S
    R = n_heads * BS                      # packed rows, ordered (head, batch, seq) = 128

    x2d = x_ref[...].reshape(BS, E)       # (BS, E) residual stream, f32
    bias = bias_ref[...]                  # (R, R)  block-diag + key-padding additive bias
    hmask = hmask_ref[...]                # (R, E)  1.0 on the row's own head dims, else 0.0

    for l in range(n_layers):             # static unroll; weights resident in VMEM
        # ---- fused Q|K|V projection (Q columns/bias pre-scaled by 1/sqrt(dh)) ----
        qkv = jnp.dot(_bf16(x2d), wqkv_ref[l],
                      preferred_element_type=jnp.float32) + bqkv_ref[l]    # (BS, 3E) f32

        # ---- replicate token rows once per head: packed row order (h, b, s) ----
        qkv_rep = jnp.broadcast_to(qkv[None], (n_heads, BS, 3 * E)).reshape(R, 3 * E)
        q = qkv_rep[:, :E] * hmask        # zero the dims of every other head
        k = qkv_rep[:, E:2 * E]
        v = qkv_rep[:, 2 * E:3 * E]

        # ---- scores: ONE (R,E)@(E,R) matmul; off-block / padded keys masked by bias ----
        s = jax.lax.dot_general(_bf16(q), _bf16(k), (((1,), (1,)), ((), ())),
                                preferred_element_type=jnp.float32)        # (R, R)
        s = s + bias
        s = s - jnp.max(s, axis=-1, keepdims=True)      # single max per layer (packed)
        p = jnp.exp(s)
        p = p * pl.reciprocal(jnp.sum(p, axis=-1, keepdims=True), approx=True)

        # ---- context: ONE (R,R)@(R,E) matmul; keep only the row's own head dims ----
        ctx = jnp.dot(_bf16(p), _bf16(v),
                      preferred_element_type=jnp.float32) * hmask          # (R, E)

        # ---- output projection: ONE dense dot, then sum the 8 head blocks ----
        proj = jnp.dot(_bf16(ctx), wo_ref[l],
                       preferred_element_type=jnp.float32)                 # (R, E)
        attn = proj.reshape(n_heads, BS, E).sum(axis=0) + bo_ref[l]        # (BS, E)

        # ---- residual + post-LN (norm1) ----
        z = _layer_norm(x2d + attn, ln1g_ref[l], ln1b_ref[l])

        # ---- feed-forward (ReLU) + residual + post-LN (norm2) ----
        hdd = jnp.maximum(
            jnp.dot(_bf16(z), w1_ref[l], preferred_element_type=jnp.float32) + b1_ref[l],
            0.0)
        ff = jnp.dot(_bf16(hdd), w2_ref[l],
                     preferred_element_type=jnp.float32) + b2_ref[l]
        x2d = _layer_norm(z + ff, ln2g_ref[l], ln2b_ref[l])

    # ---- Indvidual_Decoder as one fused (E, N_OUT_PAD) matmul over all tokens.
    # Token-0 selection / un-padding happens outside the kernel (costless in XLA).
    o_ref[...] = (jnp.dot(_bf16(x2d), wdec_ref[...],
                          preferred_element_type=jnp.float32)
                  + bdec_ref[...]).astype(o_ref.dtype)


# ---------------- wrapper ----------------
def transformer_forward(kernel_params, padded_embeddings, mask):
    B, S, E = padded_embeddings.shape
    BS = B * S
    R = N_HEADS * BS                      # 128 at the reference shapes

    # Packed-row bookkeeping: row r = h*(B*S) + b*S + s.
    r = jnp.arange(R)
    h_idx = r // BS
    b_idx = (r % BS) // S
    s_idx = r % S

    # Block-diagonal (same head & same batch) + key-padding additive bias, built ONCE.
    same_block = (h_idx[:, None] == h_idx[None, :]) & (b_idx[:, None] == b_idx[None, :])
    key_padded = mask[b_idx, s_idx]                                    # (R,) bool
    valid = same_block & jnp.logical_not(key_padded)[None, :]
    bias = jnp.where(valid, 0.0, MASK_BIAS).astype(jnp.float32)        # (R, R)

    # 0/1 mask selecting each packed row's own head dims in the E axis.
    head_mask = (h_idx[:, None] == (jnp.arange(E) // HEAD_DIM)[None, :]
                 ).astype(jnp.float32)                                 # (R, E)

    kern = functools.partial(_fused_transformer_kernel,
                             n_layers=N_LAYERS, n_heads=N_HEADS)
    args = (padded_embeddings.astype(jnp.float32), bias, head_mask) + tuple(kernel_params)

    out = pl.pallas_call(
        kern,
        out_shape=jax.ShapeDtypeStruct((BS, N_OUT_PAD), jnp.float32),
        in_specs=[pl.BlockSpec(memory_space=pltpu.MemorySpace.VMEM)] * len(args),
        out_specs=pl.BlockSpec(memory_space=pltpu.MemorySpace.VMEM),
        cost_estimate=pl.CostEstimate(flops=24_000_000, transcendentals=66_000,
                                      bytes_accessed=320_000),
    )(*args)

    dec_out = out.reshape(B, S, N_OUT_PAD)[:, 0, :N_OUT]   # enc_out[:, 0, :] -> decoder
    # torch.squeeze(dec_out, 0): only squeezes if dim 0 has size 1
    return jnp.squeeze(dec_out, axis=0) if dec_out.shape[0] == 1 else dec_out


# ---------------- parameters ----------------
def init_params(key):
    def normal(k, shape, scale=0.05):
        return scale * jax.random.normal(k, shape, jnp.float32)

    layers = []
    for _ in range(N_LAYERS):
        ks = jax.random.split(key, 8)
        layers.append(dict(
            wq=normal(ks[1], (EMBED, EMBED)), bq=jnp.zeros((1, EMBED), jnp.float32),
            wk=normal(ks[2], (EMBED, EMBED)), bk=jnp.zeros((1, EMBED), jnp.float32),
            wv=normal(ks[3], (EMBED, EMBED)), bv=jnp.zeros((1, EMBED), jnp.float32),
            wo=normal(ks[4], (EMBED, EMBED)), bo=jnp.zeros((1, EMBED), jnp.float32),
            ln1_g=jnp.ones((1, EMBED), jnp.float32),
            ln1_b=jnp.zeros((1, EMBED), jnp.float32),
            w1=normal(ks[5], (EMBED, HIDDEN)), b1=jnp.zeros((1, HIDDEN), jnp.float32),
            w2=normal(ks[6], (HIDDEN, EMBED)), b2=jnp.zeros((1, EMBED), jnp.float32),
            ln2_g=jnp.ones((1, EMBED), jnp.float32),
            ln2_b=jnp.zeros((1, EMBED), jnp.float32),
        ))
        key = ks[7]
    kd = jax.random.split(key, 2)
    # Indvidual_Decoder == per-target Linear heads concatenated along dim=1
    # (all categorical (E->2) heads first, then continuous (E->1) heads) ==
    # one fused (E, N_OUT) matmul with concatenated weights.
    w_dec = normal(kd[0], (EMBED, N_OUT))
    b_dec = jnp.zeros((1, N_OUT), jnp.float32)
    return dict(layers=layers, w_dec=w_dec, b_dec=b_dec)


def pack_params_for_kernel(params):
    """Stack per-layer weights along a leading layer axis, fuse Q|K|V into one
    (E, 3E) projection with Q pre-scaled by 1/sqrt(head_dim), store weight
    matrices as bf16 (MXU-native on all generations; accumulate stays f32), and
    pad the decoder head from 7 to 8 output lanes.  Biases / LN params stay f32."""
    scale = 1.0 / math.sqrt(HEAD_DIM)
    L = params["layers"]
    wqkv = jnp.stack([jnp.concatenate([lp["wq"] * scale, lp["wk"], lp["wv"]], axis=1)
                      for lp in L])
    bqkv = jnp.stack([jnp.concatenate([lp["bq"] * scale, lp["bk"], lp["bv"]], axis=1)
                      for lp in L])
    wo = jnp.stack([lp["wo"] for lp in L]);   bo = jnp.stack([lp["bo"] for lp in L])
    ln1g = jnp.stack([lp["ln1_g"] for lp in L]); ln1b = jnp.stack([lp["ln1_b"] for lp in L])
    w1 = jnp.stack([lp["w1"] for lp in L]);   b1 = jnp.stack([lp["b1"] for lp in L])
    w2 = jnp.stack([lp["w2"] for lp in L]);   b2 = jnp.stack([lp["b2"] for lp in L])
    ln2g = jnp.stack([lp["ln2_g"] for lp in L]); ln2b = jnp.stack([lp["ln2_b"] for lp in L])
    wdec = jnp.pad(params["w_dec"], ((0, 0), (0, N_OUT_PAD - N_OUT)))
    bdec = jnp.pad(params["b_dec"], ((0, 0), (0, N_OUT_PAD - N_OUT)))
    return (wqkv.astype(jnp.bfloat16), bqkv,
            wo.astype(jnp.bfloat16), bo,
            ln1g, ln1b,
            w1.astype(jnp.bfloat16), b1,
            w2.astype(jnp.bfloat16), b2,
            ln2g, ln2b,
            wdec.astype(jnp.bfloat16), bdec)


# ---------------- pad_and_mask (JAX port, S rounded up to a sublane multiple) ----------------
def pad_and_mask(embeddings_batch, max_len, embed_size):
    S = ((max_len + 7) // 8) * 8          # keep (8,128) tiling happy for any batch contents
    B = len(embeddings_batch)
    padded = jnp.zeros((B, S, embed_size), jnp.float32)
    mask = jnp.ones((B, S), dtype=bool)   # True = padded (ignored) key
    for i, emb in enumerate(embeddings_batch):
        L = emb.shape[0]
        padded = padded.at[i, :L].set(emb)
        mask = mask.at[i, :L].set(False)
    return padded, mask


# ---------------- main ----------------
if __name__ == "__main__":
    key = jax.random.PRNGKey(0)
    k_params, k_e0, k_e1 = jax.random.split(key, 3)
    params = init_params(k_params)
    kernel_params = pack_params_for_kernel(params)

    # Stand-in for KeyValEmbedder outputs: variable-length per-sample embeddings.
    # TODO(synk): real KeyValEmbedder needs the missing `pragmas` / `target` definitions.
    lengths = [8, 5]
    embeddings_batch = [
        jax.random.normal(k_e0, (lengths[0], EMBED), jnp.float32),
        jax.random.normal(k_e1, (lengths[1], EMBED), jnp.float32),
    ]
    max_len = max(e.shape[0] for e in embeddings_batch)
    padded_embeddings, mask = pad_and_mask(embeddings_batch, max_len, EMBED)

    pred = transformer_forward(kernel_params, padded_embeddings, mask)
    pred = jax.block_until_ready(pred)
    assert pred.shape == (len(embeddings_batch), N_OUT), pred.shape
    assert bool(jnp.all(jnp.isfinite(pred)))
    print("KERNEL_OK")
</pallas_src>

<mosaic_0001>
module attributes {stable_mosaic.version = 11 : i64} {
  func.func @_fused_transformer_kernel(%arg0: memref<2x8x64xf32, #tpu.memory_space<vmem>>, %arg1: memref<128x128xf32, #tpu.memory_space<vmem>>, %arg2: memref<128x64xf32, #tpu.memory_space<vmem>>, %arg3: memref<4x64x192xbf16, #tpu.memory_space<vmem>>, %arg4: memref<4x1x192xf32, #tpu.memory_space<vmem>>, %arg5: memref<4x64x64xbf16, #tpu.memory_space<vmem>>, %arg6: memref<4x1x64xf32, #tpu.memory_space<vmem>>, %arg7: memref<4x1x64xf32, #tpu.memory_space<vmem>>, %arg8: memref<4x1x64xf32, #tpu.memory_space<vmem>>, %arg9: memref<4x64x64xbf16, #tpu.memory_space<vmem>>, %arg10: memref<4x1x64xf32, #tpu.memory_space<vmem>>, %arg11: memref<4x64x64xbf16, #tpu.memory_space<vmem>>, %arg12: memref<4x1x64xf32, #tpu.memory_space<vmem>>, %arg13: memref<4x1x64xf32, #tpu.memory_space<vmem>>, %arg14: memref<4x1x64xf32, #tpu.memory_space<vmem>>, %arg15: memref<64x8xbf16, #tpu.memory_space<vmem>>, %arg16: memref<1x8xf32, #tpu.memory_space<vmem>>, %arg17: memref<16x8xf32, #tpu.memory_space<vmem>>) attributes {dimension_semantics = [], scalar_prefetch = 0 : i64, scratch_operands = 0 : i64, tpu.core_type = #tpu.core_type<tc>} {
    %c0 = arith.constant 0 : index
    %c0_0 = arith.constant 0 : index
    %c0_1 = arith.constant 0 : index
    %0 = vector.load %arg0[%c0, %c0_0, %c0_1] : memref<2x8x64xf32, #tpu.memory_space<vmem>>, vector<2x8x64xf32>
    %1 = vector.shape_cast %0 : vector<2x8x64xf32> to vector<16x64xf32>
    %c0_2 = arith.constant 0 : index
    %c0_3 = arith.constant 0 : index
    %2 = vector.load %arg1[%c0_2, %c0_3] : memref<128x128xf32, #tpu.memory_space<vmem>>, vector<128x128xf32>
    %c0_4 = arith.constant 0 : index
    %c0_5 = arith.constant 0 : index
    %3 = vector.load %arg2[%c0_4, %c0_5] : memref<128x64xf32, #tpu.memory_space<vmem>>, vector<128x64xf32>
    %4 = arith.truncf %1 : vector<16x64xf32> to vector<16x64xbf16>
    %c0_6 = arith.constant 0 : index
    %c0_7 = arith.constant 0 : index
    %c0_8 = arith.constant 0 : index
    %5 = vector.load %arg3[%c0_6, %c0_7, %c0_8] : memref<4x64x192xbf16, #tpu.memory_space<vmem>>, vector<1x64x192xbf16>
    %6 = vector.shape_cast %5 : vector<1x64x192xbf16> to vector<64x192xbf16>
    %cst = arith.constant dense<0.000000e+00> : vector<16x192xf32>
    %7 = tpu.matmul %4, %6, %cst {dimension_numbers = #tpu.dot_dimension_numbers<[1], [0], [0], [1], [0, 0, 1, 1], [], []>} : vector<16x64xbf16>, vector<64x192xbf16>, vector<16x192xf32> -> vector<16x192xf32>
    %c0_9 = arith.constant 0 : index
    %c0_10 = arith.constant 0 : index
    %c0_11 = arith.constant 0 : index
    %8 = vector.load %arg4[%c0_9, %c0_10, %c0_11] : memref<4x1x192xf32, #tpu.memory_space<vmem>>, vector<1x1x192xf32>
    %9 = vector.shape_cast %8 : vector<1x1x192xf32> to vector<1x192xf32>
    %10 = vector.broadcast %9 : vector<1x192xf32> to vector<16x192xf32>
    %11 = arith.addf %7, %10 : vector<16x192xf32>
    %12 = vector.shape_cast %11 : vector<16x192xf32> to vector<1x16x192xf32>
    %13 = vector.shape_cast %12 : vector<1x16x192xf32> to vector<1x16x192xf32>
    %14 = vector.broadcast %13 : vector<1x16x192xf32> to vector<8x16x192xf32>
    %15 = vector.shape_cast %14 : vector<8x16x192xf32> to vector<128x192xf32>
    %16 = vector.extract_strided_slice %15 {offsets = [0, 0], sizes = [128, 64], strides = [1, 1]} : vector<128x192xf32> to vector<128x64xf32>
    %17 = arith.mulf %16, %3 : vector<128x64xf32>
    %18 = vector.extract_strided_slice %15 {offsets = [0, 64], sizes = [128, 64], strides = [1, 1]} : vector<128x192xf32> to vector<128x64xf32>
    %19 = vector.extract_strided_slice %15 {offsets = [0, 128], sizes = [128, 64], strides = [1, 1]} : vector<128x192xf32> to vector<128x64xf32>
    %20 = arith.truncf %17 : vector<128x64xf32> to vector<128x64xbf16>
    %21 = arith.truncf %18 : vector<128x64xf32> to vector<128x64xbf16>
    %cst_12 = arith.constant dense<0.000000e+00> : vector<128x128xf32>
    %22 = tpu.matmul %20, %21, %cst_12 {dimension_numbers = #tpu.dot_dimension_numbers<[1], [1], [0], [0], [0, 0, 1, 0], [], []>} : vector<128x64xbf16>, vector<128x64xbf16>, vector<128x128xf32> -> vector<128x128xf32>
    %23 = arith.addf %22, %2 : vector<128x128xf32>
    %cst_13 = arith.constant dense<0xFF800000> : vector<128xf32>
    %24 = vector.multi_reduction <maximumf>, %23, %cst_13 [1] : vector<128x128xf32> to vector<128xf32>
    %25 = vector.shape_cast %24 : vector<128xf32> to vector<128x1xf32>
    %26 = vector.broadcast %25 : vector<128x1xf32> to vector<128x128xf32>
    %27 = arith.subf %23, %26 : vector<128x128xf32>
    %28 = math.exp %27 : vector<128x128xf32>
    %cst_14 = arith.constant dense<0.000000e+00> : vector<128xf32>
    %29 = vector.multi_reduction <add>, %28, %cst_14 [1] : vector<128x128xf32> to vector<128xf32>
    %30 = vector.shape_cast %29 : vector<128xf32> to vector<128x1xf32>
    %31 = tpu.reciprocal %30 {approx = true} : vector<128x1xf32> -> vector<128x1xf32>
    %32 = vector.broadcast %31 : vector<128x1xf32> to vector<128x128xf32>
    %33 = arith.mulf %28, %32 : vector<128x128xf32>
    %34 = arith.truncf %33 : vector<128x128xf32> to vector<128x128xbf16>
    %35 = arith.truncf %19 : vector<128x64xf32> to vector<128x64xbf16>
    %cst_15 = arith.constant dense<0.000000e+00> : vector<128x64xf32>
    %36 = tpu.matmul %34, %35, %cst_15 {dimension_numbers = #tpu.dot_dimension_numbers<[1], [0], [0], [1], [0, 0, 1, 1], [], []>} : vector<128x128xbf16>, vector<128x64xbf16>, vector<128x64xf32> -> vector<128x64xf32>
    %37 = arith.mulf %36, %3 : vector<128x64xf32>
    %38 = arith.truncf %37 : vector<128x64xf32> to vector<128x64xbf16>
    %c0_16 = arith.constant 0 : index
    %c0_17 = arith.constant 0 : index
    %c0_18 = arith.constant 0 : index
    %39 = vector.load %arg5[%c0_16, %c0_17, %c0_18] : memref<4x64x64xbf16, #tpu.memory_space<vmem>>, vector<1x64x64xbf16>
    %40 = vector.shape_cast %39 : vector<1x64x64xbf16> to vector<64x64xbf16>
    %cst_19 = arith.constant dense<0.000000e+00> : vector<128x64xf32>
    %41 = tpu.matmul %38, %40, %cst_19 {dimension_numbers = #tpu.dot_dimension_numbers<[1], [0], [0], [1], [0, 0, 1, 1], [], []>} : vector<128x64xbf16>, vector<64x64xbf16>, vector<128x64xf32> -> vector<128x64xf32>
    %42 = vector.shape_cast %41 : vector<128x64xf32> to vector<8x16x64xf32>
    %cst_20 = arith.constant dense<0.000000e+00> : vector<16x64xf32>
    %43 = vector.multi_reduction <add>, %42, %cst_20 [0] : vector<8x16x64xf32> to vector<16x64xf32>
    %c0_21 = arith.constant 0 : index
    %c0_22 = arith.constant 0 : index
    %c0_23 = arith.constant 0 : index
    %44 = vector.load %arg6[%c0_21, %c0_22, %c0_23] : memref<4x1x64xf32, #tpu.memory_space<vmem>>, vector<1x1x64xf32>
    %45 = vector.shape_cast %44 : vector<1x1x64xf32> to vector<1x64xf32>
    %46 = vector.broadcast %45 : vector<1x64xf32> to vector<16x64xf32>
    %47 = arith.addf %43, %46 : vector<16x64xf32>
    %48 = arith.addf %1, %47 : vector<16x64xf32>
    %c0_24 = arith.constant 0 : index
    %c0_25 = arith.constant 0 : index
    %c0_26 = arith.constant 0 : index
    %49 = vector.load %arg7[%c0_24, %c0_25, %c0_26] : memref<4x1x64xf32, #tpu.memory_space<vmem>>, vector<1x1x64xf32>
    %50 = vector.shape_cast %49 : vector<1x1x64xf32> to vector<1x64xf32>
    %c0_27 = arith.constant 0 : index
    %c0_28 = arith.constant 0 : index
    %c0_29 = arith.constant 0 : index
    %51 = vector.load %arg8[%c0_27, %c0_28, %c0_29] : memref<4x1x64xf32, #tpu.memory_space<vmem>>, vector<1x1x64xf32>
    %52 = vector.shape_cast %51 : vector<1x1x64xf32> to vector<1x64xf32>
    %cst_30 = arith.constant dense<0.000000e+00> : vector<16xf32>
    %53 = vector.multi_reduction <add>, %48, %cst_30 [1] : vector<16x64xf32> to vector<16xf32>
    %54 = vector.shape_cast %53 : vector<16xf32> to vector<16x1xf32>
    %cst_31 = arith.constant 6.400000e+01 : f32
    %55 = vector.broadcast %cst_31 : f32 to vector<16x1xf32>
    %56 = arith.divf %54, %55 : vector<16x1xf32>
    %57 = vector.broadcast %56 : vector<16x1xf32> to vector<16x64xf32>
    %58 = arith.subf %48, %57 : vector<16x64xf32>
    %59 = arith.mulf %58, %58 : vector<16x64xf32>
    %cst_32 = arith.constant dense<0.000000e+00> : vector<16xf32>
    %60 = vector.multi_reduction <add>, %59, %cst_32 [1] : vector<16x64xf32> to vector<16xf32>
    %61 = vector.shape_cast %60 : vector<16xf32> to vector<16x1xf32>
    %cst_33 = arith.constant 6.400000e+01 : f32
    %62 = vector.broadcast %cst_33 : f32 to vector<16x1xf32>
    %63 = arith.divf %61, %62 : vector<16x1xf32>
    %64 = vector.broadcast %56 : vector<16x1xf32> to vector<16x64xf32>
    %65 = arith.subf %48, %64 : vector<16x64xf32>
    %cst_34 = arith.constant 9.99999974E-6 : f32
    %66 = vector.broadcast %cst_34 : f32 to vector<16x1xf32>
    %67 = arith.addf %63, %66 : vector<16x1xf32>
    %68 = math.rsqrt %67 : vector<16x1xf32>
    %69 = vector.broadcast %68 : vector<16x1xf32> to vector<16x64xf32>
    %70 = arith.mulf %65, %69 : vector<16x64xf32>
    %71 = vector.broadcast %50 : vector<1x64xf32> to vector<16x64xf32>
    %72 = arith.mulf %70, %71 : vector<16x64xf32>
    %73 = vector.broadcast %52 : vector<1x64xf32> to vector<16x64xf32>
    %74 = arith.addf %72, %73 : vector<16x64xf32>
    %75 = arith.truncf %74 : vector<16x64xf32> to vector<16x64xbf16>
    %c0_35 = arith.constant 0 : index
    %c0_36 = arith.constant 0 : index
    %c0_37 = arith.constant 0 : index
    %76 = vector.load %arg9[%c0_35, %c0_36, %c0_37] : memref<4x64x64xbf16, #tpu.memory_space<vmem>>, vector<1x64x64xbf16>
    %77 = vector.shape_cast %76 : vector<1x64x64xbf16> to vector<64x64xbf16>
    %cst_38 = arith.constant dense<0.000000e+00> : vector<16x64xf32>
    %78 = tpu.matmul %75, %77, %cst_38 {dimension_numbers = #tpu.dot_dimension_numbers<[1], [0], [0], [1], [0, 0, 1, 1], [], []>} : vector<16x64xbf16>, vector<64x64xbf16>, vector<16x64xf32> -> vector<16x64xf32>
    %c0_39 = arith.constant 0 : index
    %c0_40 = arith.constant 0 : index
    %c0_41 = arith.constant 0 : index
    %79 = vector.load %arg10[%c0_39, %c0_40, %c0_41] : memref<4x1x64xf32, #tpu.memory_space<vmem>>, vector<1x1x64xf32>
    %80 = vector.shape_cast %79 : vector<1x1x64xf32> to vector<1x64xf32>
    %81 = vector.broadcast %80 : vector<1x64xf32> to vector<16x64xf32>
    %82 = arith.addf %78, %81 : vector<16x64xf32>
    %cst_42 = arith.constant 0.000000e+00 : f32
    %83 = vector.broadcast %cst_42 : f32 to vector<16x64xf32>
    %84 = arith.maximumf %82, %83 : vector<16x64xf32>
    %85 = arith.truncf %84 : vector<16x64xf32> to vector<16x64xbf16>
    %c0_43 = arith.constant 0 : index
    %c0_44 = arith.constant 0 : index
    %c0_45 = arith.constant 0 : index
    %86 = vector.load %arg11[%c0_43, %c0_44, %c0_45] : memref<4x64x64xbf16, #tpu.memory_space<vmem>>, vector<1x64x64xbf16>
    %87 = vector.shape_cast %86 : vector<1x64x64xbf16> to vector<64x64xbf16>
    %cst_46 = arith.constant dense<0.000000e+00> : vector<16x64xf32>
    %88 = tpu.matmul %85, %87, %cst_46 {dimension_numbers = #tpu.dot_dimension_numbers<[1], [0], [0], [1], [0, 0, 1, 1], [], []>} : vector<16x64xbf16>, vector<64x64xbf16>, vector<16x64xf32> -> vector<16x64xf32>
    %c0_47 = arith.constant 0 : index
    %c0_48 = arith.constant 0 : index
    %c0_49 = arith.constant 0 : index
    %89 = vector.load %arg12[%c0_47, %c0_48, %c0_49] : memref<4x1x64xf32, #tpu.memory_space<vmem>>, vector<1x1x64xf32>
    %90 = vector.shape_cast %89 : vector<1x1x64xf32> to vector<1x64xf32>
    %91 = vector.broadcast %90 : vector<1x64xf32> to vector<16x64xf32>
    %92 = arith.addf %88, %91 : vector<16x64xf32>
    %93 = arith.addf %74, %92 : vector<16x64xf32>
    %c0_50 = arith.constant 0 : index
    %c0_51 = arith.constant 0 : index
    %c0_52 = arith.constant 0 : index
    %94 = vector.load %arg13[%c0_50, %c0_51, %c0_52] : memref<4x1x64xf32, #tpu.memory_space<vmem>>, vector<1x1x64xf32>
    %95 = vector.shape_cast %94 : vector<1x1x64xf32> to vector<1x64xf32>
    %c0_53 = arith.constant 0 : index
    %c0_54 = arith.constant 0 : index
    %c0_55 = arith.constant 0 : index
    %96 = vector.load %arg14[%c0_53, %c0_54, %c0_55] : memref<4x1x64xf32, #tpu.memory_space<vmem>>, vector<1x1x64xf32>
    %97 = vector.shape_cast %96 : vector<1x1x64xf32> to vector<1x64xf32>
    %cst_56 = arith.constant dense<0.000000e+00> : vector<16xf32>
    %98 = vector.multi_reduction <add>, %93, %cst_56 [1] : vector<16x64xf32> to vector<16xf32>
    %99 = vector.shape_cast %98 : vector<16xf32> to vector<16x1xf32>
    %cst_57 = arith.constant 6.400000e+01 : f32
    %100 = vector.broadcast %cst_57 : f32 to vector<16x1xf32>
    %101 = arith.divf %99, %100 : vector<16x1xf32>
    %102 = vector.broadcast %101 : vector<16x1xf32> to vector<16x64xf32>
    %103 = arith.subf %93, %102 : vector<16x64xf32>
    %104 = arith.mulf %103, %103 : vector<16x64xf32>
    %cst_58 = arith.constant dense<0.000000e+00> : vector<16xf32>
    %105 = vector.multi_reduction <add>, %104, %cst_58 [1] : vector<16x64xf32> to vector<16xf32>
    %106 = vector.shape_cast %105 : vector<16xf32> to vector<16x1xf32>
    %cst_59 = arith.constant 6.400000e+01 : f32
    %107 = vector.broadcast %cst_59 : f32 to vector<16x1xf32>
    %108 = arith.divf %106, %107 : vector<16x1xf32>
    %109 = vector.broadcast %101 : vector<16x1xf32> to vector<16x64xf32>
    %110 = arith.subf %93, %109 : vector<16x64xf32>
    %cst_60 = arith.constant 9.99999974E-6 : f32
    %111 = vector.broadcast %cst_60 : f32 to vector<16x1xf32>
    %112 = arith.addf %108, %111 : vector<16x1xf32>
    %113 = math.rsqrt %112 : vector<16x1xf32>
    %114 = vector.broadcast %113 : vector<16x1xf32> to vector<16x64xf32>
    %115 = arith.mulf %110, %114 : vector<16x64xf32>
    %116 = vector.broadcast %95 : vector<1x64xf32> to vector<16x64xf32>
    %117 = arith.mulf %115, %116 : vector<16x64xf32>
    %118 = vector.broadcast %97 : vector<1x64xf32> to vector<16x64xf32>
    %119 = arith.addf %117, %118 : vector<16x64xf32>
    %120 = arith.truncf %119 : vector<16x64xf32> to vector<16x64xbf16>
    %c1 = arith.constant 1 : index
    %c0_61 = arith.constant 0 : index
    %c0_62 = arith.constant 0 : index
    %121 = vector.load %arg3[%c1, %c0_61, %c0_62] : memref<4x64x192xbf16, #tpu.memory_space<vmem>>, vector<1x64x192xbf16>
    %122 = vector.shape_cast %121 : vector<1x64x192xbf16> to vector<64x192xbf16>
    %cst_63 = arith.constant dense<0.000000e+00> : vector<16x192xf32>
    %123 = tpu.matmul %120, %122, %cst_63 {dimension_numbers = #tpu.dot_dimension_numbers<[1], [0], [0], [1], [0, 0, 1, 1], [], []>} : vector<16x64xbf16>, vector<64x192xbf16>, vector<16x192xf32> -> vector<16x192xf32>
    %c1_64 = arith.constant 1 : index
    %c0_65 = arith.constant 0 : index
    %c0_66 = arith.constant 0 : index
    %124 = vector.load %arg4[%c1_64, %c0_65, %c0_66] : memref<4x1x192xf32, #tpu.memory_space<vmem>>, vector<1x1x192xf32>
    %125 = vector.shape_cast %124 : vector<1x1x192xf32> to vector<1x192xf32>
    %126 = vector.broadcast %125 : vector<1x192xf32> to vector<16x192xf32>
    %127 = arith.addf %123, %126 : vector<16x192xf32>
    %128 = vector.shape_cast %127 : vector<16x192xf32> to vector<1x16x192xf32>
    %129 = vector.shape_cast %128 : vector<1x16x192xf32> to vector<1x16x192xf32>
    %130 = vector.broadcast %129 : vector<1x16x192xf32> to vector<8x16x192xf32>
    %131 = vector.shape_cast %130 : vector<8x16x192xf32> to vector<128x192xf32>
    %132 = vector.extract_strided_slice %131 {offsets = [0, 0], sizes = [128, 64], strides = [1, 1]} : vector<128x192xf32> to vector<128x64xf32>
    %133 = arith.mulf %132, %3 : vector<128x64xf32>
    %134 = vector.extract_strided_slice %131 {offsets = [0, 64], sizes = [128, 64], strides = [1, 1]} : vector<128x192xf32> to vector<128x64xf32>
    %135 = vector.extract_strided_slice %131 {offsets = [0, 128], sizes = [128, 64], strides = [1, 1]} : vector<128x192xf32> to vector<128x64xf32>
    %136 = arith.truncf %133 : vector<128x64xf32> to vector<128x64xbf16>
    %137 = arith.truncf %134 : vector<128x64xf32> to vector<128x64xbf16>
    %cst_67 = arith.constant dense<0.000000e+00> : vector<128x128xf32>
    %138 = tpu.matmul %136, %137, %cst_67 {dimension_numbers = #tpu.dot_dimension_numbers<[1], [1], [0], [0], [0, 0, 1, 0], [], []>} : vector<128x64xbf16>, vector<128x64xbf16>, vector<128x128xf32> -> vector<128x128xf32>
    %139 = arith.addf %138, %2 : vector<128x128xf32>
    %cst_68 = arith.constant dense<0xFF800000> : vector<128xf32>
    %140 = vector.multi_reduction <maximumf>, %139, %cst_68 [1] : vector<128x128xf32> to vector<128xf32>
    %141 = vector.shape_cast %140 : vector<128xf32> to vector<128x1xf32>
    %142 = vector.broadcast %141 : vector<128x1xf32> to vector<128x128xf32>
    %143 = arith.subf %139, %142 : vector<128x128xf32>
    %144 = math.exp %143 : vector<128x128xf32>
    %cst_69 = arith.constant dense<0.000000e+00> : vector<128xf32>
    %145 = vector.multi_reduction <add>, %144, %cst_69 [1] : vector<128x128xf32> to vector<128xf32>
    %146 = vector.shape_cast %145 : vector<128xf32> to vector<128x1xf32>
    %147 = tpu.reciprocal %146 {approx = true} : vector<128x1xf32> -> vector<128x1xf32>
    %148 = vector.broadcast %147 : vector<128x1xf32> to vector<128x128xf32>
    %149 = arith.mulf %144, %148 : vector<128x128xf32>
    %150 = arith.truncf %149 : vector<128x128xf32> to vector<128x128xbf16>
    %151 = arith.truncf %135 : vector<128x64xf32> to vector<128x64xbf16>
    %cst_70 = arith.constant dense<0.000000e+00> : vector<128x64xf32>
    %152 = tpu.matmul %150, %151, %cst_70 {dimension_numbers = #tpu.dot_dimension_numbers<[1], [0], [0], [1], [0, 0, 1, 1], [], []>} : vector<128x128xbf16>, vector<128x64xbf16>, vector<128x64xf32> -> vector<128x64xf32>
    %153 = arith.mulf %152, %3 : vector<128x64xf32>
    %154 = arith.truncf %153 : vector<128x64xf32> to vector<128x64xbf16>
    %c1_71 = arith.constant 1 : index
    %c0_72 = arith.constant 0 : index
    %c0_73 = arith.constant 0 : index
    %155 = vector.load %arg5[%c1_71, %c0_72, %c0_73] : memref<4x64x64xbf16, #tpu.memory_space<vmem>>, vector<1x64x64xbf16>
    %156 = vector.shape_cast %155 : vector<1x64x64xbf16> to vector<64x64xbf16>
    %cst_74 = arith.constant dense<0.000000e+00> : vector<128x64xf32>
    %157 = tpu.matmul %154, %156, %cst_74 {dimension_numbers = #tpu.dot_dimension_numbers<[1], [0], [0], [1], [0, 0, 1, 1], [], []>} : vector<128x64xbf16>, vector<64x64xbf16>, vector<128x64xf32> -> vector<128x64xf32>
    %158 = vector.shape_cast %157 : vector<128x64xf32> to vector<8x16x64xf32>
    %cst_75 = arith.constant dense<0.000000e+00> : vector<16x64xf32>
    %159 = vector.multi_reduction <add>, %158, %cst_75 [0] : vector<8x16x64xf32> to vector<16x64xf32>
    %c1_76 = arith.constant 1 : index
    %c0_77 = arith.constant 0 : index
    %c0_78 = arith.constant 0 : index
    %160 = vector.load %arg6[%c1_76, %c0_77, %c0_78] : memref<4x1x64xf32, #tpu.memory_space<vmem>>, vector<1x1x64xf32>
    %161 = vector.shape_cast %160 : vector<1x1x64xf32> to vector<1x64xf32>
    %162 = vector.broadcast %161 : vector<1x64xf32> to vector<16x64xf32>
    %163 = arith.addf %159, %162 : vector<16x64xf32>
    %164 = arith.addf %119, %163 : vector<16x64xf32>
    %c1_79 = arith.constant 1 : index
    %c0_80 = arith.constant 0 : index
    %c0_81 = arith.constant 0 : index
    %165 = vector.load %arg7[%c1_79, %c0_80, %c0_81] : memref<4x1x64xf32, #tpu.memory_space<vmem>>, vector<1x1x64xf32>
    %166 = vector.shape_cast %165 : vector<1x1x64xf32> to vector<1x64xf32>
    %c1_82 = arith.constant 1 : index
    %c0_83 = arith.constant 0 : index
    %c0_84 = arith.constant 0 : index
    %167 = vector.load %arg8[%c1_82, %c0_83, %c0_84] : memref<4x1x64xf32, #tpu.memory_space<vmem>>, vector<1x1x64xf32>
    %168 = vector.shape_cast %167 : vector<1x1x64xf32> to vector<1x64xf32>
    %cst_85 = arith.constant dense<0.000000e+00> : vector<16xf32>
    %169 = vector.multi_reduction <add>, %164, %cst_85 [1] : vector<16x64xf32> to vector<16xf32>
    %170 = vector.shape_cast %169 : vector<16xf32> to vector<16x1xf32>
    %cst_86 = arith.constant 6.400000e+01 : f32
    %171 = vector.broadcast %cst_86 : f32 to vector<16x1xf32>
    %172 = arith.divf %170, %171 : vector<16x1xf32>
    %173 = vector.broadcast %172 : vector<16x1xf32> to vector<16x64xf32>
    %174 = arith.subf %164, %173 : vector<16x64xf32>
    %175 = arith.mulf %174, %174 : vector<16x64xf32>
    %cst_87 = arith.constant dense<0.000000e+00> : vector<16xf32>
    %176 = vector.multi_reduction <add>, %175, %cst_87 [1] : vector<16x64xf32> to vector<16xf32>
    %177 = vector.shape_cast %176 : vector<16xf32> to vector<16x1xf32>
    %cst_88 = arith.constant 6.400000e+01 : f32
    %178 = vector.broadcast %cst_88 : f32 to vector<16x1xf32>
    %179 = arith.divf %177, %178 : vector<16x1xf32>
    %180 = vector.broadcast %172 : vector<16x1xf32> to vector<16x64xf32>
    %181 = arith.subf %164, %180 : vector<16x64xf32>
    %cst_89 = arith.constant 9.99999974E-6 : f32
    %182 = vector.broadcast %cst_89 : f32 to vector<16x1xf32>
    %183 = arith.addf %179, %182 : vector<16x1xf32>
    %184 = math.rsqrt %183 : vector<16x1xf32>
    %185 = vector.broadcast %184 : vector<16x1xf32> to vector<16x64xf32>
    %186 = arith.mulf %181, %185 : vector<16x64xf32>
    %187 = vector.broadcast %166 : vector<1x64xf32> to vector<16x64xf32>
    %188 = arith.mulf %186, %187 : vector<16x64xf32>
    %189 = vector.broadcast %168 : vector<1x64xf32> to vector<16x64xf32>
    %190 = arith.addf %188, %189 : vector<16x64xf32>
    %191 = arith.truncf %190 : vector<16x64xf32> to vector<16x64xbf16>
    %c1_90 = arith.constant 1 : index
    %c0_91 = arith.constant 0 : index
    %c0_92 = arith.constant 0 : index
    %192 = vector.load %arg9[%c1_90, %c0_91, %c0_92] : memref<4x64x64xbf16, #tpu.memory_space<vmem>>, vector<1x64x64xbf16>
    %193 = vector.shape_cast %192 : vector<1x64x64xbf16> to vector<64x64xbf16>
    %cst_93 = arith.constant dense<0.000000e+00> : vector<16x64xf32>
    %194 = tpu.matmul %191, %193, %cst_93 {dimension_numbers = #tpu.dot_dimension_numbers<[1], [0], [0], [1], [0, 0, 1, 1], [], []>} : vector<16x64xbf16>, vector<64x64xbf16>, vector<16x64xf32> -> vector<16x64xf32>
    %c1_94 = arith.constant 1 : index
    %c0_95 = arith.constant 0 : index
    %c0_96 = arith.constant 0 : index
    %195 = vector.load %arg10[%c1_94, %c0_95, %c0_96] : memref<4x1x64xf32, #tpu.memory_space<vmem>>, vector<1x1x64xf32>
    %196 = vector.shape_cast %195 : vector<1x1x64xf32> to vector<1x64xf32>
    %197 = vector.broadcast %196 : vector<1x64xf32> to vector<16x64xf32>
    %198 = arith.addf %194, %197 : vector<16x64xf32>
    %cst_97 = arith.constant 0.000000e+00 : f32
    %199 = vector.broadcast %cst_97 : f32 to vector<16x64xf32>
    %200 = arith.maximumf %198, %199 : vector<16x64xf32>
    %201 = arith.truncf %200 : vector<16x64xf32> to vector<16x64xbf16>
    %c1_98 = arith.constant 1 : index
    %c0_99 = arith.constant 0 : index
    %c0_100 = arith.constant 0 : index
    %202 = vector.load %arg11[%c1_98, %c0_99, %c0_100] : memref<4x64x64xbf16, #tpu.memory_space<vmem>>, vector<1x64x64xbf16>
    %203 = vector.shape_cast %202 : vector<1x64x64xbf16> to vector<64x64xbf16>
    %cst_101 = arith.constant dense<0.000000e+00> : vector<16x64xf32>
    %204 = tpu.matmul %201, %203, %cst_101 {dimension_numbers = #tpu.dot_dimension_numbers<[1], [0], [0], [1], [0, 0, 1, 1], [], []>} : vector<16x64xbf16>, vector<64x64xbf16>, vector<16x64xf32> -> vector<16x64xf32>
    %c1_102 = arith.constant 1 : index
    %c0_103 = arith.constant 0 : index
    %c0_104 = arith.constant 0 : index
    %205 = vector.load %arg12[%c1_102, %c0_103, %c0_104] : memref<4x1x64xf32, #tpu.memory_space<vmem>>, vector<1x1x64xf32>
    %206 = vector.shape_cast %205 : vector<1x1x64xf32> to vector<1x64xf32>
    %207 = vector.broadcast %206 : vector<1x64xf32> to vector<16x64xf32>
    %208 = arith.addf %204, %207 : vector<16x64xf32>
    %209 = arith.addf %190, %208 : vector<16x64xf32>
    %c1_105 = arith.constant 1 : index
    %c0_106 = arith.constant 0 : index
    %c0_107 = arith.constant 0 : index
    %210 = vector.load %arg13[%c1_105, %c0_106, %c0_107] : memref<4x1x64xf32, #tpu.memory_space<vmem>>, vector<1x1x64xf32>
    %211 = vector.shape_cast %210 : vector<1x1x64xf32> to vector<1x64xf32>
    %c1_108 = arith.constant 1 : index
    %c0_109 = arith.constant 0 : index
    %c0_110 = arith.constant 0 : index
    %212 = vector.load %arg14[%c1_108, %c0_109, %c0_110] : memref<4x1x64xf32, #tpu.memory_space<vmem>>, vector<1x1x64xf32>
    %213 = vector.shape_cast %212 : vector<1x1x64xf32> to vector<1x64xf32>
    %cst_111 = arith.constant dense<0.000000e+00> : vector<16xf32>
    %214 = vector.multi_reduction <add>, %209, %cst_111 [1] : vector<16x64xf32> to vector<16xf32>
    %215 = vector.shape_cast %214 : vector<16xf32> to vector<16x1xf32>
    %cst_112 = arith.constant 6.400000e+01 : f32
    %216 = vector.broadcast %cst_112 : f32 to vector<16x1xf32>
    %217 = arith.divf %215, %216 : vector<16x1xf32>
    %218 = vector.broadcast %217 : vector<16x1xf32> to vector<16x64xf32>
    %219 = arith.subf %209, %218 : vector<16x64xf32>
    %220 = arith.mulf %219, %219 : vector<16x64xf32>
    %cst_113 = arith.constant dense<0.000000e+00> : vector<16xf32>
    %221 = vector.multi_reduction <add>, %220, %cst_113 [1] : vector<16x64xf32> to vector<16xf32>
    %222 = vector.shape_cast %221 : vector<16xf32> to vector<16x1xf32>
    %cst_114 = arith.constant 6.400000e+01 : f32
    %223 = vector.broadcast %cst_114 : f32 to vector<16x1xf32>
    %224 = arith.divf %222, %223 : vector<16x1xf32>
    %225 = vector.broadcast %217 : vector<16x1xf32> to vector<16x64xf32>
    %226 = arith.subf %209, %225 : vector<16x64xf32>
    %cst_115 = arith.constant 9.99999974E-6 : f32
    %227 = vector.broadcast %cst_115 : f32 to vector<16x1xf32>
    %228 = arith.addf %224, %227 : vector<16x1xf32>
    %229 = math.rsqrt %228 : vector<16x1xf32>
    %230 = vector.broadcast %229 : vector<16x1xf32> to vector<16x64xf32>
    %231 = arith.mulf %226, %230 : vector<16x64xf32>
    %232 = vector.broadcast %211 : vector<1x64xf32> to vector<16x64xf32>
    %233 = arith.mulf %231, %232 : vector<16x64xf32>
    %234 = vector.broadcast %213 : vector<1x64xf32> to vector<16x64xf32>
    %235 = arith.addf %233, %234 : vector<16x64xf32>
    %236 = arith.truncf %235 : vector<16x64xf32> to vector<16x64xbf16>
    %c2 = arith.constant 2 : index
    %c0_116 = arith.constant 0 : index
    %c0_117 = arith.constant 0 : index
    %237 = vector.load %arg3[%c2, %c0_116, %c0_117] : memref<4x64x192xbf16, #tpu.memory_space<vmem>>, vector<1x64x192xbf16>
    %238 = vector.shape_cast %237 : vector<1x64x192xbf16> to vector<64x192xbf16>
    %cst_118 = arith.constant dense<0.000000e+00> : vector<16x192xf32>
    %239 = tpu.matmul %236, %238, %cst_118 {dimension_numbers = #tpu.dot_dimension_numbers<[1], [0], [0], [1], [0, 0, 1, 1], [], []>} : vector<16x64xbf16>, vector<64x192xbf16>, vector<16x192xf32> -> vector<16x192xf32>
    %c2_119 = arith.constant 2 : index
    %c0_120 = arith.constant 0 : index
    %c0_121 = arith.constant 0 : index
    %240 = vector.load %arg4[%c2_119, %c0_120, %c0_121] : memref<4x1x192xf32, #tpu.memory_space<vmem>>, vector<1x1x192xf32>
    %241 = vector.shape_cast %240 : vector<1x1x192xf32> to vector<1x192xf32>
    %242 = vector.broadcast %241 : vector<1x192xf32> to vector<16x192xf32>
    %243 = arith.addf %239, %242 : vector<16x192xf32>
    %244 = vector.shape_cast %243 : vector<16x192xf32> to vector<1x16x192xf32>
    %245 = vector.shape_cast %244 : vector<1x16x192xf32> to vector<1x16x192xf32>
    %246 = vector.broadcast %245 : vector<1x16x192xf32> to vector<8x16x192xf32>
    %247 = vector.shape_cast %246 : vector<8x16x192xf32> to vector<128x192xf32>
    %248 = vector.extract_strided_slice %247 {offsets = [0, 0], sizes = [128, 64], strides = [1, 1]} : vector<128x192xf32> to vector<128x64xf32>
    %249 = arith.mulf %248, %3 : vector<128x64xf32>
    %250 = vector.extract_strided_slice %247 {offsets = [0, 64], sizes = [128, 64], strides = [1, 1]} : vector<128x192xf32> to vector<128x64xf32>
    %251 = vector.extract_strided_slice %247 {offsets = [0, 128], sizes = [128, 64], strides = [1, 1]} : vector<128x192xf32> to vector<128x64xf32>
    %252 = arith.truncf %249 : vector<128x64xf32> to vector<128x64xbf16>
    %253 = arith.truncf %250 : vector<128x64xf32> to vector<128x64xbf16>
    %cst_122 = arith.constant dense<0.000000e+00> : vector<128x128xf32>
    %254 = tpu.matmul %252, %253, %cst_122 {dimension_numbers = #tpu.dot_dimension_numbers<[1], [1], [0], [0], [0, 0, 1, 0], [], []>} : vector<128x64xbf16>, vector<128x64xbf16>, vector<128x128xf32> -> vector<128x128xf32>
    %255 = arith.addf %254, %2 : vector<128x128xf32>
    %cst_123 = arith.constant dense<0xFF800000> : vector<128xf32>
    %256 = vector.multi_reduction <maximumf>, %255, %cst_123 [1] : vector<128x128xf32> to vector<128xf32>
    %257 = vector.shape_cast %256 : vector<128xf32> to vector<128x1xf32>
    %258 = vector.broadcast %257 : vector<128x1xf32> to vector<128x128xf32>
    %259 = arith.subf %255, %258 : vector<128x128xf32>
    %260 = math.exp %259 : vector<128x128xf32>
    %cst_124 = arith.constant dense<0.000000e+00> : vector<128xf32>
    %261 = vector.multi_reduction <add>, %260, %cst_124 [1] : vector<128x128xf32> to vector<128xf32>
    %262 = vector.shape_cast %261 : vector<128xf32> to vector<128x1xf32>
    %263 = tpu.reciprocal %262 {approx = true} : vector<128x1xf32> -> vector<128x1xf32>
    %264 = vector.broadcast %263 : vector<128x1xf32> to vector<128x128xf32>
    %265 = arith.mulf %260, %264 : vector<128x128xf32>
    %266 = arith.truncf %265 : vector<128x128xf32> to vector<128x128xbf16>
    %267 = arith.truncf %251 : vector<128x64xf32> to vector<128x64xbf16>
    %cst_125 = arith.constant dense<0.000000e+00> : vector<128x64xf32>
    %268 = tpu.matmul %266, %267, %cst_125 {dimension_numbers = #tpu.dot_dimension_numbers<[1], [0], [0], [1], [0, 0, 1, 1], [], []>} : vector<128x128xbf16>, vector<128x64xbf16>, vector<128x64xf32> -> vector<128x64xf32>
    %269 = arith.mulf %268, %3 : vector<128x64xf32>
    %270 = arith.truncf %269 : vector<128x64xf32> to vector<128x64xbf16>
    %c2_126 = arith.constant 2 : index
    %c0_127 = arith.constant 0 : index
    %c0_128 = arith.constant 0 : index
    %271 = vector.load %arg5[%c2_126, %c0_127, %c0_128] : memref<4x64x64xbf16, #tpu.memory_space<vmem>>, vector<1x64x64xbf16>
    %272 = vector.shape_cast %271 : vector<1x64x64xbf16> to vector<64x64xbf16>
    %cst_129 = arith.constant dense<0.000000e+00> : vector<128x64xf32>
    %273 = tpu.matmul %270, %272, %cst_129 {dimension_numbers = #tpu.dot_dimension_numbers<[1], [0], [0], [1], [0, 0, 1, 1], [], []>} : vector<128x64xbf16>, vector<64x64xbf16>, vector<128x64xf32> -> vector<128x64xf32>
    %274 = vector.shape_cast %273 : vector<128x64xf32> to vector<8x16x64xf32>
    %cst_130 = arith.constant dense<0.000000e+00> : vector<16x64xf32>
    %275 = vector.multi_reduction <add>, %274, %cst_130 [0] : vector<8x16x64xf32> to vector<16x64xf32>
    %c2_131 = arith.constant 2 : index
    %c0_132 = arith.constant 0 : index
    %c0_133 = arith.constant 0 : index
    %276 = vector.load %arg6[%c2_131, %c0_132, %c0_133] : memref<4x1x64xf32, #tpu.memory_space<vmem>>, vector<1x1x64xf32>
    %277 = vector.shape_cast %276 : vector<1x1x64xf32> to vector<1x64xf32>
    %278 = vector.broadcast %277 : vector<1x64xf32> to vector<16x64xf32>
    %279 = arith.addf %275, %278 : vector<16x64xf32>
    %280 = arith.addf %235, %279 : vector<16x64xf32>
    %c2_134 = arith.constant 2 : index
    %c0_135 = arith.constant 0 : index
    %c0_136 = arith.constant 0 : index
    %281 = vector.load %arg7[%c2_134, %c0_135, %c0_136] : memref<4x1x64xf32, #tpu.memory_space<vmem>>, vector<1x1x64xf32>
    %282 = vector.shape_cast %281 : vector<1x1x64xf32> to vector<1x64xf32>
    %c2_137 = arith.constant 2 : index
    %c0_138 = arith.constant 0 : index
    %c0_139 = arith.constant 0 : index
    %283 = vector.load %arg8[%c2_137, %c0_138, %c0_139] : memref<4x1x64xf32, #tpu.memory_space<vmem>>, vector<1x1x64xf32>
    %284 = vector.shape_cast %283 : vector<1x1x64xf32> to vector<1x64xf32>
    %cst_140 = arith.constant dense<0.000000e+00> : vector<16xf32>
    %285 = vector.multi_reduction <add>, %280, %cst_140 [1] : vector<16x64xf32> to vector<16xf32>
    %286 = vector.shape_cast %285 : vector<16xf32> to vector<16x1xf32>
    %cst_141 = arith.constant 6.400000e+01 : f32
    %287 = vector.broadcast %cst_141 : f32 to vector<16x1xf32>
    %288 = arith.divf %286, %287 : vector<16x1xf32>
    %289 = vector.broadcast %288 : vector<16x1xf32> to vector<16x64xf32>
    %290 = arith.subf %280, %289 : vector<16x64xf32>
    %291 = arith.mulf %290, %290 : vector<16x64xf32>
    %cst_142 = arith.constant dense<0.000000e+00> : vector<16xf32>
    %292 = vector.multi_reduction <add>, %291, %cst_142 [1] : vector<16x64xf32> to vector<16xf32>
    %293 = vector.shape_cast %292 : vector<16xf32> to vector<16x1xf32>
    %cst_143 = arith.constant 6.400000e+01 : f32
    %294 = vector.broadcast %cst_143 : f32 to vector<16x1xf32>
    %295 = arith.divf %293, %294 : vector<16x1xf32>
    %296 = vector.broadcast %288 : vector<16x1xf32> to vector<16x64xf32>
    %297 = arith.subf %280, %296 : vector<16x64xf32>
    %cst_144 = arith.constant 9.99999974E-6 : f32
    %298 = vector.broadcast %cst_144 : f32 to vector<16x1xf32>
    %299 = arith.addf %295, %298 : vector<16x1xf32>
    %300 = math.rsqrt %299 : vector<16x1xf32>
    %301 = vector.broadcast %300 : vector<16x1xf32> to vector<16x64xf32>
    %302 = arith.mulf %297, %301 : vector<16x64xf32>
    %303 = vector.broadcast %282 : vector<1x64xf32> to vector<16x64xf32>
    %304 = arith.mulf %302, %303 : vector<16x64xf32>
    %305 = vector.broadcast %284 : vector<1x64xf32> to vector<16x64xf32>
    %306 = arith.addf %304, %305 : vector<16x64xf32>
    %307 = arith.truncf %306 : vector<16x64xf32> to vector<16x64xbf16>
    %c2_145 = arith.constant 2 : index
    %c0_146 = arith.constant 0 : index
    %c0_147 = arith.constant 0 : index
    %308 = vector.load %arg9[%c2_145, %c0_146, %c0_147] : memref<4x64x64xbf16, #tpu.memory_space<vmem>>, vector<1x64x64xbf16>
    %309 = vector.shape_cast %308 : vector<1x64x64xbf16> to vector<64x64xbf16>
    %cst_148 = arith.constant dense<0.000000e+00> : vector<16x64xf32>
    %310 = tpu.matmul %307, %309, %cst_148 {dimension_numbers = #tpu.dot_dimension_numbers<[1], [0], [0], [1], [0, 0, 1, 1], [], []>} : vector<16x64xbf16>, vector<64x64xbf16>, vector<16x64xf32> -> vector<16x64xf32>
    %c2_149 = arith.constant 2 : index
    %c0_150 = arith.constant 0 : index
    %c0_151 = arith.constant 0 : index
    %311 = vector.load %arg10[%c2_149, %c0_150, %c0_151] : memref<4x1x64xf32, #tpu.memory_space<vmem>>, vector<1x1x64xf32>
    %312 = vector.shape_cast %311 : vector<1x1x64xf32> to vector<1x64xf32>
    %313 = vector.broadcast %312 : vector<1x64xf32> to vector<16x64xf32>
    %314 = arith.addf %310, %313 : vector<16x64xf32>
    %cst_152 = arith.constant 0.000000e+00 : f32
    %315 = vector.broadcast %cst_152 : f32 to vector<16x64xf32>
    %316 = arith.maximumf %314, %315 : vector<16x64xf32>
    %317 = arith.truncf %316 : vector<16x64xf32> to vector<16x64xbf16>
    %c2_153 = arith.constant 2 : index
    %c0_154 = arith.constant 0 : index
    %c0_155 = arith.constant 0 : index
    %318 = vector.load %arg11[%c2_153, %c0_154, %c0_155] : memref<4x64x64xbf16, #tpu.memory_space<vmem>>, vector<1x64x64xbf16>
    %319 = vector.shape_cast %318 : vector<1x64x64xbf16> to vector<64x64xbf16>
    %cst_156 = arith.constant dense<0.000000e+00> : vector<16x64xf32>
    %320 = tpu.matmul %317, %319, %cst_156 {dimension_numbers = #tpu.dot_dimension_numbers<[1], [0], [0], [1], [0, 0, 1, 1], [], []>} : vector<16x64xbf16>, vector<64x64xbf16>, vector<16x64xf32> -> vector<16x64xf32>
    %c2_157 = arith.constant 2 : index
    %c0_158 = arith.constant 0 : index
    %c0_159 = arith.constant 0 : index
    %321 = vector.load %arg12[%c2_157, %c0_158, %c0_159] : memref<4x1x64xf32, #tpu.memory_space<vmem>>, vector<1x1x64xf32>
    %322 = vector.shape_cast %321 : vector<1x1x64xf32> to vector<1x64xf32>
    %323 = vector.broadcast %322 : vector<1x64xf32> to vector<16x64xf32>
    %324 = arith.addf %320, %323 : vector<16x64xf32>
    %325 = arith.addf %306, %324 : vector<16x64xf32>
    %c2_160 = arith.constant 2 : index
    %c0_161 = arith.constant 0 : index
    %c0_162 = arith.constant 0 : index
    %326 = vector.load %arg13[%c2_160, %c0_161, %c0_162] : memref<4x1x64xf32, #tpu.memory_space<vmem>>, vector<1x1x64xf32>
    %327 = vector.shape_cast %326 : vector<1x1x64xf32> to vector<1x64xf32>
    %c2_163 = arith.constant 2 : index
    %c0_164 = arith.constant 0 : index
    %c0_165 = arith.constant 0 : index
    %328 = vector.load %arg14[%c2_163, %c0_164, %c0_165] : memref<4x1x64xf32, #tpu.memory_space<vmem>>, vector<1x1x64xf32>
    %329 = vector.shape_cast %328 : vector<1x1x64xf32> to vector<1x64xf32>
    %cst_166 = arith.constant dense<0.000000e+00> : vector<16xf32>
    %330 = vector.multi_reduction <add>, %325, %cst_166 [1] : vector<16x64xf32> to vector<16xf32>
    %331 = vector.shape_cast %330 : vector<16xf32> to vector<16x1xf32>
    %cst_167 = arith.constant 6.400000e+01 : f32
    %332 = vector.broadcast %cst_167 : f32 to vector<16x1xf32>
    %333 = arith.divf %331, %332 : vector<16x1xf32>
    %334 = vector.broadcast %333 : vector<16x1xf32> to vector<16x64xf32>
    %335 = arith.subf %325, %334 : vector<16x64xf32>
    %336 = arith.mulf %335, %335 : vector<16x64xf32>
    %cst_168 = arith.constant dense<0.000000e+00> : vector<16xf32>
    %337 = vector.multi_reduction <add>, %336, %cst_168 [1] : vector<16x64xf32> to vector<16xf32>
    %338 = vector.shape_cast %337 : vector<16xf32> to vector<16x1xf32>
    %cst_169 = arith.constant 6.400000e+01 : f32
    %339 = vector.broadcast %cst_169 : f32 to vector<16x1xf32>
    %340 = arith.divf %338, %339 : vector<16x1xf32>
    %341 = vector.broadcast %333 : vector<16x1xf32> to vector<16x64xf32>
    %342 = arith.subf %325, %341 : vector<16x64xf32>
    %cst_170 = arith.constant 9.99999974E-6 : f32
    %343 = vector.broadcast %cst_170 : f32 to vector<16x1xf32>
    %344 = arith.addf %340, %343 : vector<16x1xf32>
    %345 = math.rsqrt %344 : vector<16x1xf32>
    %346 = vector.broadcast %345 : vector<16x1xf32> to vector<16x64xf32>
    %347 = arith.mulf %342, %346 : vector<16x64xf32>
    %348 = vector.broadcast %327 : vector<1x64xf32> to vector<16x64xf32>
    %349 = arith.mulf %347, %348 : vector<16x64xf32>
    %350 = vector.broadcast %329 : vector<1x64xf32> to vector<16x64xf32>
    %351 = arith.addf %349, %350 : vector<16x64xf32>
    %352 = arith.truncf %351 : vector<16x64xf32> to vector<16x64xbf16>
    %c3 = arith.constant 3 : index
    %c0_171 = arith.constant 0 : index
    %c0_172 = arith.constant 0 : index
    %353 = vector.load %arg3[%c3, %c0_171, %c0_172] : memref<4x64x192xbf16, #tpu.memory_space<vmem>>, vector<1x64x192xbf16>
    %354 = vector.shape_cast %353 : vector<1x64x192xbf16> to vector<64x192xbf16>
    %cst_173 = arith.constant dense<0.000000e+00> : vector<16x192xf32>
    %355 = tpu.matmul %352, %354, %cst_173 {dimension_numbers = #tpu.dot_dimension_numbers<[1], [0], [0], [1], [0, 0, 1, 1], [], []>} : vector<16x64xbf16>, vector<64x192xbf16>, vector<16x192xf32> -> vector<16x192xf32>
    %c3_174 = arith.constant 3 : index
    %c0_175 = arith.constant 0 : index
    %c0_176 = arith.constant 0 : index
    %356 = vector.load %arg4[%c3_174, %c0_175, %c0_176] : memref<4x1x192xf32, #tpu.memory_space<vmem>>, vector<1x1x192xf32>
    %357 = vector.shape_cast %356 : vector<1x1x192xf32> to vector<1x192xf32>
    %358 = vector.broadcast %357 : vector<1x192xf32> to vector<16x192xf32>
    %359 = arith.addf %355, %358 : vector<16x192xf32>
    %360 = vector.shape_cast %359 : vector<16x192xf32> to vector<1x16x192xf32>
    %361 = vector.shape_cast %360 : vector<1x16x192xf32> to vector<1x16x192xf32>
    %362 = vector.broadcast %361 : vector<1x16x192xf32> to vector<8x16x192xf32>
    %363 = vector.shape_cast %362 : vector<8x16x192xf32> to vector<128x192xf32>
    %364 = vector.extract_strided_slice %363 {offsets = [0, 0], sizes = [128, 64], strides = [1, 1]} : vector<128x192xf32> to vector<128x64xf32>
    %365 = arith.mulf %364, %3 : vector<128x64xf32>
    %366 = vector.extract_strided_slice %363 {offsets = [0, 64], sizes = [128, 64], strides = [1, 1]} : vector<128x192xf32> to vector<128x64xf32>
    %367 = vector.extract_strided_slice %363 {offsets = [0, 128], sizes = [128, 64], strides = [1, 1]} : vector<128x192xf32> to vector<128x64xf32>
    %368 = arith.truncf %365 : vector<128x64xf32> to vector<128x64xbf16>
    %369 = arith.truncf %366 : vector<128x64xf32> to vector<128x64xbf16>
    %cst_177 = arith.constant dense<0.000000e+00> : vector<128x128xf32>
    %370 = tpu.matmul %368, %369, %cst_177 {dimension_numbers = #tpu.dot_dimension_numbers<[1], [1], [0], [0], [0, 0, 1, 0], [], []>} : vector<128x64xbf16>, vector<128x64xbf16>, vector<128x128xf32> -> vector<128x128xf32>
    %371 = arith.addf %370, %2 : vector<128x128xf32>
    %cst_178 = arith.constant dense<0xFF800000> : vector<128xf32>
    %372 = vector.multi_reduction <maximumf>, %371, %cst_178 [1] : vector<128x128xf32> to vector<128xf32>
    %373 = vector.shape_cast %372 : vector<128xf32> to vector<128x1xf32>
    %374 = vector.broadcast %373 : vector<128x1xf32> to vector<128x128xf32>
    %375 = arith.subf %371, %374 : vector<128x128xf32>
    %376 = math.exp %375 : vector<128x128xf32>
    %cst_179 = arith.constant dense<0.000000e+00> : vector<128xf32>
    %377 = vector.multi_reduction <add>, %376, %cst_179 [1] : vector<128x128xf32> to vector<128xf32>
    %378 = vector.shape_cast %377 : vector<128xf32> to vector<128x1xf32>
    %379 = tpu.reciprocal %378 {approx = true} : vector<128x1xf32> -> vector<128x1xf32>
    %380 = vector.broadcast %379 : vector<128x1xf32> to vector<128x128xf32>
    %381 = arith.mulf %376, %380 : vector<128x128xf32>
    %382 = arith.truncf %381 : vector<128x128xf32> to vector<128x128xbf16>
    %383 = arith.truncf %367 : vector<128x64xf32> to vector<128x64xbf16>
    %cst_180 = arith.constant dense<0.000000e+00> : vector<128x64xf32>
    %384 = tpu.matmul %382, %383, %cst_180 {dimension_numbers = #tpu.dot_dimension_numbers<[1], [0], [0], [1], [0, 0, 1, 1], [], []>} : vector<128x128xbf16>, vector<128x64xbf16>, vector<128x64xf32> -> vector<128x64xf32>
    %385 = arith.mulf %384, %3 : vector<128x64xf32>
    %386 = arith.truncf %385 : vector<128x64xf32> to vector<128x64xbf16>
    %c3_181 = arith.constant 3 : index
    %c0_182 = arith.constant 0 : index
    %c0_183 = arith.constant 0 : index
    %387 = vector.load %arg5[%c3_181, %c0_182, %c0_183] : memref<4x64x64xbf16, #tpu.memory_space<vmem>>, vector<1x64x64xbf16>
    %388 = vector.shape_cast %387 : vector<1x64x64xbf16> to vector<64x64xbf16>
    %cst_184 = arith.constant dense<0.000000e+00> : vector<128x64xf32>
    %389 = tpu.matmul %386, %388, %cst_184 {dimension_numbers = #tpu.dot_dimension_numbers<[1], [0], [0], [1], [0, 0, 1, 1], [], []>} : vector<128x64xbf16>, vector<64x64xbf16>, vector<128x64xf32> -> vector<128x64xf32>
    %390 = vector.shape_cast %389 : vector<128x64xf32> to vector<8x16x64xf32>
    %cst_185 = arith.constant dense<0.000000e+00> : vector<16x64xf32>
    %391 = vector.multi_reduction <add>, %390, %cst_185 [0] : vector<8x16x64xf32> to vector<16x64xf32>
    %c3_186 = arith.constant 3 : index
    %c0_187 = arith.constant 0 : index
    %c0_188 = arith.constant 0 : index
    %392 = vector.load %arg6[%c3_186, %c0_187, %c0_188] : memref<4x1x64xf32, #tpu.memory_space<vmem>>, vector<1x1x64xf32>
    %393 = vector.shape_cast %392 : vector<1x1x64xf32> to vector<1x64xf32>
    %394 = vector.broadcast %393 : vector<1x64xf32> to vector<16x64xf32>
    %395 = arith.addf %391, %394 : vector<16x64xf32>
    %396 = arith.addf %351, %395 : vector<16x64xf32>
    %c3_189 = arith.constant 3 : index
    %c0_190 = arith.constant 0 : index
    %c0_191 = arith.constant 0 : index
    %397 = vector.load %arg7[%c3_189, %c0_190, %c0_191] : memref<4x1x64xf32, #tpu.memory_space<vmem>>, vector<1x1x64xf32>
    %398 = vector.shape_cast %397 : vector<1x1x64xf32> to vector<1x64xf32>
    %c3_192 = arith.constant 3 : index
    %c0_193 = arith.constant 0 : index
    %c0_194 = arith.constant 0 : index
    %399 = vector.load %arg8[%c3_192, %c0_193, %c0_194] : memref<4x1x64xf32, #tpu.memory_space<vmem>>, vector<1x1x64xf32>
    %400 = vector.shape_cast %399 : vector<1x1x64xf32> to vector<1x64xf32>
    %cst_195 = arith.constant dense<0.000000e+00> : vector<16xf32>
    %401 = vector.multi_reduction <add>, %396, %cst_195 [1] : vector<16x64xf32> to vector<16xf32>
    %402 = vector.shape_cast %401 : vector<16xf32> to vector<16x1xf32>
    %cst_196 = arith.constant 6.400000e+01 : f32
    %403 = vector.broadcast %cst_196 : f32 to vector<16x1xf32>
    %404 = arith.divf %402, %403 : vector<16x1xf32>
    %405 = vector.broadcast %404 : vector<16x1xf32> to vector<16x64xf32>
    %406 = arith.subf %396, %405 : vector<16x64xf32>
    %407 = arith.mulf %406, %406 : vector<16x64xf32>
    %cst_197 = arith.constant dense<0.000000e+00> : vector<16xf32>
    %408 = vector.multi_reduction <add>, %407, %cst_197 [1] : vector<16x64xf32> to vector<16xf32>
    %409 = vector.shape_cast %408 : vector<16xf32> to vector<16x1xf32>
    %cst_198 = arith.constant 6.400000e+01 : f32
    %410 = vector.broadcast %cst_198 : f32 to vector<16x1xf32>
    %411 = arith.divf %409, %410 : vector<16x1xf32>
    %412 = vector.broadcast %404 : vector<16x1xf32> to vector<16x64xf32>
    %413 = arith.subf %396, %412 : vector<16x64xf32>
    %cst_199 = arith.constant 9.99999974E-6 : f32
    %414 = vector.broadcast %cst_199 : f32 to vector<16x1xf32>
    %415 = arith.addf %411, %414 : vector<16x1xf32>
    %416 = math.rsqrt %415 : vector<16x1xf32>
    %417 = vector.broadcast %416 : vector<16x1xf32> to vector<16x64xf32>
    %418 = arith.mulf %413, %417 : vector<16x64xf32>
    %419 = vector.broadcast %398 : vector<1x64xf32> to vector<16x64xf32>
    %420 = arith.mulf %418, %419 : vector<16x64xf32>
    %421 = vector.broadcast %400 : vector<1x64xf32> to vector<16x64xf32>
    %422 = arith.addf %420, %421 : vector<16x64xf32>
    %423 = arith.truncf %422 : vector<16x64xf32> to vector<16x64xbf16>
    %c3_200 = arith.constant 3 : index
    %c0_201 = arith.constant 0 : index
    %c0_202 = arith.constant 0 : index
    %424 = vector.load %arg9[%c3_200, %c0_201, %c0_202] : memref<4x64x64xbf16, #tpu.memory_space<vmem>>, vector<1x64x64xbf16>
    %425 = vector.shape_cast %424 : vector<1x64x64xbf16> to vector<64x64xbf16>
    %cst_203 = arith.constant dense<0.000000e+00> : vector<16x64xf32>
    %426 = tpu.matmul %423, %425, %cst_203 {dimension_numbers = #tpu.dot_dimension_numbers<[1], [0], [0], [1], [0, 0, 1, 1], [], []>} : vector<16x64xbf16>, vector<64x64xbf16>, vector<16x64xf32> -> vector<16x64xf32>
    %c3_204 = arith.constant 3 : index
    %c0_205 = arith.constant 0 : index
    %c0_206 = arith.constant 0 : index
    %427 = vector.load %arg10[%c3_204, %c0_205, %c0_206] : memref<4x1x64xf32, #tpu.memory_space<vmem>>, vector<1x1x64xf32>
    %428 = vector.shape_cast %427 : vector<1x1x64xf32> to vector<1x64xf32>
    %429 = vector.broadcast %428 : vector<1x64xf32> to vector<16x64xf32>
    %430 = arith.addf %426, %429 : vector<16x64xf32>
    %cst_207 = arith.constant 0.000000e+00 : f32
    %431 = vector.broadcast %cst_207 : f32 to vector<16x64xf32>
    %432 = arith.maximumf %430, %431 : vector<16x64xf32>
    %433 = arith.truncf %432 : vector<16x64xf32> to vector<16x64xbf16>
    %c3_208 = arith.constant 3 : index
    %c0_209 = arith.constant 0 : index
    %c0_210 = arith.constant 0 : index
    %434 = vector.load %arg11[%c3_208, %c0_209, %c0_210] : memref<4x64x64xbf16, #tpu.memory_space<vmem>>, vector<1x64x64xbf16>
    %435 = vector.shape_cast %434 : vector<1x64x64xbf16> to vector<64x64xbf16>
    %cst_211 = arith.constant dense<0.000000e+00> : vector<16x64xf32>
    %436 = tpu.matmul %433, %435, %cst_211 {dimension_numbers = #tpu.dot_dimension_numbers<[1], [0], [0], [1], [0, 0, 1, 1], [], []>} : vector<16x64xbf16>, vector<64x64xbf16>, vector<16x64xf32> -> vector<16x64xf32>
    %c3_212 = arith.constant 3 : index
    %c0_213 = arith.constant 0 : index
    %c0_214 = arith.constant 0 : index
    %437 = vector.load %arg12[%c3_212, %c0_213, %c0_214] : memref<4x1x64xf32, #tpu.memory_space<vmem>>, vector<1x1x64xf32>
    %438 = vector.shape_cast %437 : vector<1x1x64xf32> to vector<1x64xf32>
    %439 = vector.broadcast %438 : vector<1x64xf32> to vector<16x64xf32>
    %440 = arith.addf %436, %439 : vector<16x64xf32>
    %441 = arith.addf %422, %440 : vector<16x64xf32>
    %c3_215 = arith.constant 3 : index
    %c0_216 = arith.constant 0 : index
    %c0_217 = arith.constant 0 : index
    %442 = vector.load %arg13[%c3_215, %c0_216, %c0_217] : memref<4x1x64xf32, #tpu.memory_space<vmem>>, vector<1x1x64xf32>
    %443 = vector.shape_cast %442 : vector<1x1x64xf32> to vector<1x64xf32>
    %c3_218 = arith.constant 3 : index
    %c0_219 = arith.constant 0 : index
    %c0_220 = arith.constant 0 : index
    %444 = vector.load %arg14[%c3_218, %c0_219, %c0_220] : memref<4x1x64xf32, #tpu.memory_space<vmem>>, vector<1x1x64xf32>
    %445 = vector.shape_cast %444 : vector<1x1x64xf32> to vector<1x64xf32>
    %cst_221 = arith.constant dense<0.000000e+00> : vector<16xf32>
    %446 = vector.multi_reduction <add>, %441, %cst_221 [1] : vector<16x64xf32> to vector<16xf32>
    %447 = vector.shape_cast %446 : vector<16xf32> to vector<16x1xf32>
    %cst_222 = arith.constant 6.400000e+01 : f32
    %448 = vector.broadcast %cst_222 : f32 to vector<16x1xf32>
    %449 = arith.divf %447, %448 : vector<16x1xf32>
    %450 = vector.broadcast %449 : vector<16x1xf32> to vector<16x64xf32>
    %451 = arith.subf %441, %450 : vector<16x64xf32>
    %452 = arith.mulf %451, %451 : vector<16x64xf32>
    %cst_223 = arith.constant dense<0.000000e+00> : vector<16xf32>
    %453 = vector.multi_reduction <add>, %452, %cst_223 [1] : vector<16x64xf32> to vector<16xf32>
    %454 = vector.shape_cast %453 : vector<16xf32> to vector<16x1xf32>
    %cst_224 = arith.constant 6.400000e+01 : f32
    %455 = vector.broadcast %cst_224 : f32 to vector<16x1xf32>
    %456 = arith.divf %454, %455 : vector<16x1xf32>
    %457 = vector.broadcast %449 : vector<16x1xf32> to vector<16x64xf32>
    %458 = arith.subf %441, %457 : vector<16x64xf32>
    %cst_225 = arith.constant 9.99999974E-6 : f32
    %459 = vector.broadcast %cst_225 : f32 to vector<16x1xf32>
    %460 = arith.addf %456, %459 : vector<16x1xf32>
    %461 = math.rsqrt %460 : vector<16x1xf32>
    %462 = vector.broadcast %461 : vector<16x1xf32> to vector<16x64xf32>
    %463 = arith.mulf %458, %462 : vector<16x64xf32>
    %464 = vector.broadcast %443 : vector<1x64xf32> to vector<16x64xf32>
    %465 = arith.mulf %463, %464 : vector<16x64xf32>
    %466 = vector.broadcast %445 : vector<1x64xf32> to vector<16x64xf32>
    %467 = arith.addf %465, %466 : vector<16x64xf32>
    %468 = arith.truncf %467 : vector<16x64xf32> to vector<16x64xbf16>
    %c0_226 = arith.constant 0 : index
    %c0_227 = arith.constant 0 : index
    %469 = vector.load %arg15[%c0_226, %c0_227] : memref<64x8xbf16, #tpu.memory_space<vmem>>, vector<64x8xbf16>
    %cst_228 = arith.constant dense<0.000000e+00> : vector<16x8xf32>
    %470 = tpu.matmul %468, %469, %cst_228 {dimension_numbers = #tpu.dot_dimension_numbers<[1], [0], [0], [1], [0, 0, 1, 1], [], []>} : vector<16x64xbf16>, vector<64x8xbf16>, vector<16x8xf32> -> vector<16x8xf32>
    %c0_229 = arith.constant 0 : index
    %c0_230 = arith.constant 0 : index
    %471 = vector.load %arg16[%c0_229, %c0_230] : memref<1x8xf32, #tpu.memory_space<vmem>>, vector<1x8xf32>
    %472 = vector.broadcast %471 : vector<1x8xf32> to vector<16x8xf32>
    %473 = arith.addf %470, %472 : vector<16x8xf32>
    %c0_231 = arith.constant 0 : index
    %c0_232 = arith.constant 0 : index
    %474 = vector.load %arg17[%c0_231, %c0_232] : memref<16x8xf32, #tpu.memory_space<vmem>>, vector<16x8xf32>
    tpu.vector_store %arg17[%c0_231, %c0_232], %473 {strides = array<i32>} : memref<16x8xf32, #tpu.memory_space<vmem>>, vector<16x8xf32>,
    return
  }
}

</mosaic_0001>

<llo_original>
// kernel: tpu_custom_call.1
$region0: #{tpu_custom_call.1}
  #allocation0 [shape = 'u32[]', space=smem, size = 0x4, offset = 0x4, fixed_abs, tag = 'smem constant byte address 0x4 - core index']
  #allocation1 [shape = 'u32[144,128]{1,0:T(1,128)}', space=vmem, size = 0x12000, scoped, tag = 'internal scratch']
  %s0 = inlined_call_operand.hbm [shape: f32[2,8,64], index: 0, kind: input, shape index: {}]
  %s1 = inlined_call_operand.vmem [shape: f32[128,128], index: 1, kind: input, shape index: {}]
  %s2 = inlined_call_operand.vmem [shape: f32[128,64], index: 2, kind: input, shape index: {}]
  %s3 = inlined_call_operand.hbm [shape: bf16[4,64,192], index: 3, kind: input, shape index: {}]
  %s4 = inlined_call_operand.hbm [shape: f32[4,1,192], index: 4, kind: input, shape index: {}]
  %s5 = inlined_call_operand.hbm [shape: bf16[4,64,64], index: 5, kind: input, shape index: {}]
  %s6 = inlined_call_operand.hbm [shape: f32[4,1,64], index: 6, kind: input, shape index: {}]
  %s7 = inlined_call_operand.hbm [shape: f32[4,1,64], index: 7, kind: input, shape index: {}]
  %s8 = inlined_call_operand.hbm [shape: f32[4,1,64], index: 8, kind: input, shape index: {}]
  %s9 = inlined_call_operand.vmem [shape: bf16[4,64,64], index: 9, kind: input, shape index: {}]
  %s10 = inlined_call_operand.vmem [shape: f32[4,1,64], index: 10, kind: input, shape index: {}]
  %s11 = inlined_call_operand.hbm [shape: bf16[4,64,64], index: 11, kind: input, shape index: {}]
  %s12 = inlined_call_operand.vmem [shape: f32[4,1,64], index: 12, kind: input, shape index: {}]
  %s13 = inlined_call_operand.vmem [shape: f32[4,1,64], index: 13, kind: input, shape index: {}]
  %s14 = inlined_call_operand.vmem [shape: f32[4,1,64], index: 14, kind: input, shape index: {}]
  %s15 = inlined_call_operand.vmem [shape: bf16[64,8], index: 15, kind: input, shape index: {}]
  %s16 = inlined_call_operand.vmem [shape: f32[1,8], index: 16, kind: input, shape index: {}]
  %s17 = inlined_call_operand.vmem [shape: f32[16,8], index: 17, kind: output, shape index: {}]
  %s18 = sld [smem:[#allocation0]]
  $region110: #{tpu_custom_call.1} parent=0
    _
  %s20 = ssub.s32 1, %s18
  %s21 = scalar_select 0, %s20, %s18
  $region1: #{tpu_custom_call.1} parent=0
    #allocation2 [shape = 'u8[8192]{0}', space=vmem, size = 0x2000, scoped, tag = 'input window, operand 0, single buffered']
    #allocation3 [shape = 's32[1]{0}', space=sflag, size = 0x4, scoped, tag = 'scoped memory for tpu_custom_call.1']
    #allocation4 [shape = 'u8[131072]{0}', space=vmem, size = 0x20000, scoped, tag = 'input window, operand 3, single buffered']
    #allocation5 [shape = 's32[1]{0}', space=sflag, size = 0x4, scoped, tag = 'scoped memory for tpu_custom_call.1']
    #allocation6 [shape = 'u8[4096]{0}', space=vmem, size = 0x1000, scoped, tag = 'input window, operand 4, single buffered']
    #allocation7 [shape = 'u8[65536]{0}', space=vmem, size = 0x10000, scoped, tag = 'input window, operand 5, single buffered']
    #allocation8 [shape = 's32[1]{0}', space=sflag, size = 0x4, scoped, tag = 'scoped memory for tpu_custom_call.1']
    #allocation9 [shape = 'u8[2048]{0}', space=vmem, size = 0x800, scoped, tag = 'input window, operand 6, single buffered']
    #allocation10 [shape = 'u8[2048]{0}', space=vmem, size = 0x800, scoped, tag = 'input window, operand 7, single buffered']
    #allocation11 [shape = 's32[1]{0}', space=sflag, size = 0x4, scoped, tag = 'scoped memory for tpu_custom_call.1']
    #allocation12 [shape = 'u8[2048]{0}', space=vmem, size = 0x800, scoped, tag = 'input window, operand 8, single buffered']
    #allocation13 [shape = 'u8[65536]{0}', space=vmem, size = 0x10000, scoped, tag = 'input window, operand 11, single buffered']
    #allocation14 [shape = 's32[1]{0}', space=sflag, size = 0x4, scoped, tag = 'scoped memory for tpu_custom_call.1']
    %22 = vsyncpa [#allocation3], 0
    %23 = vsyncpa [#allocation5], 0
    %24 = vsyncpa [#allocation8], 0
    %25 = vsyncpa [#allocation11], 0
    %26 = vsyncpa [#allocation14], 0
    // Predicated region
    $region2: #{tpu_custom_call.1} parent=1 // pred_check
      _
    $region3: #{tpu_custom_call.1} parent=1 // pred_check_branch
      %28 = sbr.rel (0) target = $region5
    $region4: #{tpu_custom_call.1} parent=1 // pred_region
      %s30 = ssub.s32 256, 256
      %31 = vsyncadd [#allocation3], %s30
      %s32 = sshll.u32 [#allocation2], 4
      %s33 = int_to_ptr.vmem [resolvable:$true] %s32
      %38 = dma.hbm_to_vmem [thread:$0]  %s0, 256, %s33, [#allocation3], 128, 128, 8
    $region5: #{tpu_custom_call.1} parent=1 // pred_fallthru
      _
    // Predicated region
    $region6: #{tpu_custom_call.1} parent=1 // pred_check
      _
    $region7: #{tpu_custom_call.1} parent=1 // pred_check_branch
      %40 = sbr.rel (0) target = $region9
    $region8: #{tpu_custom_call.1} parent=1 // pred_region
      _
    $region9: #{tpu_custom_call.1} parent=1 // pred_fallthru
      _
    // Predicated region
    $region10: #{tpu_custom_call.1} parent=1 // pred_check
      _
    $region11: #{tpu_custom_call.1} parent=1 // pred_check_branch
      %42 = sbr.rel (0) target = $region13
    $region12: #{tpu_custom_call.1} parent=1 // pred_region
      _
    $region13: #{tpu_custom_call.1} parent=1 // pred_fallthru
      _
    // Predicated region
    $region14: #{tpu_custom_call.1} parent=1 // pred_check
      _
    $region15: #{tpu_custom_call.1} parent=1 // pred_check_branch
      %44 = sbr.rel (0) target = $region17
    $region16: #{tpu_custom_call.1} parent=1 // pred_region
      %s46 = ssub.s32 4096, 4096
      %47 = vsyncadd [#allocation5], %s46
      %s48 = sshll.u32 [#allocation4], 4
      %s49 = int_to_ptr.vmem [resolvable:$true] %s48
      %54 = dma.hbm_to_vmem [thread:$0]  %s3, 4096, %s49, [#allocation5], 128, 128, 8
    $region17: #{tpu_custom_call.1} parent=1 // pred_fallthru
      _
    // Predicated region
    $region18: #{tpu_custom_call.1} parent=1 // pred_check
      _
    $region19: #{tpu_custom_call.1} parent=1 // pred_check_branch
      %56 = sbr.rel (0) target = $region21
    $region20: #{tpu_custom_call.1} parent=1 // pred_region
      %s58 = ssub.s32 128, 128
      %59 = vsyncadd [#allocation5], %s58
      %s60 = sshll.u32 [#allocation6], 4
      %s61 = int_to_ptr.vmem [resolvable:$true] %s60
      %66 = dma.hbm_to_vmem [thread:$0]  %s4, 128, %s61, [#allocation5], 32, 32, 2
    $region21: #{tpu_custom_call.1} parent=1 // pred_fallthru
      _
    // Predicated region
    $region22: #{tpu_custom_call.1} parent=1 // pred_check
      _
    $region23: #{tpu_custom_call.1} parent=1 // pred_check_branch
      %68 = sbr.rel (0) target = $region25
    $region24: #{tpu_custom_call.1} parent=1 // pred_region
      %s70 = ssub.s32 2048, 2048
      %71 = vsyncadd [#allocation8], %s70
      %s72 = sshll.u32 [#allocation7], 4
      %s73 = int_to_ptr.vmem [resolvable:$true] %s72
      %78 = dma.hbm_to_vmem [thread:$0]  %s5, 2048, %s73, [#allocation8], 64, 64, 4
    $region25: #{tpu_custom_call.1} parent=1 // pred_fallthru
      _
    // Predicated region
    $region26: #{tpu_custom_call.1} parent=1 // pred_check
      _
    $region27: #{tpu_custom_call.1} parent=1 // pred_check_branch
      %80 = sbr.rel (0) target = $region29
    $region28: #{tpu_custom_call.1} parent=1 // pred_region
      %s82 = ssub.s32 64, 64
      %83 = vsyncadd [#allocation8], %s82
      %s84 = sshll.u32 [#allocation9], 4
      %s85 = int_to_ptr.vmem [resolvable:$true] %s84
      %90 = dma.hbm_to_vmem [thread:$0]  %s6, 64, %s85, [#allocation8], 16, 16, 1
    $region29: #{tpu_custom_call.1} parent=1 // pred_fallthru
      _
    // Predicated region
    $region30: #{tpu_custom_call.1} parent=1 // pred_check
      _
    $region31: #{tpu_custom_call.1} parent=1 // pred_check_branch
      %92 = sbr.rel (0) target = $region33
    $region32: #{tpu_custom_call.1} parent=1 // pred_region
      %s94 = ssub.s32 64, 64
      %95 = vsyncadd [#allocation11], %s94
      %s96 = sshll.u32 [#allocation10], 4
      %s97 = int_to_ptr.vmem [resolvable:$true] %s96
      %102 = dma.hbm_to_vmem [thread:$0]  %s7, 64, %s97, [#allocation11], 16, 16, 1
    $region33: #{tpu_custom_call.1} parent=1 // pred_fallthru
      _
    // Predicated region
    $region34: #{tpu_custom_call.1} parent=1 // pred_check
      _
    $region35: #{tpu_custom_call.1} parent=1 // pred_check_branch
      %104 = sbr.rel (0) target = $region37
    $region36: #{tpu_custom_call.1} parent=1 // pred_region
      %s106 = ssub.s32 64, 64
      %107 = vsyncadd [#allocation11], %s106
      %s108 = sshll.u32 [#allocation12], 4
      %s109 = int_to_ptr.vmem [resolvable:$true] %s108
      %114 = dma.hbm_to_vmem [thread:$0]  %s8, 64, %s109, [#allocation11], 16, 16, 1
    $region37: #{tpu_custom_call.1} parent=1 // pred_fallthru
      _
    // Predicated region
    $region38: #{tpu_custom_call.1} parent=1 // pred_check
      _
    $region39: #{tpu_custom_call.1} parent=1 // pred_check_branch
      %116 = sbr.rel (0) target = $region41
    $region40: #{tpu_custom_call.1} parent=1 // pred_region
      _
    $region41: #{tpu_custom_call.1} parent=1 // pred_fallthru
      _
    // Predicated region
    $region42: #{tpu_custom_call.1} parent=1 // pred_check
      _
    $region43: #{tpu_custom_call.1} parent=1 // pred_check_branch
      %118 = sbr.rel (0) target = $region45
    $region44: #{tpu_custom_call.1} parent=1 // pred_region
      _
    $region45: #{tpu_custom_call.1} parent=1 // pred_fallthru
      _
    // Predicated region
    $region46: #{tpu_custom_call.1} parent=1 // pred_check
      _
    $region47: #{tpu_custom_call.1} parent=1 // pred_check_branch
      %120 = sbr.rel (0) target = $region49
    $region48: #{tpu_custom_call.1} parent=1 // pred_region
      %s122 = ssub.s32 2048, 2048
      %123 = vsyncadd [#allocation14], %s122
      %s124 = sshll.u32 [#allocation13], 4
      %s125 = int_to_ptr.vmem [resolvable:$true] %s124
      %130 = dma.hbm_to_vmem [thread:$0]  %s11, 2048, %s125, [#allocation14], 64, 64, 4
    $region49: #{tpu_custom_call.1} parent=1 // pred_fallthru
      _
    // Predicated region
    $region50: #{tpu_custom_call.1} parent=1 // pred_check
      _
    $region51: #{tpu_custom_call.1} parent=1 // pred_check_branch
      %132 = sbr.rel (0) target = $region53
    $region52: #{tpu_custom_call.1} parent=1 // pred_region
      _
    $region53: #{tpu_custom_call.1} parent=1 // pred_fallthru
      _
    // Predicated region
    $region54: #{tpu_custom_call.1} parent=1 // pred_check
      _
    $region55: #{tpu_custom_call.1} parent=1 // pred_check_branch
      %134 = sbr.rel (0) target = $region57
    $region56: #{tpu_custom_call.1} parent=1 // pred_region
      _
    $region57: #{tpu_custom_call.1} parent=1 // pred_fallthru
      _
    // Predicated region
    $region58: #{tpu_custom_call.1} parent=1 // pred_check
      _
    $region59: #{tpu_custom_call.1} parent=1 // pred_check_branch
      %136 = sbr.rel (0) target = $region61
    $region60: #{tpu_custom_call.1} parent=1 // pred_region
      _
    $region61: #{tpu_custom_call.1} parent=1 // pred_fallthru
      _
    // Predicated region
    $region62: #{tpu_custom_call.1} parent=1 // pred_check
      _
    $region63: #{tpu_custom_call.1} parent=1 // pred_check_branch
      %138 = sbr.rel (0) target = $region65
    $region64: #{tpu_custom_call.1} parent=1 // pred_region
      _
    $region65: #{tpu_custom_call.1} parent=1 // pred_fallthru
      _
    // Predicated region
    $region66: #{tpu_custom_call.1} parent=1 // pred_check
      _
    $region67: #{tpu_custom_call.1} parent=1 // pred_check_branch
      %140 = sbr.rel (0) target = $region69
    $region68: #{tpu_custom_call.1} parent=1 // pred_region
      _
    $region69: #{tpu_custom_call.1} parent=1 // pred_fallthru
      _
    // Predicated region
    $region70: #{tpu_custom_call.1} parent=1 // pred_check
      _
    $region71: #{tpu_custom_call.1} parent=1 // pred_check_branch
      %142 = sbr.rel (0) target = $region73
    $region72: #{tpu_custom_call.1} parent=1 // pred_region
      %143 = dma.done [#allocation3], 256
    $region73: #{tpu_custom_call.1} parent=1 // pred_fallthru
      _
    // Predicated region
    $region74: #{tpu_custom_call.1} parent=1 // pred_check
      _
    $region75: #{tpu_custom_call.1} parent=1 // pred_check_branch
      %145 = sbr.rel (0) target = $region77
    $region76: #{tpu_custom_call.1} parent=1 // pred_region
      %146 = dma.done [#allocation5], 4096
    $region77: #{tpu_custom_call.1} parent=1 // pred_fallthru
      _
    // Predicated region
    $region78: #{tpu_custom_call.1} parent=1 // pred_check
      _
    $region79: #{tpu_custom_call.1} parent=1 // pred_check_branch
      %148 = sbr.rel (0) target = $region81
    $region80: #{tpu_custom_call.1} parent=1 // pred_region
      %149 = dma.done [#allocation5], 128
    $region81: #{tpu_custom_call.1} parent=1 // pred_fallthru
      _
    // Predicated region
    $region82: #{tpu_custom_call.1} parent=1 // pred_check
      _
    $region83: #{tpu_custom_call.1} parent=1 // pred_check_branch
      %151 = sbr.rel (0) target = $region85
    $region84: #{tpu_custom_call.1} parent=1 // pred_region
      %152 = dma.done [#allocation8], 2048
    $region85: #{tpu_custom_call.1} parent=1 // pred_fallthru
      _
    // Predicated region
    $region86: #{tpu_custom_call.1} parent=1 // pred_check
      _
    $region87: #{tpu_custom_call.1} parent=1 // pred_check_branch
      %154 = sbr.rel (0) target = $region89
    $region88: #{tpu_custom_call.1} parent=1 // pred_region
      %155 = dma.done [#allocation8], 64
    $region89: #{tpu_custom_call.1} parent=1 // pred_fallthru
      _
    // Predicated region
    $region90: #{tpu_custom_call.1} parent=1 // pred_check
      _
    $region91: #{tpu_custom_call.1} parent=1 // pred_check_branch
      %157 = sbr.rel (0) target = $region93
    $region92: #{tpu_custom_call.1} parent=1 // pred_region
      %158 = dma.done [#allocation11], 64
    $region93: #{tpu_custom_call.1} parent=1 // pred_fallthru
      _
    // Predicated region
    $region94: #{tpu_custom_call.1} parent=1 // pred_check
      _
    $region95: #{tpu_custom_call.1} parent=1 // pred_check_branch
      %160 = sbr.rel (0) target = $region97
    $region96: #{tpu_custom_call.1} parent=1 // pred_region
      %161 = dma.done [#allocation11], 64
    $region97: #{tpu_custom_call.1} parent=1 // pred_fallthru
      _
    // Predicated region
    $region98: #{tpu_custom_call.1} parent=1 // pred_check
      _
    $region99: #{tpu_custom_call.1} parent=1 // pred_check_branch
      %163 = sbr.rel (0) target = $region101
    $region100: #{tpu_custom_call.1} parent=1 // pred_region
      %164 = dma.done [#allocation14], 2048
    $region101: #{tpu_custom_call.1} parent=1 // pred_fallthru
      _
    %v166 = vld [vmem:[#allocation2] sm:$0xff]
    %v167 = vld [vmem:[#allocation2 + $0x8] sm:$0xff]
    %v168 = vld [vmem:[%s1] sm:$0xff]
    %v169 = vld [vmem:[%s1 + $0x8] sm:$0xff]
    %v170 = vld [vmem:[%s1 + $0x10] sm:$0xff]
    %v171 = vld [vmem:[%s1 + $0x18] sm:$0xff]
    %v172 = vld [vmem:[%s1 + $0x20] sm:$0xff]
    %v173 = vld [vmem:[%s1 + $0x28] sm:$0xff]
    %v174 = vld [vmem:[%s1 + $0x30] sm:$0xff]
    %v175 = vld [vmem:[%s1 + $0x38] sm:$0xff]
    %v176 = vld [vmem:[%s1 + $0x40] sm:$0xff]
    %v177 = vld [vmem:[%s1 + $0x48] sm:$0xff]
    %v178 = vld [vmem:[%s1 + $0x50] sm:$0xff]
    %v179 = vld [vmem:[%s1 + $0x58] sm:$0xff]
    %v180 = vld [vmem:[%s1 + $0x60] sm:$0xff]
    %v181 = vld [vmem:[%s1 + $0x68] sm:$0xff]
    %v182 = vld [vmem:[%s1 + $0x70] sm:$0xff]
    %v183 = vld [vmem:[%s1 + $0x78] sm:$0xff]
    %v184 = vld [vmem:[%s2] sm:$0xff]
    %v185 = vld [vmem:[%s2 + $0x8] sm:$0xff]
    %v186 = vld [vmem:[%s2 + $0x10] sm:$0xff]
    %v187 = vld [vmem:[%s2 + $0x18] sm:$0xff]
    %v188 = vld [vmem:[%s2 + $0x20] sm:$0xff]
    %v189 = vld [vmem:[%s2 + $0x28] sm:$0xff]
    %v190 = vld [vmem:[%s2 + $0x30] sm:$0xff]
    %v191 = vld [vmem:[%s2 + $0x38] sm:$0xff]
    %v192 = vld [vmem:[%s2 + $0x40] sm:$0xff]
    %v193 = vld [vmem:[%s2 + $0x48] sm:$0xff]
    %v194 = vld [vmem:[%s2 + $0x50] sm:$0xff]
    %v195 = vld [vmem:[%s2 + $0x58] sm:$0xff]
    %v196 = vld [vmem:[%s2 + $0x60] sm:$0xff]
    %v197 = vld [vmem:[%s2 + $0x68] sm:$0xff]
    %v198 = vld [vmem:[%s2 + $0x70] sm:$0xff]
    %v199 = vld [vmem:[%s2 + $0x78] sm:$0xff]
    %v200 = vpack.c.bf16 %v167, %v166
    %v201 = vld [vmem:[#allocation4] sm:$0xff]
    %v202 = vld [vmem:[#allocation4 + $0x8] sm:$0xff]
    %v203 = vld [vmem:[#allocation4 + $0x10] sm:$0xff]
    %v204 = vld [vmem:[#allocation4 + $0x18] sm:$0xff]
    %v205 = vld [vmem:[#allocation4 + $0x20] sm:$0xff]
    %v206 = vld [vmem:[#allocation4 + $0x28] sm:$0xff]
    %v207 = vld [vmem:[#allocation4 + $0x30] sm:$0xff]
    %v208 = vld [vmem:[#allocation4 + $0x38] sm:$0xff]
    %v209 = vld [vmem:[#allocation6] sm:$0x3]
    %v211 = vlaneseq
    %v212 = vshrl.u32 %v211, 7
    %v213 = vsub.s32 0, %v212
    %v214 = vrot.slane %v209, %v213
    %v215 = vlaneseq
    %v216 = vshrl.u32 %v215, 7
    %v217 = vsub.s32 1, %v216
    %v218 = vrot.slane %v209, %v217
    %v229 = vunpack.c.l.b16 %v201
    %v230 = vunpack.c.h.b16 %v201
    %v231 = vunpack.c.l.b16 %v202
    %v232 = vunpack.c.h.b16 %v202
    %v233 = vunpack.c.l.b16 %v203
    %v234 = vunpack.c.h.b16 %v203
    %v235 = vunpack.c.l.b16 %v204
    %v236 = vunpack.c.h.b16 %v204
    %v237 = vunpack.c.l.b16 %v205
    %v238 = vunpack.c.h.b16 %v205
    %v239 = vunpack.c.l.b16 %v206
    %v240 = vunpack.c.h.b16 %v206
    %v241 = vunpack.c.l.b16 %v207
    %v242 = vunpack.c.h.b16 %v207
    %v243 = vunpack.c.l.b16 %v208
    %v244 = vunpack.c.h.b16 %v208
    %v245 = vpack.c.b16 %v231, %v229
    %v246 = vpack.c.b16 %v232, %v230
    %v247 = vpack.c.b16 %v235, %v233
    %v248 = vpack.c.b16 %v236, %v234
    %v249 = vpack.c.b16 %v239, %v237
    %v250 = vpack.c.b16 %v240, %v238
    %v251 = vpack.c.b16 %v243, %v241
    %v252 = vpack.c.b16 %v244, %v242
    %vm261 = vcmask 523264
    %v263 = vsel %vm261, %v200, 0
    %265 = vmatprep.subr.bf16.mxu0 %v246
    %266 = vmatpush1.bf16.msra.mxu0 %v245
    %267 = vmatprep.subr.bf16.mxu0 %v248
    %268 = vmatpush1.bf16.msra.mxu0 %v247
    %269 = vmatprep.subr.bf16.mxu0 %v250
    %270 = vmatpush1.bf16.msra.mxu0 %v249
    %271 = vmatprep.subr.bf16.mxu0 %v252
    %272 = vmatpush1.bf16.msra.mxu0 %v251
    %273 = vmatprep.subr.bf16.mxu0 0
    %274 = vmatpush1.bf16.msra.mxu0 0
    %275 = vmatprep.subr.bf16.mxu0 0
    %276 = vmatpush1.bf16.msra.mxu0 0
    %277 = vmatprep.subr.bf16.mxu0 0
    %278 = vmatpush1.bf16.msra.mxu0 0
    %279 = vmatprep.subr.bf16.mxu0 0
    %280 = vmatpush1.bf16.msra.mxu0 0
    %281 = vmatprep.subr.bf16.mxu0 0
    %282 = vmatpush1.bf16.msra.mxu0 0
    %283 = vmatprep.subr.bf16.mxu0 0
    %284 = vmatpush1.bf16.msra.mxu0 0
    %285 = vmatprep.subr.bf16.mxu0 0
    %286 = vmatpush1.bf16.msra.mxu0 0
    %287 = vmatprep.subr.bf16.mxu0 0
    %288 = vmatpush1.bf16.msra.mxu0 0
    %289 = vmatprep.subr.bf16.mxu0 0
    %290 = vmatpush1.bf16.msra.mxu0 0
    %291 = vmatprep.subr.bf16.mxu0 0
    %292 = vmatpush1.bf16.msra.mxu0 0
    %293 = vmatprep.subr.bf16.mxu0 0
    %294 = vmatpush1.bf16.msra.mxu0 0
    %295 = vmatprep.subr.bf16.mxu0 0
    %296 = vmatpush1.bf16.msra.mxu0 0
    %297 = vmatprep.mubr.bf16.mxu0 0
    %298 = vmatmul.mubr.bf16.gmra.mrb[0].mxu0 %v263
    %v299 = vpop.f32.mrb[0].mxu0
    %v300 = vadd.f32 %v214, %v299
    %v301 = vpop.f32.mrb[0].mxu0
    %v302 = vadd.f32 %v218, %v301
    %v303 = vpop.f32.mrb[0].mxu0
    %v304 = vadd.f32 %v214, %v303
    %v305 = vpop.f32.mrb[0].mxu0
    %v306 = vadd.f32 %v218, %v305
    %307 = vdwg.mxu0
    %v308 = vmul.f32 %v300, %v184
    %v309 = vmul.f32 %v304, %v185
    %v310 = vmul.f32 %v300, %v186
    %v311 = vmul.f32 %v304, %v187
    %v312 = vmul.f32 %v300, %v188
    %v313 = vmul.f32 %v304, %v189
    %v314 = vmul.f32 %v300, %v190
    %v315 = vmul.f32 %v304, %v191
    %v316 = vmul.f32 %v300, %v192
    %v317 = vmul.f32 %v304, %v193
    %v318 = vmul.f32 %v300, %v194
    %v319 = vmul.f32 %v304, %v195
    %v320 = vmul.f32 %v300, %v196
    %v321 = vmul.f32 %v304, %v197
    %v322 = vmul.f32 %v300, %v198
    %v323 = vmul.f32 %v304, %v199
    %v324 = vpack.c.bf16 %v309, %v308
    %v325 = vpack.c.bf16 %v311, %v310
    %v326 = vpack.c.bf16 %v313, %v312
    %v327 = vpack.c.bf16 %v315, %v314
    %v328 = vpack.c.bf16 %v317, %v316
    %v329 = vpack.c.bf16 %v319, %v318
    %v330 = vpack.c.bf16 %v321, %v320
    %v331 = vpack.c.bf16 %v323, %v322
    %v332 = vpack.c.bf16 %v304, %v300
    %334 = vrot.lane.b32.xlu0 %v332, 64
    %v335 = vpop.permute.xlu0 %334
    %v337 = vsel %vm261, %v324, 0
    %v340 = vsel %vm261, %v325, 0
    %v343 = vsel %vm261, %v326, 0
    %v346 = vsel %vm261, %v327, 0
    %v349 = vsel %vm261, %v328, 0
    %v352 = vsel %vm261, %v329, 0
    %v355 = vsel %vm261, %v330, 0
    %v358 = vsel %vm261, %v331, 0
    %v361 = vsel %vm261, %v335, 0
    %363 = vmatprep.subr.bf16.mxu0 0
    %364 = vmatpush1.bf16.xpose.msra.mxu0 %v361
    %365 = vmatprep.subr.bf16.mxu0 0
    %366 = vmatpush1.bf16.xpose.msra.mxu0 %v361
    %367 = vmatprep.subr.bf16.mxu0 0
    %368 = vmatpush1.bf16.xpose.msra.mxu0 %v361
    %369 = vmatprep.subr.bf16.mxu0 0
    %370 = vmatpush1.bf16.xpose.msra.mxu0 %v361
    %371 = vmatprep.subr.bf16.mxu0 0
    %372 = vmatpush1.bf16.xpose.msra.mxu0 %v361
    %373 = vmatprep.subr.bf16.mxu0 0
    %374 = vmatpush1.bf16.xpose.msra.mxu0 %v361
    %375 = vmatprep.subr.bf16.mxu0 0
    %376 = vmatpush1.bf16.xpose.msra.mxu0 %v361
    %377 = vmatprep.subr.bf16.mxu0 0
    %378 = vmatpush1.bf16.xpose.msra.mxu0 %v361
    %379 = vmatprep.subr.bf16.mxu0 0
    %380 = vmatpush1.bf16.xpose.msra.mxu0 0
    %381 = vmatprep.subr.bf16.mxu0 0
    %382 = vmatpush1.bf16.xpose.msra.mxu0 0
    %383 = vmatprep.subr.bf16.mxu0 0
    %384 = vmatpush1.bf16.xpose.msra.mxu0 0
    %385 = vmatprep.subr.bf16.mxu0 0
    %386 = vmatpush1.bf16.xpose.msra.mxu0 0
    %387 = vmatprep.subr.bf16.mxu0 0
    %388 = vmatpush1.bf16.xpose.msra.mxu0 0
    %389 = vmatprep.subr.bf16.mxu0 0
    %390 = vmatpush1.bf16.xpose.msra.mxu0 0
    %391 = vmatprep.subr.bf16.mxu0 0
    %392 = vmatpush1.bf16.xpose.msra.mxu0 0
    %393 = vmatprep.subr.bf16.mxu0 0
    %394 = vmatpush1.bf16.xpose.msra.mxu0 0
    %395 = vmatprep.mubr.bf16.mxu0 0
    %396 = vmatmul.mubr.bf16.gmra.mrb[0].mxu0 %v337
    %v397 = vpop.f32.mrb[0].mxu0
    %v398 = vadd.f32 %v168, %v397
    %v399 = vpop.f32.mrb[0].mxu0
    %v400 = vpop.f32.mrb[0].mxu0
    %v401 = vadd.f32 %v169, %v400
    %v402 = vpop.f32.mrb[0].mxu0
    %403 = vmatprep.mubr.bf16.mxu0 0
    %404 = vmatmul.mubr.bf16.gmra.mrb[0].mxu0 %v340
    %v405 = vpop.f32.mrb[0].mxu0
    %v406 = vadd.f32 %v170, %v405
    %v407 = vpop.f32.mrb[0].mxu0
    %v408 = vpop.f32.mrb[0].mxu0
    %v409 = vadd.f32 %v171, %v408
    %v410 = vpop.f32.mrb[0].mxu0
    %411 = vmatprep.mubr.bf16.mxu0 0
    %412 = vmatmul.mubr.bf16.gmra.mrb[0].mxu0 %v343
    %v413 = vpop.f32.mrb[0].mxu0
    %v414 = vadd.f32 %v172, %v413
    %v415 = vpop.f32.mrb[0].mxu0
    %v416 = vpop.f32.mrb[0].mxu0
    %v417 = vadd.f32 %v173, %v416
    %v418 = vpop.f32.mrb[0].mxu0
    %419 = vmatprep.mubr.bf16.mxu0 0
    %420 = vmatmul.mubr.bf16.gmra.mrb[0].mxu0 %v346
    %v421 = vpop.f32.mrb[0].mxu0
    %v422 = vadd.f32 %v174, %v421
    %v423 = vpop.f32.mrb[0].mxu0
    %v424 = vpop.f32.mrb[0].mxu0
    %v425 = vadd.f32 %v175, %v424
    %v426 = vpop.f32.mrb[0].mxu0
    %427 = vmatprep.mubr.bf16.mxu0 0
    %428 = vmatmul.mubr.bf16.gmra.mrb[0].mxu0 %v349
    %v429 = vpop.f32.mrb[0].mxu0
    %v430 = vadd.f32 %v176, %v429
    %v431 = vpop.f32.mrb[0].mxu0
    %v432 = vpop.f32.mrb[0].mxu0
    %v433 = vadd.f32 %v177, %v432
    %v434 = vpop.f32.mrb[0].mxu0
    %435 = vmatprep.mubr.bf16.mxu0 0
    %436 = vmatmul.mubr.bf16.gmra.mrb[0].mxu0 %v352
    %v437 = vpop.f32.mrb[0].mxu0
    %v438 = vadd.f32 %v178, %v437
    %v439 = vpop.f32.mrb[0].mxu0
    %v440 = vpop.f32.mrb[0].mxu0
    %v441 = vadd.f32 %v179, %v440
    %v442 = vpop.f32.mrb[0].mxu0
    %443 = vmatprep.mubr.bf16.mxu0 0
    %444 = vmatmul.mubr.bf16.gmra.mrb[0].mxu0 %v355
    %v445 = vpop.f32.mrb[0].mxu0
    %v446 = vadd.f32 %v180, %v445
    %v447 = vpop.f32.mrb[0].mxu0
    %v448 = vpop.f32.mrb[0].mxu0
    %v449 = vadd.f32 %v181, %v448
    %v450 = vpop.f32.mrb[0].mxu0
    %451 = vmatprep.mubr.bf16.mxu0 0
    %452 = vmatmul.mubr.bf16.gmra.mrb[0].mxu0 %v358
    %v453 = vpop.f32.mrb[0].mxu0
    %v454 = vadd.f32 %v182, %v453
    %v455 = vpop.f32.mrb[0].mxu0
    %v456 = vpop.f32.mrb[0].mxu0
    %v457 = vadd.f32 %v183, %v456
    %v458 = vpop.f32.mrb[0].mxu0
    %459 = vdwg.mxu0
    %460 = vmax.xlane.f32.xlu0 %v398
    %v461 = vpop.xlane.xlu0 %460
    %462 = vmax.xlane.f32.xlu0 %v401
    %v463 = vpop.xlane.xlu0 %462
    %464 = vmax.xlane.f32.xlu0 %v406
    %v465 = vpop.xlane.xlu0 %464
    %466 = vmax.xlane.f32.xlu0 %v409
    %v467 = vpop.xlane.xlu0 %466
    %468 = vmax.xlane.f32.xlu0 %v414
    %v469 = vpop.xlane.xlu0 %468
    %470 = vmax.xlane.f32.xlu0 %v417
    %v471 = vpop.xlane.xlu0 %470
    %472 = vmax.xlane.f32.xlu0 %v422
    %v473 = vpop.xlane.xlu0 %472
    %474 = vmax.xlane.f32.xlu0 %v425
    %v475 = vpop.xlane.xlu0 %474
    %476 = vmax.xlane.f32.xlu0 %v430
    %v477 = vpop.xlane.xlu0 %476
    %478 = vmax.xlane.f32.xlu0 %v433
    %v479 = vpop.xlane.xlu0 %478
    %480 = vmax.xlane.f32.xlu0 %v438
    %v481 = vpop.xlane.xlu0 %480
    %482 = vmax.xlane.f32.xlu0 %v441
    %v483 = vpop.xlane.xlu0 %482
    %484 = vmax.xlane.f32.xlu0 %v446
    %v485 = vpop.xlane.xlu0 %484
    %486 = vmax.xlane.f32.xlu0 %v449
    %v487 = vpop.xlane.xlu0 %486
    %488 = vmax.xlane.f32.xlu0 %v454
    %v489 = vpop.xlane.xlu0 %488
    %490 = vmax.xlane.f32.xlu0 %v457
    %v491 = vpop.xlane.xlu0 %490
    %v492 = vsub.f32 %v398, %v461
    %v493 = vsub.f32 %v401, %v463
    %v494 = vsub.f32 %v406, %v465
    %v495 = vsub.f32 %v409, %v467
    %v496 = vsub.f32 %v414, %v469
    %v497 = vsub.f32 %v417, %v471
    %v498 = vsub.f32 %v422, %v473
    %v499 = vsub.f32 %v425, %v475
    %v500 = vsub.f32 %v430, %v477
    %v501 = vsub.f32 %v433, %v479
    %v502 = vsub.f32 %v438, %v481
    %v503 = vsub.f32 %v441, %v483
    %v504 = vsub.f32 %v446, %v485
    %v505 = vsub.f32 %v449, %v487
    %v506 = vsub.f32 %v454, %v489
    %v507 = vsub.f32 %v457, %v491
    %v508 = vmul.f32 %v492, 1.442695
    %v509 = vpow.pop %v508
    %v510 = vmul.f32 %v493, 1.442695
    %v511 = vpow.pop %v510
    %v512 = vmul.f32 %v494, 1.442695
    %v513 = vpow.pop %v512
    %v514 = vmul.f32 %v495, 1.442695
    %v515 = vpow.pop %v514
    %v516 = vmul.f32 %v496, 1.442695
    %v517 = vpow.pop %v516
    %v518 = vmul.f32 %v497, 1.442695
    %v519 = vpow.pop %v518
    %v520 = vmul.f32 %v498, 1.442695
    %v521 = vpow.pop %v520
    %v522 = vmul.f32 %v499, 1.442695
    %v523 = vpow.pop %v522
    %v524 = vmul.f32 %v500, 1.442695
    %v525 = vpow.pop %v524
    %v526 = vmul.f32 %v501, 1.442695
    %v527 = vpow.pop %v526
    %v528 = vmul.f32 %v502, 1.442695
    %v529 = vpow.pop %v528
    %v530 = vmul.f32 %v503, 1.442695
    %v531 = vpow.pop %v530
    %v532 = vmul.f32 %v504, 1.442695
    %v533 = vpow.pop %v532
    %v534 = vmul.f32 %v505, 1.442695
    %v535 = vpow.pop %v534
    %v536 = vmul.f32 %v506, 1.442695
    %v537 = vpow.pop %v536
    %v538 = vmul.f32 %v507, 1.442695
    %v539 = vpow.pop %v538
    %540 = vadd.xlane.f32.xlu0 %v509
    %v541 = vpop.xlane.xlu0 %540
    %542 = vadd.xlane.f32.xlu0 %v511
    %v543 = vpop.xlane.xlu0 %542
    %544 = vadd.xlane.f32.xlu0 %v513
    %v545 = vpop.xlane.xlu0 %544
    %546 = vadd.xlane.f32.xlu0 %v515
    %v547 = vpop.xlane.xlu0 %546
    %548 = vadd.xlane.f32.xlu0 %v517
    %v549 = vpop.xlane.xlu0 %548
    %550 = vadd.xlane.f32.xlu0 %v519
    %v551 = vpop.xlane.xlu0 %550
    %552 = vadd.xlane.f32.xlu0 %v521
    %v553 = vpop.xlane.xlu0 %552
    %554 = vadd.xlane.f32.xlu0 %v523
    %v555 = vpop.xlane.xlu0 %554
    %556 = vadd.xlane.f32.xlu0 %v525
    %v557 = vpop.xlane.xlu0 %556
    %558 = vadd.xlane.f32.xlu0 %v527
    %v559 = vpop.xlane.xlu0 %558
    %560 = vadd.xlane.f32.xlu0 %v529
    %v561 = vpop.xlane.xlu0 %560
    %562 = vadd.xlane.f32.xlu0 %v531
    %v563 = vpop.xlane.xlu0 %562
    %564 = vadd.xlane.f32.xlu0 %v533
    %v565 = vpop.xlane.xlu0 %564
    %566 = vadd.xlane.f32.xlu0 %v535
    %v567 = vpop.xlane.xlu0 %566
    %568 = vadd.xlane.f32.xlu0 %v537
    %v569 = vpop.xlane.xlu0 %568
    %570 = vadd.xlane.f32.xlu0 %v539
    %v571 = vpop.xlane.xlu0 %570
    %v572 = vrcp.pop %v541
    %v573 = vrcp.pop %v543
    %v574 = vrcp.pop %v545
    %v575 = vrcp.pop %v547
    %v576 = vrcp.pop %v549
    %v577 = vrcp.pop %v551
    %v578 = vrcp.pop %v553
    %v579 = vrcp.pop %v555
    %v580 = vrcp.pop %v557
    %v581 = vrcp.pop %v559
    %v582 = vrcp.pop %v561
    %v583 = vrcp.pop %v563
    %v584 = vrcp.pop %v565
    %v585 = vrcp.pop %v567
    %v586 = vrcp.pop %v569
    %v587 = vrcp.pop %v571
    %v588 = vmul.f32 %v509, %v572
    %v589 = vmul.f32 %v511, %v573
    %v590 = vmul.f32 %v513, %v574
    %v591 = vmul.f32 %v515, %v575
    %v592 = vmul.f32 %v517, %v576
    %v593 = vmul.f32 %v519, %v577
    %v594 = vmul.f32 %v521, %v578
    %v595 = vmul.f32 %v523, %v579
    %v596 = vmul.f32 %v525, %v580
    %v597 = vmul.f32 %v527, %v581
    %v598 = vmul.f32 %v529, %v582
    %v599 = vmul.f32 %v531, %v583
    %v600 = vmul.f32 %v533, %v584
    %v601 = vmul.f32 %v535, %v585
    %v602 = vmul.f32 %v537, %v586
    %v603 = vmul.f32 %v539, %v587
    %v604 = vpack.c.bf16 %v589, %v588
    %v605 = vpack.c.bf16 %v591, %v590
    %v606 = vpack.c.bf16 %v593, %v592
    %v607 = vpack.c.bf16 %v595, %v594
    %v608 = vpack.c.bf16 %v597, %v596
    %v609 = vpack.c.bf16 %v599, %v598
    %v610 = vpack.c.bf16 %v601, %v600
    %v611 = vpack.c.bf16 %v603, %v602
    %v612 = vpack.c.bf16 %v306, %v302
    %613 = vmatprep.subr.bf16.mxu0 0
    %614 = vmatpush1.bf16.msra.mxu0 %v612
    %615 = vmatprep.subr.bf16.mxu0 0
    %616 = vmatpush1.bf16.msra.mxu0 %v612
    %617 = vmatprep.subr.bf16.mxu0 0
    %618 = vmatpush1.bf16.msra.mxu0 %v612
    %619 = vmatprep.subr.bf16.mxu0 0
    %620 = vmatpush1.bf16.msra.mxu0 %v612
    %621 = vmatprep.subr.bf16.mxu0 0
    %622 = vmatpush1.bf16.msra.mxu0 %v612
    %623 = vmatprep.subr.bf16.mxu0 0
    %624 = vmatpush1.bf16.msra.mxu0 %v612
    %625 = vmatprep.subr.bf16.mxu0 0
    %626 = vmatpush1.bf16.msra.mxu0 %v612
    %627 = vmatprep.subr.bf16.mxu0 0
    %628 = vmatpush1.bf16.msra.mxu0 %v612
    %629 = vmatprep.subr.bf16.mxu0 0
    %630 = vmatpush1.bf16.msra.mxu0 0
    %631 = vmatprep.subr.bf16.mxu0 0
    %632 = vmatpush1.bf16.msra.mxu0 0
    %633 = vmatprep.subr.bf16.mxu0 0
    %634 = vmatpush1.bf16.msra.mxu0 0
    %635 = vmatprep.subr.bf16.mxu0 0
    %636 = vmatpush1.bf16.msra.mxu0 0
    %637 = vmatprep.subr.bf16.mxu0 0
    %638 = vmatpush1.bf16.msra.mxu0 0
    %639 = vmatprep.subr.bf16.mxu0 0
    %640 = vmatpush1.bf16.msra.mxu0 0
    %641 = vmatprep.subr.bf16.mxu0 0
    %642 = vmatpush1.bf16.msra.mxu0 0
    %643 = vmatprep.subr.bf16.mxu0 0
    %644 = vmatpush1.bf16.msra.mxu0 0
    %645 = vmatprep.mubr.bf16.mxu0 0
    %646 = vmatmul.mubr.bf16.gmra.mrb[0].mxu0 %v604
    %v647 = vpop.f32.mrb[0].mxu0
    %v648 = vadd.f32 0.0, %v647
    %v649 = vpop.f32.mrb[0].mxu0
    %v650 = vpop.f32.mrb[0].mxu0
    %v651 = vadd.f32 0.0, %v650
    %v652 = vpop.f32.mrb[0].mxu0
    %653 = vmatprep.mubr.bf16.mxu0 0
    %654 = vmatmul.mubr.bf16.gmra.mrb[0].mxu0 %v605
    %v655 = vpop.f32.mrb[0].mxu0
    %v656 = vadd.f32 0.0, %v655
    %v657 = vpop.f32.mrb[0].mxu0
    %v658 = vpop.f32.mrb[0].mxu0
    %v659 = vadd.f32 0.0, %v658
    %v660 = vpop.f32.mrb[0].mxu0
    %661 = vmatprep.mubr.bf16.mxu0 0
    %662 = vmatmul.mubr.bf16.gmra.mrb[0].mxu0 %v606
    %v663 = vpop.f32.mrb[0].mxu0
    %v664 = vadd.f32 0.0, %v663
    %v665 = vpop.f32.mrb[0].mxu0
    %v666 = vpop.f32.mrb[0].mxu0
    %v667 = vadd.f32 0.0, %v666
    %v668 = vpop.f32.mrb[0].mxu0
    %669 = vmatprep.mubr.bf16.mxu0 0
    %670 = vmatmul.mubr.bf16.gmra.mrb[0].mxu0 %v607
    %v671 = vpop.f32.mrb[0].mxu0
    %v672 = vadd.f32 0.0, %v671
    %v673 = vpop.f32.mrb[0].mxu0
    %v674 = vpop.f32.mrb[0].mxu0
    %v675 = vadd.f32 0.0, %v674
    %v676 = vpop.f32.mrb[0].mxu0
    %677 = vmatprep.mubr.bf16.mxu0 0
    %678 = vmatmul.mubr.bf16.gmra.mrb[0].mxu0 %v608
    %v679 = vpop.f32.mrb[0].mxu0
    %v680 = vadd.f32 0.0, %v679
    %v681 = vpop.f32.mrb[0].mxu0
    %v682 = vpop.f32.mrb[0].mxu0
    %v683 = vadd.f32 0.0, %v682
    %v684 = vpop.f32.mrb[0].mxu0
    %685 = vmatprep.mubr.bf16.mxu0 0
    %686 = vmatmul.mubr.bf16.gmra.mrb[0].mxu0 %v609
    %v687 = vpop.f32.mrb[0].mxu0
    %v688 = vadd.f32 0.0, %v687
    %v689 = vpop.f32.mrb[0].mxu0
    %v690 = vpop.f32.mrb[0].mxu0
    %v691 = vadd.f32 0.0, %v690
    %v692 = vpop.f32.mrb[0].mxu0
    %693 = vmatprep.mubr.bf16.mxu0 0
    %694 = vmatmul.mubr.bf16.gmra.mrb[0].mxu0 %v610
    %v695 = vpop.f32.mrb[0].mxu0
    %v696 = vadd.f32 0.0, %v695
    %v697 = vpop.f32.mrb[0].mxu0
    %v698 = vpop.f32.mrb[0].mxu0
    %v699 = vadd.f32 0.0, %v698
    %v700 = vpop.f32.mrb[0].mxu0
    %701 = vmatprep.mubr.bf16.mxu0 0
    %702 = vmatmul.mubr.bf16.gmra.mrb[0].mxu0 %v611
    %v703 = vpop.f32.mrb[0].mxu0
    %v704 = vadd.f32 0.0, %v703
    %v705 = vpop.f32.mrb[0].mxu0
    %v706 = vpop.f32.mrb[0].mxu0
    %v707 = vadd.f32 0.0, %v706
    %v708 = vpop.f32.mrb[0].mxu0
    %709 = vdwg.mxu0
    %v710 = vmul.f32 %v648, %v184
    %v711 = vmul.f32 %v651, %v185
    %v712 = vmul.f32 %v656, %v186
    %v713 = vmul.f32 %v659, %v187
    %v714 = vmul.f32 %v664, %v188
    %v715 = vmul.f32 %v667, %v189
    %v716 = vmul.f32 %v672, %v190
    %v717 = vmul.f32 %v675, %v191
    %v718 = vmul.f32 %v680, %v192
    %v719 = vmul.f32 %v683, %v193
    %v720 = vmul.f32 %v688, %v194
    %v721 = vmul.f32 %v691, %v195
    %v722 = vmul.f32 %v696, %v196
    %v723 = vmul.f32 %v699, %v197
    %v724 = vmul.f32 %v704, %v198
    %v725 = vmul.f32 %v707, %v199
    %v726 = vpack.c.bf16 %v711, %v710
    %v727 = vpack.c.bf16 %v713, %v712
    %v728 = vpack.c.bf16 %v715, %v714
    %v729 = vpack.c.bf16 %v717, %v716
    %v730 = vpack.c.bf16 %v719, %v718
    %v731 = vpack.c.bf16 %v721, %v720
    %v732 = vpack.c.bf16 %v723, %v722
    %v733 = vpack.c.bf16 %v725, %v724
    %v734 = vld [vmem:[#allocation7] sm:$0xf]
    %v735 = vld [vmem:[#allocation7 + $0x4] sm:$0xf]
    %v736 = vld [vmem:[#allocation7 + $0x8] sm:$0xf]
    %v737 = vld [vmem:[#allocation7 + $0xc] sm:$0xf]
    %v738 = vld [vmem:[#allocation7 + $0x10] sm:$0xf]
    %v739 = vld [vmem:[#allocation7 + $0x14] sm:$0xf]
    %v740 = vld [vmem:[#allocation7 + $0x18] sm:$0xf]
    %v741 = vld [vmem:[#allocation7 + $0x1c] sm:$0xf]
    %v750 = vunpack.c.l.b16 %v734
    %v751 = vunpack.c.l.b16 %v735
    %v752 = vunpack.c.l.b16 %v736
    %v753 = vunpack.c.l.b16 %v737
    %v754 = vunpack.c.l.b16 %v738
    %v755 = vunpack.c.l.b16 %v739
    %v756 = vunpack.c.l.b16 %v740
    %v757 = vunpack.c.l.b16 %v741
    %v758 = vpack.c.b16 %v751, %v750
    %v759 = vpack.c.b16 %v753, %v752
    %v760 = vpack.c.b16 %v755, %v754
    %v761 = vpack.c.b16 %v757, %v756
    %v767 = vsel %vm261, %v726, 0
    %v770 = vsel %vm261, %v727, 0
    %v773 = vsel %vm261, %v728, 0
    %v776 = vsel %vm261, %v729, 0
    %v779 = vsel %vm261, %v730, 0
    %v782 = vsel %vm261, %v731, 0
    %v785 = vsel %vm261, %v732, 0
    %v788 = vsel %vm261, %v733, 0
    %790 = vmatprep.subr.bf16.mxu0 0
    %791 = vmatpush1.bf16.msra.mxu0 %v758
    %792 = vmatprep.subr.bf16.mxu0 0
    %793 = vmatpush1.bf16.msra.mxu0 %v759
    %794 = vmatprep.subr.bf16.mxu0 0
    %795 = vmatpush1.bf16.msra.mxu0 %v760
    %796 = vmatprep.subr.bf16.mxu0 0
    %797 = vmatpush1.bf16.msra.mxu0 %v761
    %798 = vmatprep.subr.bf16.mxu0 0
    %799 = vmatpush1.bf16.msra.mxu0 0
    %800 = vmatprep.subr.bf16.mxu0 0
    %801 = vmatpush1.bf16.msra.mxu0 0
    %802 = vmatprep.subr.bf16.mxu0 0
    %803 = vmatpush1.bf16.msra.mxu0 0
    %804 = vmatprep.subr.bf16.mxu0 0
    %805 = vmatpush1.bf16.msra.mxu0 0
    %806 = vmatprep.subr.bf16.mxu0 0
    %807 = vmatpush1.bf16.msra.mxu0 0
    %808 = vmatprep.subr.bf16.mxu0 0
    %809 = vmatpush1.bf16.msra.mxu0 0
    %810 = vmatprep.subr.bf16.mxu0 0
    %811 = vmatpush1.bf16.msra.mxu0 0
    %812 = vmatprep.subr.bf16.mxu0 0
    %813 = vmatpush1.bf16.msra.mxu0 0
    %814 = vmatprep.subr.bf16.mxu0 0
    %815 = vmatpush1.bf16.msra.mxu0 0
    %816 = vmatprep.subr.bf16.mxu0 0
    %817 = vmatpush1.bf16.msra.mxu0 0
    %818 = vmatprep.subr.bf16.mxu0 0
    %819 = vmatpush1.bf16.msra.mxu0 0
    %820 = vmatprep.subr.bf16.mxu0 0
    %821 = vmatpush1.bf16.msra.mxu0 0
    %822 = vmatprep.mubr.bf16.mxu0 0
    %823 = vmatmul.mubr.bf16.gmra.mrb[0].mxu0 %v767
    %v824 = vpop.f32.mrb[0].mxu0
    %v825 = vadd.f32 0.0, %v824
    %v826 = vpop.f32.mrb[0].mxu0
    %v827 = vpop.f32.mrb[0].mxu0
    %v828 = vadd.f32 0.0, %v827
    %v829 = vpop.f32.mrb[0].mxu0
    %830 = vmatprep.mubr.bf16.mxu0 0
    %831 = vmatmul.mubr.bf16.gmra.mrb[0].mxu0 %v770
    %v832 = vpop.f32.mrb[0].mxu0
    %v833 = vadd.f32 0.0, %v832
    %v834 = vpop.f32.mrb[0].mxu0
    %v835 = vpop.f32.mrb[0].mxu0
    %v836 = vadd.f32 0.0, %v835
    %v837 = vpop.f32.mrb[0].mxu0
    %838 = vmatprep.mubr.bf16.mxu0 0
    %839 = vmatmul.mubr.bf16.gmra.mrb[0].mxu0 %v773
    %v840 = vpop.f32.mrb[0].mxu0
    %v841 = vadd.f32 0.0, %v840
    %v842 = vpop.f32.mrb[0].mxu0
    %v843 = vpop.f32.mrb[0].mxu0
    %v844 = vadd.f32 0.0, %v843
    %v845 = vpop.f32.mrb[0].mxu0
    %846 = vmatprep.mubr.bf16.mxu0 0
    %847 = vmatmul.mubr.bf16.gmra.mrb[0].mxu0 %v776
    %v848 = vpop.f32.mrb[0].mxu0
    %v849 = vadd.f32 0.0, %v848
    %v850 = vpop.f32.mrb[0].mxu0
    %v851 = vpop.f32.mrb[0].mxu0
    %v852 = vadd.f32 0.0, %v851
    %v853 = vpop.f32.mrb[0].mxu0
    %854 = vmatprep.mubr.bf16.mxu0 0
    %855 = vmatmul.mubr.bf16.gmra.mrb[0].mxu0 %v779
    %v856 = vpop.f32.mrb[0].mxu0
    %v857 = vadd.f32 0.0, %v856
    %v858 = vpop.f32.mrb[0].mxu0
    %v859 = vpop.f32.mrb[0].mxu0
    %v860 = vadd.f32 0.0, %v859
    %v861 = vpop.f32.mrb[0].mxu0
    %862 = vmatprep.mubr.bf16.mxu0 0
    %863 = vmatmul.mubr.bf16.gmra.mrb[0].mxu0 %v782
    %v864 = vpop.f32.mrb[0].mxu0
    %v865 = vadd.f32 0.0, %v864
    %v866 = vpop.f32.mrb[0].mxu0
    %v867 = vpop.f32.mrb[0].mxu0
    %v868 = vadd.f32 0.0, %v867
    %v869 = vpop.f32.mrb[0].mxu0
    %870 = vmatprep.mubr.bf16.mxu0 0
    %871 = vmatmul.mubr.bf16.gmra.mrb[0].mxu0 %v785
    %v872 = vpop.f32.mrb[0].mxu0
    %v873 = vadd.f32 0.0, %v872
    %v874 = vpop.f32.mrb[0].mxu0
    %v875 = vpop.f32.mrb[0].mxu0
    %v876 = vadd.f32 0.0, %v875
    %v877 = vpop.f32.mrb[0].mxu0
    %878 = vmatprep.mubr.bf16.mxu0 0
    %879 = vmatmul.mubr.bf16.gmra.mrb[0].mxu0 %v788
    %v880 = vpop.f32.mrb[0].mxu0
    %v881 = vadd.f32 0.0, %v880
    %v882 = vpop.f32.mrb[0].mxu0
    %v883 = vpop.f32.mrb[0].mxu0
    %v884 = vadd.f32 0.0, %v883
    %v885 = vpop.f32.mrb[0].mxu0
    %886 = vdwg.mxu0
    %v887 = vsel %vm261, %v825, 0.0
    %v888 = vsel %vm261, %v833, 0.0
    %v889 = vadd.f32 %v887, %v888
    %v890 = vsel %vm261, %v841, 0.0
    %v891 = vadd.f32 %v889, %v890
    %v892 = vsel %vm261, %v849, 0.0
    %v893 = vadd.f32 %v891, %v892
    %v894 = vsel %vm261, %v857, 0.0
    %v895 = vadd.f32 %v893, %v894
    %v896 = vsel %vm261, %v865, 0.0
    %v897 = vadd.f32 %v895, %v896
    %v898 = vsel %vm261, %v873, 0.0
    %v899 = vadd.f32 %v897, %v898
    %v900 = vsel %vm261, %v881, 0.0
    %v901 = vadd.f32 %v899, %v900
    %v902 = vsel %vm261, %v828, 0.0
    %v903 = vsel %vm261, %v836, 0.0
    %v904 = vadd.f32 %v902, %v903
    %v905 = vsel %vm261, %v844, 0.0
    %v906 = vadd.f32 %v904, %v905
    %v907 = vsel %vm261, %v852, 0.0
    %v908 = vadd.f32 %v906, %v907
    %v909 = vsel %vm261, %v860, 0.0
    %v910 = vadd.f32 %v908, %v909
    %v911 = vsel %vm261, %v868, 0.0
    %v912 = vadd.f32 %v910, %v911
    %v913 = vsel %vm261, %v876, 0.0
    %v914 = vadd.f32 %v912, %v913
    %v915 = vsel %vm261, %v884, 0.0
    %v916 = vadd.f32 %v914, %v915
    %v917 = vld [vmem:[#allocation9] sm:$0x1]
    %v919 = vlaneseq
    %v920 = vshrl.u32 %v919, 7
    %v921 = vsub.s32 0, %v920
    %v922 = vrot.slane %v917, %v921
    %v924 = vadd.f32 %v901, %v922
    %v925 = vadd.f32 %v916, %v922
    %v926 = vadd.f32 %v166, %v924
    %v927 = vadd.f32 %v167, %v925
    %v928 = vld [vmem:[#allocation10] sm:$0x1]
    %v929 = vld [vmem:[#allocation12] sm:$0x1]
    %v930 = vsel %vm261, %v926, 0.0
    %931 = vadd.xlane.f32.xlu0 %v930
    %v932 = vpop.xlane.xlu0 %931
    %v933 = vsel %vm261, %v927, 0.0
    %934 = vadd.xlane.f32.xlu0 %v933
    %v935 = vpop.xlane.xlu0 %934
    %v936 = vrcp.pop 64.0
    %v937 = vmul.f32 %v932, %v936
    %v938 = vmul.f32 %v935, %v936
    %v939 = vsub.f32 %v926, %v937
    %v940 = vsub.f32 %v927, %v938
    %v941 = vmul.f32 %v939, %v939
    %v942 = vmul.f32 %v940, %v940
    %v943 = vsel %vm261, %v941, 0.0
    %944 = vadd.xlane.f32.xlu0 %v943
    %v945 = vpop.xlane.xlu0 %944
    %v946 = vsel %vm261, %v942, 0.0
    %947 = vadd.xlane.f32.xlu0 %v946
    %v948 = vpop.xlane.xlu0 %947
    %v949 = vmul.f32 %v945, %v936
    %v950 = vmul.f32 %v948, %v936
    %v951 = vadd.f32 %v949, 1e-05
    %v952 = vadd.f32 %v950, 1e-05
    %v953 = vrsqrt.pop %v951
    %v954 = vrsqrt.pop %v952
    %v955 = vmul.f32 %v939, %v953
    %v956 = vmul.f32 %v940, %v954
    %v958 = vlaneseq
    %v959 = vshrl.u32 %v958, 7
    %v960 = vsub.s32 0, %v959
    %v961 = vrot.slane %v928, %v960
    %v963 = vmul.f32 %v955, %v961
    %v964 = vmul.f32 %v956, %v961
    %v966 = vlaneseq
    %v967 = vshrl.u32 %v966, 7
    %v968 = vsub.s32 0, %v967
    %v969 = vrot.slane %v929, %v968
    %v971 = vadd.f32 %v963, %v969
    %v972 = vadd.f32 %v964, %v969
    %v973 = vpack.c.bf16 %v972, %v971
    %v974 = vld [vmem:[%s9] sm:$0xf]
    %v975 = vld [vmem:[%s9 + $0x4] sm:$0xf]
    %v976 = vld [vmem:[%s9 + $0x8] sm:$0xf]
    %v977 = vld [vmem:[%s9 + $0xc] sm:$0xf]
    %v978 = vld [vmem:[%s9 + $0x10] sm:$0xf]
    %v979 = vld [vmem:[%s9 + $0x14] sm:$0xf]
    %v980 = vld [vmem:[%s9 + $0x18] sm:$0xf]
    %v981 = vld [vmem:[%s9 + $0x1c] sm:$0xf]
    %v982 = vld [vmem:[%s10] sm:$0x1]
    %v984 = vlaneseq
    %v985 = vshrl.u32 %v984, 7
    %v986 = vsub.s32 0, %v985
    %v987 = vrot.slane %v982, %v986
    %v997 = vunpack.c.l.b16 %v974
    %v998 = vunpack.c.l.b16 %v975
    %v999 = vunpack.c.l.b16 %v976
    %v1000 = vunpack.c.l.b16 %v977
    %v1001 = vunpack.c.l.b16 %v978
    %v1002 = vunpack.c.l.b16 %v979
    %v1003 = vunpack.c.l.b16 %v980
    %v1004 = vunpack.c.l.b16 %v981
    %v1005 = vpack.c.b16 %v998, %v997
    %v1006 = vpack.c.b16 %v1000, %v999
    %v1007 = vpack.c.b16 %v1002, %v1001
    %v1008 = vpack.c.b16 %v1004, %v1003
    %v1014 = vsel %vm261, %v973, 0
    %1016 = vmatprep.subr.bf16.mxu0 0
    %1017 = vmatpush1.bf16.msra.mxu0 %v1005
    %1018 = vmatprep.subr.bf16.mxu0 0
    %1019 = vmatpush1.bf16.msra.mxu0 %v1006
    %1020 = vmatprep.subr.bf16.mxu0 0
    %1021 = vmatpush1.bf16.msra.mxu0 %v1007
    %1022 = vmatprep.subr.bf16.mxu0 0
    %1023 = vmatpush1.bf16.msra.mxu0 %v1008
    %1024 = vmatprep.subr.bf16.mxu0 0
    %1025 = vmatpush1.bf16.msra.mxu0 0
    %1026 = vmatprep.subr.bf16.mxu0 0
    %1027 = vmatpush1.bf16.msra.mxu0 0
    %1028 = vmatprep.subr.bf16.mxu0 0
    %1029 = vmatpush1.bf16.msra.mxu0 0
    %1030 = vmatprep.subr.bf16.mxu0 0
    %1031 = vmatpush1.bf16.msra.mxu0 0
    %1032 = vmatprep.subr.bf16.mxu0 0
    %1033 = vmatpush1.bf16.msra.mxu0 0
    %1034 = vmatprep.subr.bf16.mxu0 0
    %1035 = vmatpush1.bf16.msra.mxu0 0
    %1036 = vmatprep.subr.bf16.mxu0 0
    %1037 = vmatpush1.bf16.msra.mxu0 0
    %1038 = vmatprep.subr.bf16.mxu0 0
    %1039 = vmatpush1.bf16.msra.mxu0 0
    %1040 = vmatprep.subr.bf16.mxu0 0
    %1041 = vmatpush1.bf16.msra.mxu0 0
    %1042 = vmatprep.subr.bf16.mxu0 0
    %1043 = vmatpush1.bf16.msra.mxu0 0
    %1044 = vmatprep.subr.bf16.mxu0 0
    %1045 = vmatpush1.bf16.msra.mxu0 0
    %1046 = vmatprep.subr.bf16.mxu0 0
    %1047 = vmatpush1.bf16.msra.mxu0 0
    %1048 = vmatprep.mubr.bf16.mxu0 0
    %1049 = vmatmul.mubr.bf16.gmra.mrb[0].mxu0 %v1014
    %v1050 = vpop.f32.mrb[0].mxu0
    %v1051 = vadd.f32 %v987, %v1050
    %v1052 = vpop.f32.mrb[0].mxu0
    %v1053 = vpop.f32.mrb[0].mxu0
    %v1054 = vadd.f32 %v987, %v1053
    %v1055 = vpop.f32.mrb[0].mxu0
    %1056 = vdwg.mxu0
    %v1057 = vmax.f32 %v1051, 0.0
    %v1058 = vmax.f32 %v1054, 0.0
    %v1059 = vpack.c.bf16 %v1058, %v1057
    %v1060 = vld [vmem:[#allocation13] sm:$0xf]
    %v1061 = vld [vmem:[#allocation13 + $0x4] sm:$0xf]
    %v1062 = vld [vmem:[#allocation13 + $0x8] sm:$0xf]
    %v1063 = vld [vmem:[#allocation13 + $0xc] sm:$0xf]
    %v1064 = vld [vmem:[#allocation13 + $0x10] sm:$0xf]
    %v1065 = vld [vmem:[#allocation13 + $0x14] sm:$0xf]
    %v1066 = vld [vmem:[#allocation13 + $0x18] sm:$0xf]
    %v1067 = vld [vmem:[#allocation13 + $0x1c] sm:$0xf]
    %v1068 = vld [vmem:[%s12] sm:$0x1]
    %v1070 = vlaneseq
    %v1071 = vshrl.u32 %v1070, 7
    %v1072 = vsub.s32 0, %v1071
    %v1073 = vrot.slane %v1068, %v1072
    %v1083 = vunpack.c.l.b16 %v1060
    %v1084 = vunpack.c.l.b16 %v1061
    %v1085 = vunpack.c.l.b16 %v1062
    %v1086 = vunpack.c.l.b16 %v1063
    %v1087 = vunpack.c.l.b16 %v1064
    %v1088 = vunpack.c.l.b16 %v1065
    %v1089 = vunpack.c.l.b16 %v1066
    %v1090 = vunpack.c.l.b16 %v1067
    %v1091 = vpack.c.b16 %v1084, %v1083
    %v1092 = vpack.c.b16 %v1086, %v1085
    %v1093 = vpack.c.b16 %v1088, %v1087
    %v1094 = vpack.c.b16 %v1090, %v1089
    %v1100 = vsel %vm261, %v1059, 0
    %1102 = vmatprep.subr.bf16.mxu0 0
    %1103 = vmatpush1.bf16.msra.mxu0 %v1091
    %1104 = vmatprep.subr.bf16.mxu0 0
    %1105 = vmatpush1.bf16.msra.mxu0 %v1092
    %1106 = vmatprep.subr.bf16.mxu0 0
    %1107 = vmatpush1.bf16.msra.mxu0 %v1093
    %1108 = vmatprep.subr.bf16.mxu0 0
    %1109 = vmatpush1.bf16.msra.mxu0 %v1094
    %1110 = vmatprep.subr.bf16.mxu0 0
    %1111 = vmatpush1.bf16.msra.mxu0 0
    %1112 = vmatprep.subr.bf16.mxu0 0
    %1113 = vmatpush1.bf16.msra.mxu0 0
    %1114 = vmatprep.subr.bf16.mxu0 0
    %1115 = vmatpush1.bf16.msra.mxu0 0
    %1116 = vmatprep.subr.bf16.mxu0 0
    %1117 = vmatpush1.bf16.msra.mxu0 0
    %1118 = vmatprep.subr.bf16.mxu0 0
    %1119 = vmatpush1.bf16.msra.mxu0 0
    %1120 = vmatprep.subr.bf16.mxu0 0
    %1121 = vmatpush1.bf16.msra.mxu0 0
    %1122 = vmatprep.subr.bf16.mxu0 0
    %1123 = vmatpush1.bf16.msra.mxu0 0
    %1124 = vmatprep.subr.bf16.mxu0 0
    %1125 = vmatpush1.bf16.msra.mxu0 0
    %1126 = vmatprep.subr.bf16.mxu0 0
    %1127 = vmatpush1.bf16.msra.mxu0 0
    %1128 = vmatprep.subr.bf16.mxu0 0
    %1129 = vmatpush1.bf16.msra.mxu0 0
    %1130 = vmatprep.subr.bf16.mxu0 0
    %1131 = vmatpush1.bf16.msra.mxu0 0
    %1132 = vmatprep.subr.bf16.mxu0 0
    %1133 = vmatpush1.bf16.msra.mxu0 0
    %1134 = vmatprep.mubr.bf16.mxu0 0
    %1135 = vmatmul.mubr.bf16.gmra.mrb[0].mxu0 %v1100
    %v1136 = vpop.f32.mrb[0].mxu0
    %v1137 = vadd.f32 %v1073, %v1136
    %v1138 = vpop.f32.mrb[0].mxu0
    %v1139 = vpop.f32.mrb[0].mxu0
    %v1140 = vadd.f32 %v1073, %v1139
    %v1141 = vpop.f32.mrb[0].mxu0
    %1142 = vdwg.mxu0
    %v1143 = vadd.f32 %v971, %v1137
    %v1144 = vadd.f32 %v972, %v1140
    %v1145 = vld [vmem:[%s13] sm:$0x1]
    %v1146 = vld [vmem:[%s14] sm:$0x1]
    %v1147 = vsel %vm261, %v1143, 0.0
    %1148 = vadd.xlane.f32.xlu0 %v1147
    %v1149 = vpop.xlane.xlu0 %1148
    %v1150 = vsel %vm261, %v1144, 0.0
    %1151 = vadd.xlane.f32.xlu0 %v1150
    %v1152 = vpop.xlane.xlu0 %1151
    %v1153 = vmul.f32 %v1149, %v936
    %v1154 = vmul.f32 %v1152, %v936
    %v1155 = vsub.f32 %v1143, %v1153
    %v1156 = vsub.f32 %v1144, %v1154
    %v1157 = vmul.f32 %v1155, %v1155
    %v1158 = vmul.f32 %v1156, %v1156
    %v1159 = vsel %vm261, %v1157, 0.0
    %1160 = vadd.xlane.f32.xlu0 %v1159
    %v1161 = vpop.xlane.xlu0 %1160
    %v1162 = vsel %vm261, %v1158, 0.0
    %1163 = vadd.xlane.f32.xlu0 %v1162
    %v1164 = vpop.xlane.xlu0 %1163
    %v1165 = vmul.f32 %v1161, %v936
    %v1166 = vmul.f32 %v1164, %v936
    %v1167 = vadd.f32 %v1165, 1e-05
    %v1168 = vadd.f32 %v1166, 1e-05
    %v1169 = vrsqrt.pop %v1167
    %v1170 = vrsqrt.pop %v1168
    %v1171 = vmul.f32 %v1155, %v1169
    %v1172 = vmul.f32 %v1156, %v1170
    %v1174 = vlaneseq
    %v1175 = vshrl.u32 %v1174, 7
    %v1176 = vsub.s32 0, %v1175
    %v1177 = vrot.slane %v1145, %v1176
    %v1179 = vmul.f32 %v1171, %v1177
    %v1180 = vmul.f32 %v1172, %v1177
    %v1182 = vlaneseq
    %v1183 = vshrl.u32 %v1182, 7
    %v1184 = vsub.s32 0, %v1183
    %v1185 = vrot.slane %v1146, %v1184
    %v1187 = vadd.f32 %v1179, %v1185
    %v1188 = vadd.f32 %v1180, %v1185
    %v1189 = vpack.c.bf16 %v1188, %v1187
    %s1190 = scalar_lea.vmem [#allocation4], 64
    %v1191 = vld [vmem:[%s1190] sm:$0xff]
    %v1192 = vld [vmem:[%s1190 + $0x8] sm:$0xff]
    %v1193 = vld [vmem:[%s1190 + $0x10] sm:$0xff]
    %v1194 = vld [vmem:[%s1190 + $0x18] sm:$0xff]
    %v1195 = vld [vmem:[%s1190 + $0x20] sm:$0xff]
    %v1196 = vld [vmem:[%s1190 + $0x28] sm:$0xff]
    %v1197 = vld [vmem:[%s1190 + $0x30] sm:$0xff]
    %v1198 = vld [vmem:[%s1190 + $0x38] sm:$0xff]
    %s1199 = scalar_lea.vmem [#allocation6], 2
    %v1200 = vld [vmem:[%s1199] sm:$0x3]
    %v1202 = vlaneseq
    %v1203 = vshrl.u32 %v1202, 7
    %v1204 = vsub.s32 0, %v1203
    %v1205 = vrot.slane %v1200, %v1204
    %v1206 = vlaneseq
    %v1207 = vshrl.u32 %v1206, 7
    %v1208 = vsub.s32 1, %v1207
    %v1209 = vrot.slane %v1200, %v1208
    %v1220 = vunpack.c.l.b16 %v1191
    %v1221 = vunpack.c.h.b16 %v1191
    %v1222 = vunpack.c.l.b16 %v1192
    %v1223 = vunpack.c.h.b16 %v1192
    %v1224 = vunpack.c.l.b16 %v1193
    %v1225 = vunpack.c.h.b16 %v1193
    %v1226 = vunpack.c.l.b16 %v1194
    %v1227 = vunpack.c.h.b16 %v1194
    %v1228 = vunpack.c.l.b16 %v1195
    %v1229 = vunpack.c.h.b16 %v1195
    %v1230 = vunpack.c.l.b16 %v1196
    %v1231 = vunpack.c.h.b16 %v1196
    %v1232 = vunpack.c.l.b16 %v1197
    %v1233 = vunpack.c.h.b16 %v1197
    %v1234 = vunpack.c.l.b16 %v1198
    %v1235 = vunpack.c.h.b16 %v1198
    %v1236 = vpack.c.b16 %v1222, %v1220
    %v1237 = vpack.c.b16 %v1223, %v1221
    %v1238 = vpack.c.b16 %v1226, %v1224
    %v1239 = vpack.c.b16 %v1227, %v1225
    %v1240 = vpack.c.b16 %v1230, %v1228
    %v1241 = vpack.c.b16 %v1231, %v1229
    %v1242 = vpack.c.b16 %v1234, %v1232
    %v1243 = vpack.c.b16 %v1235, %v1233
    %v1253 = vsel %vm261, %v1189, 0
    %1255 = vmatprep.subr.bf16.mxu0 %v1237
    %1256 = vmatpush1.bf16.msra.mxu0 %v1236
    %1257 = vmatprep.subr.bf16.mxu0 %v1239
    %1258 = vmatpush1.bf16.msra.mxu0 %v1238
    %1259 = vmatprep.subr.bf16.mxu0 %v1241
    %1260 = vmatpush1.bf16.msra.mxu0 %v1240
    %1261 = vmatprep.subr.bf16.mxu0 %v1243
    %1262 = vmatpush1.bf16.msra.mxu0 %v1242
    %1263 = vmatprep.subr.bf16.mxu0 0
    %1264 = vmatpush1.bf16.msra.mxu0 0
    %1265 = vmatprep.subr.bf16.mxu0 0
    %1266 = vmatpush1.bf16.msra.mxu0 0
    %1267 = vmatprep.subr.bf16.mxu0 0
    %1268 = vmatpush1.bf16.msra.mxu0 0
    %1269 = vmatprep.subr.bf16.mxu0 0
    %1270 = vmatpush1.bf16.msra.mxu0 0
    %1271 = vmatprep.subr.bf16.mxu0 0
    %1272 = vmatpush1.bf16.msra.mxu0 0
    %1273 = vmatprep.subr.bf16.mxu0 0
    %1274 = vmatpush1.bf16.msra.mxu0 0
    %1275 = vmatprep.subr.bf16.mxu0 0
    %1276 = vmatpush1.bf16.msra.mxu0 0
    %1277 = vmatprep.subr.bf16.mxu0 0
    %1278 = vmatpush1.bf16.msra.mxu0 0
    %1279 = vmatprep.subr.bf16.mxu0 0
    %1280 = vmatpush1.bf16.msra.mxu0 0
    %1281 = vmatprep.subr.bf16.mxu0 0
    %1282 = vmatpush1.bf16.msra.mxu0 0
    %1283 = vmatprep.subr.bf16.mxu0 0
    %1284 = vmatpush1.bf16.msra.mxu0 0
    %1285 = vmatprep.subr.bf16.mxu0 0
    %1286 = vmatpush1.bf16.msra.mxu0 0
    %1287 = vmatprep.mubr.bf16.mxu0 0
    %1288 = vmatmul.mubr.bf16.gmra.mrb[0].mxu0 %v1253
    %v1289 = vpop.f32.mrb[0].mxu0
    %v1290 = vadd.f32 %v1205, %v1289
    %v1291 = vpop.f32.mrb[0].mxu0
    %v1292 = vadd.f32 %v1209, %v1291
    %v1293 = vpop.f32.mrb[0].mxu0
    %v1294 = vadd.f32 %v1205, %v1293
    %v1295 = vpop.f32.mrb[0].mxu0
    %v1296 = vadd.f32 %v1209, %v1295
    %1297 = vdwg.mxu0
    %v1298 = vmul.f32 %v1290, %v184
    %v1299 = vmul.f32 %v1294, %v185
    %v1300 = vmul.f32 %v1290, %v186
    %v1301 = vmul.f32 %v1294, %v187
    %v1302 = vmul.f32 %v1290, %v188
    %v1303 = vmul.f32 %v1294, %v189
    %v1304 = vmul.f32 %v1290, %v190
    %v1305 = vmul.f32 %v1294, %v191
    %v1306 = vmul.f32 %v1290, %v192
    %v1307 = vmul.f32 %v1294, %v193
    %v1308 = vmul.f32 %v1290, %v194
    %v1309 = vmul.f32 %v1294, %v195
    %v1310 = vmul.f32 %v1290, %v196
    %v1311 = vmul.f32 %v1294, %v197
    %v1312 = vmul.f32 %v1290, %v198
    %v1313 = vmul.f32 %v1294, %v199
    %v1314 = vpack.c.bf16 %v1299, %v1298
    %v1315 = vpack.c.bf16 %v1301, %v1300
    %v1316 = vpack.c.bf16 %v1303, %v1302
    %v1317 = vpack.c.bf16 %v1305, %v1304
    %v1318 = vpack.c.bf16 %v1307, %v1306
    %v1319 = vpack.c.bf16 %v1309, %v1308
    %v1320 = vpack.c.bf16 %v1311, %v1310
    %v1321 = vpack.c.bf16 %v1313, %v1312
    %v1322 = vpack.c.bf16 %v1294, %v1290
    %1324 = vrot.lane.b32.xlu0 %v1322, 64
    %v1325 = vpop.permute.xlu0 %1324
    %v1327 = vsel %vm261, %v1314, 0
    %v1330 = vsel %vm261, %v1315, 0
    %v1333 = vsel %vm261, %v1316, 0
    %v1336 = vsel %vm261, %v1317, 0
    %v1339 = vsel %vm261, %v1318, 0
    %v1342 = vsel %vm261, %v1319, 0
    %v1345 = vsel %vm261, %v1320, 0
    %v1348 = vsel %vm261, %v1321, 0
    %v1351 = vsel %vm261, %v1325, 0
    %1353 = vmatprep.subr.bf16.mxu0 0
    %1354 = vmatpush1.bf16.xpose.msra.mxu0 %v1351
    %1355 = vmatprep.subr.bf16.mxu0 0
    %1356 = vmatpush1.bf16.xpose.msra.mxu0 %v1351
    %1357 = vmatprep.subr.bf16.mxu0 0
    %1358 = vmatpush1.bf16.xpose.msra.mxu0 %v1351
    %1359 = vmatprep.subr.bf16.mxu0 0
    %1360 = vmatpush1.bf16.xpose.msra.mxu0 %v1351
    %1361 = vmatprep.subr.bf16.mxu0 0
    %1362 = vmatpush1.bf16.xpose.msra.mxu0 %v1351
    %1363 = vmatprep.subr.bf16.mxu0 0
    %1364 = vmatpush1.bf16.xpose.msra.mxu0 %v1351
    %1365 = vmatprep.subr.bf16.mxu0 0
    %1366 = vmatpush1.bf16.xpose.msra.mxu0 %v1351
    %1367 = vmatprep.subr.bf16.mxu0 0
    %1368 = vmatpush1.bf16.xpose.msra.mxu0 %v1351
    %1369 = vmatprep.subr.bf16.mxu0 0
    %1370 = vmatpush1.bf16.xpose.msra.mxu0 0
    %1371 = vmatprep.subr.bf16.mxu0 0
    %1372 = vmatpush1.bf16.xpose.msra.mxu0 0
    %1373 = vmatprep.subr.bf16.mxu0 0
    %1374 = vmatpush1.bf16.xpose.msra.mxu0 0
    %1375 = vmatprep.subr.bf16.mxu0 0
    %1376 = vmatpush1.bf16.xpose.msra.mxu0 0
    %1377 = vmatprep.subr.bf16.mxu0 0
    %1378 = vmatpush1.bf16.xpose.msra.mxu0 0
    %1379 = vmatprep.subr.bf16.mxu0 0
    %1380 = vmatpush1.bf16.xpose.msra.mxu0 0
    %1381 = vmatprep.subr.bf16.mxu0 0
    %1382 = vmatpush1.bf16.xpose.msra.mxu0 0
    %1383 = vmatprep.subr.bf16.mxu0 0
    %1384 = vmatpush1.bf16.xpose.msra.mxu0 0
    %1385 = vmatprep.mubr.bf16.mxu0 0
    %1386 = vmatmul.mubr.bf16.gmra.mrb[0].mxu0 %v1327
    %v1387 = vpop.f32.mrb[0].mxu0
    %v1388 = vadd.f32 %v168, %v1387
    %v1389 = vpop.f32.mrb[0].mxu0
    %v1390 = vpop.f32.mrb[0].mxu0
    %v1391 = vadd.f32 %v169, %v1390
    %v1392 = vpop.f32.mrb[0].mxu0
    %1393 = vmatprep.mubr.bf16.mxu0 0
    %1394 = vmatmul.mubr.bf16.gmra.mrb[0].mxu0 %v1330
    %v1395 = vpop.f32.mrb[0].mxu0
    %v1396 = vadd.f32 %v170, %v1395
    %v1397 = vpop.f32.mrb[0].mxu0
    %v1398 = vpop.f32.mrb[0].mxu0
    %v1399 = vadd.f32 %v171, %v1398
    %v1400 = vpop.f32.mrb[0].mxu0
    %1401 = vmatprep.mubr.bf16.mxu0 0
    %1402 = vmatmul.mubr.bf16.gmra.mrb[0].mxu0 %v1333
    %v1403 = vpop.f32.mrb[0].mxu0
    %v1404 = vadd.f32 %v172, %v1403
    %v1405 = vpop.f32.mrb[0].mxu0
    %v1406 = vpop.f32.mrb[0].mxu0
    %v1407 = vadd.f32 %v173, %v1406
    %v1408 = vpop.f32.mrb[0].mxu0
    %1409 = vmatprep.mubr.bf16.mxu0 0
    %1410 = vmatmul.mubr.bf16.gmra.mrb[0].mxu0 %v1336
    %v1411 = vpop.f32.mrb[0].mxu0
    %v1412 = vadd.f32 %v174, %v1411
    %v1413 = vpop.f32.mrb[0].mxu0
    %v1414 = vpop.f32.mrb[0].mxu0
    %v1415 = vadd.f32 %v175, %v1414
    %v1416 = vpop.f32.mrb[0].mxu0
    %1417 = vmatprep.mubr.bf16.mxu0 0
    %1418 = vmatmul.mubr.bf16.gmra.mrb[0].mxu0 %v1339
    %v1419 = vpop.f32.mrb[0].mxu0
    %v1420 = vadd.f32 %v176, %v1419
    %v1421 = vpop.f32.mrb[0].mxu0
    %v1422 = vpop.f32.mrb[0].mxu0
    %v1423 = vadd.f32 %v177, %v1422
    %v1424 = vpop.f32.mrb[0].mxu0
    %1425 = vmatprep.mubr.bf16.mxu0 0
    %1426 = vmatmul.mubr.bf16.gmra.mrb[0].mxu0 %v1342
    %v1427 = vpop.f32.mrb[0].mxu0
    %v1428 = vadd.f32 %v178, %v1427
    %v1429 = vpop.f32.mrb[0].mxu0
    %v1430 = vpop.f32.mrb[0].mxu0
    %v1431 = vadd.f32 %v179, %v1430
    %v1432 = vpop.f32.mrb[0].mxu0
    %1433 = vmatprep.mubr.bf16.mxu0 0
    %1434 = vmatmul.mubr.bf16.gmra.mrb[0].mxu0 %v1345
    %v1435 = vpop.f32.mrb[0].mxu0
    %v1436 = vadd.f32 %v180, %v1435
    %v1437 = vpop.f32.mrb[0].mxu0
    %v1438 = vpop.f32.mrb[0].mxu0
    %v1439 = vadd.f32 %v181, %v1438
    %v1440 = vpop.f32.mrb[0].mxu0
    %1441 = vmatprep.mubr.bf16.mxu0 0
    %1442 = vmatmul.mubr.bf16.gmra.mrb[0].mxu0 %v1348
    %v1443 = vpop.f32.mrb[0].mxu0
    %v1444 = vadd.f32 %v182, %v1443
    %v1445 = vpop.f32.mrb[0].mxu0
    %v1446 = vpop.f32.mrb[0].mxu0
    %v1447 = vadd.f32 %v183, %v1446
    %v1448 = vpop.f32.mrb[0].mxu0
    %1449 = vdwg.mxu0
    %1450 = vmax.xlane.f32.xlu0 %v1388
    %v1451 = vpop.xlane.xlu0 %1450
    %1452 = vmax.xlane.f32.xlu0 %v1391
    %v1453 = vpop.xlane.xlu0 %1452
    %1454 = vmax.xlane.f32.xlu0 %v1396
    %v1455 = vpop.xlane.xlu0 %1454
    %1456 = vmax.xlane.f32.xlu0 %v1399
    %v1457 = vpop.xlane.xlu0 %1456
    %1458 = vmax.xlane.f32.xlu0 %v1404
    %v1459 = vpop.xlane.xlu0 %1458
    %1460 = vmax.xlane.f32.xlu0 %v1407
    %v1461 = vpop.xlane.xlu0 %1460
    %1462 = vmax.xlane.f32.xlu0 %v1412
    %v1463 = vpop.xlane.xlu0 %1462
    %1464 = vmax.xlane.f32.xlu0 %v1415
    %v1465 = vpop.xlane.xlu0 %1464
    %1466 = vmax.xlane.f32.xlu0 %v1420
    %v1467 = vpop.xlane.xlu0 %1466
    %1468 = vmax.xlane.f32.xlu0 %v1423
    %v1469 = vpop.xlane.xlu0 %1468
    %1470 = vmax.xlane.f32.xlu0 %v1428
    %v1471 = vpop.xlane.xlu0 %1470
    %1472 = vmax.xlane.f32.xlu0 %v1431
    %v1473 = vpop.xlane.xlu0 %1472
    %1474 = vmax.xlane.f32.xlu0 %v1436
    %v1475 = vpop.xlane.xlu0 %1474
    %1476 = vmax.xlane.f32.xlu0 %v1439
    %v1477 = vpop.xlane.xlu0 %1476
    %1478 = vmax.xlane.f32.xlu0 %v1444
    %v1479 = vpop.xlane.xlu0 %1478
    %1480 = vmax.xlane.f32.xlu0 %v1447
    %v1481 = vpop.xlane.xlu0 %1480
    %v1482 = vsub.f32 %v1388, %v1451
    %v1483 = vsub.f32 %v1391, %v1453
    %v1484 = vsub.f32 %v1396, %v1455
    %v1485 = vsub.f32 %v1399, %v1457
    %v1486 = vsub.f32 %v1404, %v1459
    %v1487 = vsub.f32 %v1407, %v1461
    %v1488 = vsub.f32 %v1412, %v1463
    %v1489 = vsub.f32 %v1415, %v1465
    %v1490 = vsub.f32 %v1420, %v1467
    %v1491 = vsub.f32 %v1423, %v1469
    %v1492 = vsub.f32 %v1428, %v1471
    %v1493 = vsub.f32 %v1431, %v1473
    %v1494 = vsub.f32 %v1436, %v1475
    %v1495 = vsub.f32 %v1439, %v1477
    %v1496 = vsub.f32 %v1444, %v1479
    %v1497 = vsub.f32 %v1447, %v1481
    %v1498 = vmul.f32 %v1482, 1.442695
    %v1499 = vpow.pop %v1498
    %v1500 = vmul.f32 %v1483, 1.442695
    %v1501 = vpow.pop %v1500
    %v1502 = vmul.f32 %v1484, 1.442695
    %v1503 = vpow.pop %v1502
    %v1504 = vmul.f32 %v1485, 1.442695
    %v1505 = vpow.pop %v1504
    %v1506 = vmul.f32 %v1486, 1.442695
    %v1507 = vpow.pop %v1506
    %v1508 = vmul.f32 %v1487, 1.442695
    %v1509 = vpow.pop %v1508
    %v1510 = vmul.f32 %v1488, 1.442695
    %v1511 = vpow.pop %v1510
    %v1512 = vmul.f32 %v1489, 1.442695
    %v1513 = vpow.pop %v1512
    %v1514 = vmul.f32 %v1490, 1.442695
    %v1515 = vpow.pop %v1514
    %v1516 = vmul.f32 %v1491, 1.442695
    %v1517 = vpow.pop %v1516
    %v1518 = vmul.f32 %v1492, 1.442695
    %v1519 = vpow.pop %v1518
    %v1520 = vmul.f32 %v1493, 1.442695
    %v1521 = vpow.pop %v1520
    %v1522 = vmul.f32 %v1494, 1.442695
    %v1523 = vpow.pop %v1522
    %v1524 = vmul.f32 %v1495, 1.442695
    %v1525 = vpow.pop %v1524
    %v1526 = vmul.f32 %v1496, 1.442695
    %v1527 = vpow.pop %v1526
    %v1528 = vmul.f32 %v1497, 1.442695
    %v1529 = vpow.pop %v1528
    %1530 = vadd.xlane.f32.xlu0 %v1499
    %v1531 = vpop.xlane.xlu0 %1530
    %1532 = vadd.xlane.f32.xlu0 %v1501
    %v1533 = vpop.xlane.xlu0 %1532
    %1534 = vadd.xlane.f32.xlu0 %v1503
    %v1535 = vpop.xlane.xlu0 %1534
    %1536 = vadd.xlane.f32.xlu0 %v1505
    %v1537 = vpop.xlane.xlu0 %1536
    %1538 = vadd.xlane.f32.xlu0 %v1507
    %v1539 = vpop.xlane.xlu0 %1538
    %1540 = vadd.xlane.f32.xlu0 %v1509
    %v1541 = vpop.xlane.xlu0 %1540
    %1542 = vadd.xlane.f32.xlu0 %v1511
    %v1543 = vpop.xlane.xlu0 %1542
    %1544 = vadd.xlane.f32.xlu0 %v1513
    %v1545 = vpop.xlane.xlu0 %1544
    %1546 = vadd.xlane.f32.xlu0 %v1515
    %v1547 = vpop.xlane.xlu0 %1546
    %1548 = vadd.xlane.f32.xlu0 %v1517
    %v1549 = vpop.xlane.xlu0 %1548
    %1550 = vadd.xlane.f32.xlu0 %v1519
    %v1551 = vpop.xlane.xlu0 %1550
    %1552 = vadd.xlane.f32.xlu0 %v1521
    %v1553 = vpop.xlane.xlu0 %1552
    %1554 = vadd.xlane.f32.xlu0 %v1523
    %v1555 = vpop.xlane.xlu0 %1554
    %1556 = vadd.xlane.f32.xlu0 %v1525
    %v1557 = vpop.xlane.xlu0 %1556
    %1558 = vadd.xlane.f32.xlu0 %v1527
    %v1559 = vpop.xlane.xlu0 %1558
    %1560 = vadd.xlane.f32.xlu0 %v1529
    %v1561 = vpop.xlane.xlu0 %1560
    %v1562 = vrcp.pop %v1531
    %v1563 = vrcp.pop %v1533
    %v1564 = vrcp.pop %v1535
    %v1565 = vrcp.pop %v1537
    %v1566 = vrcp.pop %v1539
    %v1567 = vrcp.pop %v1541
    %v1568 = vrcp.pop %v1543
    %v1569 = vrcp.pop %v1545
    %v1570 = vrcp.pop %v1547
    %v1571 = vrcp.pop %v1549
    %v1572 = vrcp.pop %v1551
    %v1573 = vrcp.pop %v1553
    %v1574 = vrcp.pop %v1555
    %v1575 = vrcp.pop %v1557
    %v1576 = vrcp.pop %v1559
    %v1577 = vrcp.pop %v1561
    %v1578 = vmul.f32 %v1499, %v1562
    %v1579 = vmul.f32 %v1501, %v1563
    %v1580 = vmul.f32 %v1503, %v1564
    %v1581 = vmul.f32 %v1505, %v1565
    %v1582 = vmul.f32 %v1507, %v1566
    %v1583 = vmul.f32 %v1509, %v1567
    %v1584 = vmul.f32 %v1511, %v1568
    %v1585 = vmul.f32 %v1513, %v1569
    %v1586 = vmul.f32 %v1515, %v1570
    %v1587 = vmul.f32 %v1517, %v1571
    %v1588 = vmul.f32 %v1519, %v1572
    %v1589 = vmul.f32 %v1521, %v1573
    %v1590 = vmul.f32 %v1523, %v1574
    %v1591 = vmul.f32 %v1525, %v1575
    %v1592 = vmul.f32 %v1527, %v1576
    %v1593 = vmul.f32 %v1529, %v1577
    %v1594 = vpack.c.bf16 %v1579, %v1578
    %v1595 = vpack.c.bf16 %v1581, %v1580
    %v1596 = vpack.c.bf16 %v1583, %v1582
    %v1597 = vpack.c.bf16 %v1585, %v1584
    %v1598 = vpack.c.bf16 %v1587, %v1586
    %v1599 = vpack.c.bf16 %v1589, %v1588
    %v1600 = vpack.c.bf16 %v1591, %v1590
    %v1601 = vpack.c.bf16 %v1593, %v1592
    %v1602 = vpack.c.bf16 %v1296, %v1292
    %1603 = vmatprep.subr.bf16.mxu0 0
    %1604 = vmatpush1.bf16.msra.mxu0 %v1602
    %1605 = vmatprep.subr.bf16.mxu0 0
    %1606 = vmatpush1.bf16.msra.mxu0 %v1602
    %1607 = vmatprep.subr.bf16.mxu0 0
    %1608 = vmatpush1.bf16.msra.mxu0 %v1602
    %1609 = vmatprep.subr.bf16.mxu0 0
    %1610 = vmatpush1.bf16.msra.mxu0 %v1602
    %1611 = vmatprep.subr.bf16.mxu0 0
    %1612 = vmatpush1.bf16.msra.mxu0 %v1602
    %1613 = vmatprep.subr.bf16.mxu0 0
    %1614 = vmatpush1.bf16.msra.mxu0 %v1602
    %1615 = vmatprep.subr.bf16.mxu0 0
    %1616 = vmatpush1.bf16.msra.mxu0 %v1602
    %1617 = vmatprep.subr.bf16.mxu0 0
    %1618 = vmatpush1.bf16.msra.mxu0 %v1602
    %1619 = vmatprep.subr.bf16.mxu0 0
    %1620 = vmatpush1.bf16.msra.mxu0 0
    %1621 = vmatprep.subr.bf16.mxu0 0
    %1622 = vmatpush1.bf16.msra.mxu0 0
    %1623 = vmatprep.subr.bf16.mxu0 0
    %1624 = vmatpush1.bf16.msra.mxu0 0
    %1625 = vmatprep.subr.bf16.mxu0 0
    %1626 = vmatpush1.bf16.msra.mxu0 0
    %1627 = vmatprep.subr.bf16.mxu0 0
    %1628 = vmatpush1.bf16.msra.mxu0 0
    %1629 = vmatprep.subr.bf16.mxu0 0
    %1630 = vmatpush1.bf16.msra.mxu0 0
    %1631 = vmatprep.subr.bf16.mxu0 0
    %1632 = vmatpush1.bf16.msra.mxu0 0
    %1633 = vmatprep.subr.bf16.mxu0 0
    %1634 = vmatpush1.bf16.msra.mxu0 0
    %1635 = vmatprep.mubr.bf16.mxu0 0
    %1636 = vmatmul.mubr.bf16.gmra.mrb[0].mxu0 %v1594
    %v1637 = vpop.f32.mrb[0].mxu0
    %v1638 = vadd.f32 0.0, %v1637
    %v1639 = vpop.f32.mrb[0].mxu0
    %v1640 = vpop.f32.mrb[0].mxu0
    %v1641 = vadd.f32 0.0, %v1640
    %v1642 = vpop.f32.mrb[0].mxu0
    %1643 = vmatprep.mubr.bf16.mxu0 0
    %1644 = vmatmul.mubr.bf16.gmra.mrb[0].mxu0 %v1595
    %v1645 = vpop.f32.mrb[0].mxu0
    %v1646 = vadd.f32 0.0, %v1645
    %v1647 = vpop.f32.mrb[0].mxu0
    %v1648 = vpop.f32.mrb[0].mxu0
    %v1649 = vadd.f32 0.0, %v1648
    %v1650 = vpop.f32.mrb[0].mxu0
    %1651 = vmatprep.mubr.bf16.mxu0 0
    %1652 = vmatmul.mubr.bf16.gmra.mrb[0].mxu0 %v1596
    %v1653 = vpop.f32.mrb[0].mxu0
    %v1654 = vadd.f32 0.0, %v1653
    %v1655 = vpop.f32.mrb[0].mxu0
    %v1656 = vpop.f32.mrb[0].mxu0
    %v1657 = vadd.f32 0.0, %v1656
    %v1658 = vpop.f32.mrb[0].mxu0
    %1659 = vmatprep.mubr.bf16.mxu0 0
    %1660 = vmatmul.mubr.bf16.gmra.mrb[0].mxu0 %v1597
    %v1661 = vpop.f32.mrb[0].mxu0
    %v1662 = vadd.f32 0.0, %v1661
    %v1663 = vpop.f32.mrb[0].mxu0
    %v1664 = vpop.f32.mrb[0].mxu0
    %v1665 = vadd.f32 0.0, %v1664
    %v1666 = vpop.f32.mrb[0].mxu0
    %1667 = vmatprep.mubr.bf16.mxu0 0
    %1668 = vmatmul.mubr.bf16.gmra.mrb[0].mxu0 %v1598
    %v1669 = vpop.f32.mrb[0].mxu0
    %v1670 = vadd.f32 0.0, %v1669
    %v1671 = vpop.f32.mrb[0].mxu0
    %v1672 = vpop.f32.mrb[0].mxu0
    %v1673 = vadd.f32 0.0, %v1672
    %v1674 = vpop.f32.mrb[0].mxu0
    %1675 = vmatprep.mubr.bf16.mxu0 0
    %1676 = vmatmul.mubr.bf16.gmra.mrb[0].mxu0 %v1599
    %v1677 = vpop.f32.mrb[0].mxu0
    %v1678 = vadd.f32 0.0, %v1677
    %v1679 = vpop.f32.mrb[0].mxu0
    %v1680 = vpop.f32.mrb[0].mxu0
    %v1681 = vadd.f32 0.0, %v1680
    %v1682 = vpop.f32.mrb[0].mxu0
    %1683 = vmatprep.mubr.bf16.mxu0 0
    %1684 = vmatmul.mubr.bf16.gmra.mrb[0].mxu0 %v1600
    %v1685 = vpop.f32.mrb[0].mxu0
    %v1686 = vadd.f32 0.0, %v1685
    %v1687 = vpop.f32.mrb[0].mxu0
    %v1688 = vpop.f32.mrb[0].mxu0
    %v1689 = vadd.f32 0.0, %v1688
    %v1690 = vpop.f32.mrb[0].mxu0
    %1691 = vmatprep.mubr.bf16.mxu0 0
    %1692 = vmatmul.mubr.bf16.gmra.mrb[0].mxu0 %v1601
    %v1693 = vpop.f32.mrb[0].mxu0
    %v1694 = vadd.f32 0.0, %v1693
    %v1695 = vpop.f32.mrb[0].mxu0
    %v1696 = vpop.f32.mrb[0].mxu0
    %v1697 = vadd.f32 0.0, %v1696
    %v1698 = vpop.f32.mrb[0].mxu0
    %1699 = vdwg.mxu0
    %v1700 = vmul.f32 %v1638, %v184
    %v1701 = vmul.f32 %v1641, %v185
    %v1702 = vmul.f32 %v1646, %v186
    %v1703 = vmul.f32 %v1649, %v187
    %v1704 = vmul.f32 %v1654, %v188
    %v1705 = vmul.f32 %v1657, %v189
    %v1706 = vmul.f32 %v1662, %v190
    %v1707 = vmul.f32 %v1665, %v191
    %v1708 = vmul.f32 %v1670, %v192
    %v1709 = vmul.f32 %v1673, %v193
    %v1710 = vmul.f32 %v1678, %v194
    %v1711 = vmul.f32 %v1681, %v195
    %v1712 = vmul.f32 %v1686, %v196
    %v1713 = vmul.f32 %v1689, %v197
    %v1714 = vmul.f32 %v1694, %v198
    %v1715 = vmul.f32 %v1697, %v199
    %v1716 = vpack.c.bf16 %v1701, %v1700
    %v1717 = vpack.c.bf16 %v1703, %v1702
    %v1718 = vpack.c.bf16 %v1705, %v1704
    %v1719 = vpack.c.bf16 %v1707, %v1706
    %v1720 = vpack.c.bf16 %v1709, %v1708
    %v1721 = vpack.c.bf16 %v1711, %v1710
    %v1722 = vpack.c.bf16 %v1713, %v1712
    %v1723 = vpack.c.bf16 %v1715, %v1714
    %s1724 = scalar_lea.vmem [#allocation7], 32
    %v1725 = vld [vmem:[%s1724] sm:$0xf]
    %v1726 = vld [vmem:[%s1724 + $0x4] sm:$0xf]
    %v1727 = vld [vmem:[%s1724 + $0x8] sm:$0xf]
    %v1728 = vld [vmem:[%s1724 + $0xc] sm:$0xf]
    %v1729 = vld [vmem:[%s1724 + $0x10] sm:$0xf]
    %v1730 = vld [vmem:[%s1724 + $0x14] sm:$0xf]
    %v1731 = vld [vmem:[%s1724 + $0x18] sm:$0xf]
    %v1732 = vld [vmem:[%s1724 + $0x1c] sm:$0xf]
    %v1741 = vunpack.c.l.b16 %v1725
    %v1742 = vunpack.c.l.b16 %v1726
    %v1743 = vunpack.c.l.b16 %v1727
    %v1744 = vunpack.c.l.b16 %v1728
    %v1745 = vunpack.c.l.b16 %v1729
    %v1746 = vunpack.c.l.b16 %v1730
    %v1747 = vunpack.c.l.b16 %v1731
    %v1748 = vunpack.c.l.b16 %v1732
    %v1749 = vpack.c.b16 %v1742, %v1741
    %v1750 = vpack.c.b16 %v1744, %v1743
    %v1751 = vpack.c.b16 %v1746, %v1745
    %v1752 = vpack.c.b16 %v1748, %v1747
    %v1758 = vsel %vm261, %v1716, 0
    %v1761 = vsel %vm261, %v1717, 0
    %v1764 = vsel %vm261, %v1718, 0
    %v1767 = vsel %vm261, %v1719, 0
    %v1770 = vsel %vm261, %v1720, 0
    %v1773 = vsel %vm261, %v1721, 0
    %v1776 = vsel %vm261, %v1722, 0
    %v1779 = vsel %vm261, %v1723, 0
    %1781 = vmatprep.subr.bf16.mxu0 0
    %1782 = vmatpush1.bf16.msra.mxu0 %v1749
    %1783 = vmatprep.subr.bf16.mxu0 0
    %1784 = vmatpush1.bf16.msra.mxu0 %v1750
    %1785 = vmatprep.subr.bf16.mxu0 0
    %1786 = vmatpush1.bf16.msra.mxu0 %v1751
    %1787 = vmatprep.subr.bf16.mxu0 0
    %1788 = vmatpush1.bf16.msra.mxu0 %v1752
    %1789 = vmatprep.subr.bf16.mxu0 0
    %1790 = vmatpush1.bf16.msra.mxu0 0
    %1791 = vmatprep.subr.bf16.mxu0 0
    %1792 = vmatpush1.bf16.msra.mxu0 0
    %1793 = vmatprep.subr.bf16.mxu0 0
    %1794 = vmatpush1.bf16.msra.mxu0 0
    %1795 = vmatprep.subr.bf16.mxu0 0
    %1796 = vmatpush1.bf16.msra.mxu0 0
    %1797 = vmatprep.subr.bf16.mxu0 0
    %1798 = vmatpush1.bf16.msra.mxu0 0
    %1799 = vmatprep.subr.bf16.mxu0 0
    %1800 = vmatpush1.bf16.msra.mxu0 0
    %1801 = vmatprep.subr.bf16.mxu0 0
    %1802 = vmatpush1.bf16.msra.mxu0 0
    %1803 = vmatprep.subr.bf16.mxu0 0
    %1804 = vmatpush1.bf16.msra.mxu0 0
    %1805 = vmatprep.subr.bf16.mxu0 0
    %1806 = vmatpush1.bf16.msra.mxu0 0
    %1807 = vmatprep.subr.bf16.mxu0 0
    %1808 = vmatpush1.bf16.msra.mxu0 0
    %1809 = vmatprep.subr.bf16.mxu0 0
    %1810 = vmatpush1.bf16.msra.mxu0 0
    %1811 = vmatprep.subr.bf16.mxu0 0
    %1812 = vmatpush1.bf16.msra.mxu0 0
    %1813 = vmatprep.mubr.bf16.mxu0 0
    %1814 = vmatmul.mubr.bf16.gmra.mrb[0].mxu0 %v1758
    %v1815 = vpop.f32.mrb[0].mxu0
    %v1816 = vadd.f32 0.0, %v1815
    %v1817 = vpop.f32.mrb[0].mxu0
    %v1818 = vpop.f32.mrb[0].mxu0
    %v1819 = vadd.f32 0.0, %v1818
    %v1820 = vpop.f32.mrb[0].mxu0
    %1821 = vmatprep.mubr.bf16.mxu0 0
    %1822 = vmatmul.mubr.bf16.gmra.mrb[0].mxu0 %v1761
    %v1823 = vpop.f32.mrb[0].mxu0
    %v1824 = vadd.f32 0.0, %v1823
    %v1825 = vpop.f32.mrb[0].mxu0
    %v1826 = vpop.f32.mrb[0].mxu0
    %v1827 = vadd.f32 0.0, %v1826
    %v1828 = vpop.f32.mrb[0].mxu0
    %1829 = vmatprep.mubr.bf16.mxu0 0
    %1830 = vmatmul.mubr.bf16.gmra.mrb[0].mxu0 %v1764
    %v1831 = vpop.f32.mrb[0].mxu0
    %v1832 = vadd.f32 0.0, %v1831
    %v1833 = vpop.f32.mrb[0].mxu0
    %v1834 = vpop.f32.mrb[0].mxu0
    %v1835 = vadd.f32 0.0, %v1834
    %v1836 = vpop.f32.mrb[0].mxu0
    %1837 = vmatprep.mubr.bf16.mxu0 0
    %1838 = vmatmul.mubr.bf16.gmra.mrb[0].mxu0 %v1767
    %v1839 = vpop.f32.mrb[0].mxu0
    %v1840 = vadd.f32 0.0, %v1839
    %v1841 = vpop.f32.mrb[0].mxu0
    %v1842 = vpop.f32.mrb[0].mxu0
    %v1843 = vadd.f32 0.0, %v1842
    %v1844 = vpop.f32.mrb[0].mxu0
    %1845 = vmatprep.mubr.bf16.mxu0 0
    %1846 = vmatmul.mubr.bf16.gmra.mrb[0].mxu0 %v1770
    %v1847 = vpop.f32.mrb[0].mxu0
    %v1848 = vadd.f32 0.0, %v1847
    %v1849 = vpop.f32.mrb[0].mxu0
    %v1850 = vpop.f32.mrb[0].mxu0
    %v1851 = vadd.f32 0.0, %v1850
    %v1852 = vpop.f32.mrb[0].mxu0
    %1853 = vmatprep.mubr.bf16.mxu0 0
    %1854 = vmatmul.mubr.bf16.gmra.mrb[0].mxu0 %v1773
    %v1855 = vpop.f32.mrb[0].mxu0
    %v1856 = vadd.f32 0.0, %v1855
    %v1857 = vpop.f32.mrb[0].mxu0
    %v1858 = vpop.f32.mrb[0].mxu0
    %v1859 = vadd.f32 0.0, %v1858
    %v1860 = vpop.f32.mrb[0].mxu0
    %1861 = vmatprep.mubr.bf16.mxu0 0
    %1862 = vmatmul.mubr.bf16.gmra.mrb[0].mxu0 %v1776
    %v1863 = vpop.f32.mrb[0].mxu0
    %v1864 = vadd.f32 0.0, %v1863
    %v1865 = vpop.f32.mrb[0].mxu0
    %v1866 = vpop.f32.mrb[0].mxu0
    %v1867 = vadd.f32 0.0, %v1866
    %v1868 = vpop.f32.mrb[0].mxu0
    %1869 = vmatprep.mubr.bf16.mxu0 0
    %1870 = vmatmul.mubr.bf16.gmra.mrb[0].mxu0 %v1779
    %v1871 = vpop.f32.mrb[0].mxu0
    %v1872 = vadd.f32 0.0, %v1871
    %v1873 = vpop.f32.mrb[0].mxu0
    %v1874 = vpop.f32.mrb[0].mxu0
    %v1875 = vadd.f32 0.0, %v1874
    %v1876 = vpop.f32.mrb[0].mxu0
    %1877 = vdwg.mxu0
    %v1878 = vsel %vm261, %v1816, 0.0
    %v1879 = vsel %vm261, %v1824, 0.0
    %v1880 = vadd.f32 %v1878, %v1879
    %v1881 = vsel %vm261, %v1832, 0.0
    %v1882 = vadd.f32 %v1880, %v1881
    %v1883 = vsel %vm261, %v1840, 0.0
    %v1884 = vadd.f32 %v1882, %v1883
    %v1885 = vsel %vm261, %v1848, 0.0
    %v1886 = vadd.f32 %v1884, %v1885
    %v1887 = vsel %vm261, %v1856, 0.0
    %v1888 = vadd.f32 %v1886, %v1887
    %v1889 = vsel %vm261, %v1864, 0.0
    %v1890 = vadd.f32 %v1888, %v1889
    %v1891 = vsel %vm261, %v1872, 0.0
    %v1892 = vadd.f32 %v1890, %v1891
    %v1893 = vsel %vm261, %v1819, 0.0
    %v1894 = vsel %vm261, %v1827, 0.0
    %v1895 = vadd.f32 %v1893, %v1894
    %v1896 = vsel %vm261, %v1835, 0.0
    %v1897 = vadd.f32 %v1895, %v1896
    %v1898 = vsel %vm261, %v1843, 0.0
    %v1899 = vadd.f32 %v1897, %v1898
    %v1900 = vsel %vm261, %v1851, 0.0
    %v1901 = vadd.f32 %v1899, %v1900
    %v1902 = vsel %vm261, %v1859, 0.0
    %v1903 = vadd.f32 %v1901, %v1902
    %v1904 = vsel %vm261, %v1867, 0.0
    %v1905 = vadd.f32 %v1903, %v1904
    %v1906 = vsel %vm261, %v1875, 0.0
    %v1907 = vadd.f32 %v1905, %v1906
    %s1908 = scalar_lea.vmem [#allocation9], 1
    %v1909 = vld [vmem:[%s1908] sm:$0x1]
    %v1911 = vlaneseq
    %v1912 = vshrl.u32 %v1911, 7
    %v1913 = vsub.s32 0, %v1912
    %v1914 = vrot.slane %v1909, %v1913
    %v1916 = vadd.f32 %v1892, %v1914
    %v1917 = vadd.f32 %v1907, %v1914
    %v1918 = vadd.f32 %v1187, %v1916
    %v1919 = vadd.f32 %v1188, %v1917
    %s1920 = scalar_lea.vmem [#allocation10], 1
    %v1921 = vld [vmem:[%s1920] sm:$0x1]
    %s1922 = scalar_lea.vmem [#allocation12], 1
    %v1923 = vld [vmem:[%s1922] sm:$0x1]
    %v1924 = vsel %vm261, %v1918, 0.0
    %1925 = vadd.xlane.f32.xlu0 %v1924
    %v1926 = vpop.xlane.xlu0 %1925
    %v1927 = vsel %vm261, %v1919, 0.0
    %1928 = vadd.xlane.f32.xlu0 %v1927
    %v1929 = vpop.xlane.xlu0 %1928
    %v1930 = vmul.f32 %v1926, %v936
    %v1931 = vmul.f32 %v1929, %v936
    %v1932 = vsub.f32 %v1918, %v1930
    %v1933 = vsub.f32 %v1919, %v1931
    %v1934 = vmul.f32 %v1932, %v1932
    %v1935 = vmul.f32 %v1933, %v1933
    %v1936 = vsel %vm261, %v1934, 0.0
    %1937 = vadd.xlane.f32.xlu0 %v1936
    %v1938 = vpop.xlane.xlu0 %1937
    %v1939 = vsel %vm261, %v1935, 0.0
    %1940 = vadd.xlane.f32.xlu0 %v1939
    %v1941 = vpop.xlane.xlu0 %1940
    %v1942 = vmul.f32 %v1938, %v936
    %v1943 = vmul.f32 %v1941, %v936
    %v1944 = vadd.f32 %v1942, 1e-05
    %v1945 = vadd.f32 %v1943, 1e-05
    %v1946 = vrsqrt.pop %v1944
    %v1947 = vrsqrt.pop %v1945
    %v1948 = vmul.f32 %v1932, %v1946
    %v1949 = vmul.f32 %v1933, %v1947
    %v1951 = vlaneseq
    %v1952 = vshrl.u32 %v1951, 7
    %v1953 = vsub.s32 0, %v1952
    %v1954 = vrot.slane %v1921, %v1953
    %v1956 = vmul.f32 %v1948, %v1954
    %v1957 = vmul.f32 %v1949, %v1954
    %v1959 = vlaneseq
    %v1960 = vshrl.u32 %v1959, 7
    %v1961 = vsub.s32 0, %v1960
    %v1962 = vrot.slane %v1923, %v1961
    %v1964 = vadd.f32 %v1956, %v1962
    %v1965 = vadd.f32 %v1957, %v1962
    %v1966 = vpack.c.bf16 %v1965, %v1964
    %s1967 = scalar_lea.vmem %s9, 32
    %v1968 = vld [vmem:[%s1967] sm:$0xf]
    %v1969 = vld [vmem:[%s1967 + $0x4] sm:$0xf]
    %v1970 = vld [vmem:[%s1967 + $0x8] sm:$0xf]
    %v1971 = vld [vmem:[%s1967 + $0xc] sm:$0xf]
    %v1972 = vld [vmem:[%s1967 + $0x10] sm:$0xf]
    %v1973 = vld [vmem:[%s1967 + $0x14] sm:$0xf]
    %v1974 = vld [vmem:[%s1967 + $0x18] sm:$0xf]
    %v1975 = vld [vmem:[%s1967 + $0x1c] sm:$0xf]
    %s1976 = scalar_lea.vmem %s10, 1
    %v1977 = vld [vmem:[%s1976] sm:$0x1]
    %v1979 = vlaneseq
    %v1980 = vshrl.u32 %v1979, 7
    %v1981 = vsub.s32 0, %v1980
    %v1982 = vrot.slane %v1977, %v1981
    %v1992 = vunpack.c.l.b16 %v1968
    %v1993 = vunpack.c.l.b16 %v1969
    %v1994 = vunpack.c.l.b16 %v1970
    %v1995 = vunpack.c.l.b16 %v1971
    %v1996 = vunpack.c.l.b16 %v1972
    %v1997 = vunpack.c.l.b16 %v1973
    %v1998 = vunpack.c.l.b16 %v1974
    %v1999 = vunpack.c.l.b16 %v1975
    %v2000 = vpack.c.b16 %v1993, %v1992
    %v2001 = vpack.c.b16 %v1995, %v1994
    %v2002 = vpack.c.b16 %v1997, %v1996
    %v2003 = vpack.c.b16 %v1999, %v1998
    %v2009 = vsel %vm261, %v1966, 0
    %2011 = vmatprep.subr.bf16.mxu0 0
    %2012 = vmatpush1.bf16.msra.mxu0 %v2000
    %2013 = vmatprep.subr.bf16.mxu0 0
    %2014 = vmatpush1.bf16.msra.mxu0 %v2001
    %2015 = vmatprep.subr.bf16.mxu0 0
    %2016 = vmatpush1.bf16.msra.mxu0 %v2002
    %2017 = vmatprep.subr.bf16.mxu0 0
    %2018 = vmatpush1.bf16.msra.mxu0 %v2003
    %2019 = vmatprep.subr.bf16.mxu0 0
    %2020 = vmatpush1.bf16.msra.mxu0 0
    %2021 = vmatprep.subr.bf16.mxu0 0
    %2022 = vmatpush1.bf16.msra.mxu0 0
    %2023 = vmatprep.subr.bf16.mxu0 0
    %2024 = vmatpush1.bf16.msra.mxu0 0
    %2025 = vmatprep.subr.bf16.mxu0 0
    %2026 = vmatpush1.bf16.msra.mxu0 0
    %2027 = vmatprep.subr.bf16.mxu0 0
    %2028 = vmatpush1.bf16.msra.mxu0 0
    %2029 = vmatprep.subr.bf16.mxu0 0
    %2030 = vmatpush1.bf16.msra.mxu0 0
    %2031 = vmatprep.subr.bf16.mxu0 0
    %2032 = vmatpush1.bf16.msra.mxu0 0
    %2033 = vmatprep.subr.bf16.mxu0 0
    %2034 = vmatpush1.bf16.msra.mxu0 0
    %2035 = vmatprep.subr.bf16.mxu0 0
    %2036 = vmatpush1.bf16.msra.mxu0 0
    %2037 = vmatprep.subr.bf16.mxu0 0
    %2038 = vmatpush1.bf16.msra.mxu0 0
    %2039 = vmatprep.subr.bf16.mxu0 0
    %2040 = vmatpush1.bf16.msra.mxu0 0
    %2041 = vmatprep.subr.bf16.mxu0 0
    %2042 = vmatpush1.bf16.msra.mxu0 0
    %2043 = vmatprep.mubr.bf16.mxu0 0
    %2044 = vmatmul.mubr.bf16.gmra.mrb[0].mxu0 %v2009
    %v2045 = vpop.f32.mrb[0].mxu0
    %v2046 = vadd.f32 %v1982, %v2045
    %v2047 = vpop.f32.mrb[0].mxu0
    %v2048 = vpop.f32.mrb[0].mxu0
    %v2049 = vadd.f32 %v1982, %v2048
    %v2050 = vpop.f32.mrb[0].mxu0
    %2051 = vdwg.mxu0
    %v2052 = vmax.f32 %v2046, 0.0
    %v2053 = vmax.f32 %v2049, 0.0
    %v2054 = vpack.c.bf16 %v2053, %v2052
    %s2055 = scalar_lea.vmem [#allocation13], 32
    %v2056 = vld [vmem:[%s2055] sm:$0xf]
    %v2057 = vld [vmem:[%s2055 + $0x4] sm:$0xf]
    %v2058 = vld [vmem:[%s2055 + $0x8] sm:$0xf]
    %v2059 = vld [vmem:[%s2055 + $0xc] sm:$0xf]
    %v2060 = vld [vmem:[%s2055 + $0x10] sm:$0xf]
    %v2061 = vld [vmem:[%s2055 + $0x14] sm:$0xf]
    %v2062 = vld [vmem:[%s2055 + $0x18] sm:$0xf]
    %v2063 = vld [vmem:[%s2055 + $0x1c] sm:$0xf]
    %s2064 = scalar_lea.vmem %s12, 1
    %v2065 = vld [vmem:[%s2064] sm:$0x1]
    %v2067 = vlaneseq
    %v2068 = vshrl.u32 %v2067, 7
    %v2069 = vsub.s32 0, %v2068
    %v2070 = vrot.slane %v2065, %v2069
    %v2080 = vunpack.c.l.b16 %v2056
    %v2081 = vunpack.c.l.b16 %v2057
    %v2082 = vunpack.c.l.b16 %v2058
    %v2083 = vunpack.c.l.b16 %v2059
    %v2084 = vunpack.c.l.b16 %v2060
    %v2085 = vunpack.c.l.b16 %v2061
    %v2086 = vunpack.c.l.b16 %v2062
    %v2087 = vunpack.c.l.b16 %v2063
    %v2088 = vpack.c.b16 %v2081, %v2080
    %v2089 = vpack.c.b16 %v2083, %v2082
    %v2090 = vpack.c.b16 %v2085, %v2084
    %v2091 = vpack.c.b16 %v2087, %v2086
    %v2097 = vsel %vm261, %v2054, 0
    %2099 = vmatprep.subr.bf16.mxu0 0
    %2100 = vmatpush1.bf16.msra.mxu0 %v2088
    %2101 = vmatprep.subr.bf16.mxu0 0
    %2102 = vmatpush1.bf16.msra.mxu0 %v2089
    %2103 = vmatprep.subr.bf16.mxu0 0
    %2104 = vmatpush1.bf16.msra.mxu0 %v2090
    %2105 = vmatprep.subr.bf16.mxu0 0
    %2106 = vmatpush1.bf16.msra.mxu0 %v2091
    %2107 = vmatprep.subr.bf16.mxu0 0
    %2108 = vmatpush1.bf16.msra.mxu0 0
    %2109 = vmatprep.subr.bf16.mxu0 0
    %2110 = vmatpush1.bf16.msra.mxu0 0
    %2111 = vmatprep.subr.bf16.mxu0 0
    %2112 = vmatpush1.bf16.msra.mxu0 0
    %2113 = vmatprep.subr.bf16.mxu0 0
    %2114 = vmatpush1.bf16.msra.mxu0 0
    %2115 = vmatprep.subr.bf16.mxu0 0
    %2116 = vmatpush1.bf16.msra.mxu0 0
    %2117 = vmatprep.subr.bf16.mxu0 0
    %2118 = vmatpush1.bf16.msra.mxu0 0
    %2119 = vmatprep.subr.bf16.mxu0 0
    %2120 = vmatpush1.bf16.msra.mxu0 0
    %2121 = vmatprep.subr.bf16.mxu0 0
    %2122 = vmatpush1.bf16.msra.mxu0 0
    %2123 = vmatprep.subr.bf16.mxu0 0
    %2124 = vmatpush1.bf16.msra.mxu0 0
    %2125 = vmatprep.subr.bf16.mxu0 0
    %2126 = vmatpush1.bf16.msra.mxu0 0
    %2127 = vmatprep.subr.bf16.mxu0 0
    %2128 = vmatpush1.bf16.msra.mxu0 0
    %2129 = vmatprep.subr.bf16.mxu0 0
    %2130 = vmatpush1.bf16.msra.mxu0 0
    %2131 = vmatprep.mubr.bf16.mxu0 0
    %2132 = vmatmul.mubr.bf16.gmra.mrb[0].mxu0 %v2097
    %v2133 = vpop.f32.mrb[0].mxu0
    %v2134 = vadd.f32 %v2070, %v2133
    %v2135 = vpop.f32.mrb[0].mxu0
    %v2136 = vpop.f32.mrb[0].mxu0
    %v2137 = vadd.f32 %v2070, %v2136
    %v2138 = vpop.f32.mrb[0].mxu0
    %2139 = vdwg.mxu0
    %v2140 = vadd.f32 %v1964, %v2134
    %v2141 = vadd.f32 %v1965, %v2137
    %s2142 = scalar_lea.vmem %s13, 1
    %v2143 = vld [vmem:[%s2142] sm:$0x1]
    %s2144 = scalar_lea.vmem %s14, 1
    %v2145 = vld [vmem:[%s2144] sm:$0x1]
    %v2146 = vsel %vm261, %v2140, 0.0
    %2147 = vadd.xlane.f32.xlu0 %v2146
    %v2148 = vpop.xlane.xlu0 %2147
    %v2149 = vsel %vm261, %v2141, 0.0
    %2150 = vadd.xlane.f32.xlu0 %v2149
    %v2151 = vpop.xlane.xlu0 %2150
    %v2152 = vmul.f32 %v2148, %v936
    %v2153 = vmul.f32 %v2151, %v936
    %v2154 = vsub.f32 %v2140, %v2152
    %v2155 = vsub.f32 %v2141, %v2153
    %v2156 = vmul.f32 %v2154, %v2154
    %v2157 = vmul.f32 %v2155, %v2155
    %v2158 = vsel %vm261, %v2156, 0.0
    %2159 = vadd.xlane.f32.xlu0 %v2158
    %v2160 = vpop.xlane.xlu0 %2159
    %v2161 = vsel %vm261, %v2157, 0.0
    %2162 = vadd.xlane.f32.xlu0 %v2161
    %v2163 = vpop.xlane.xlu0 %2162
    %v2164 = vmul.f32 %v2160, %v936
    %v2165 = vmul.f32 %v2163, %v936
    %v2166 = vadd.f32 %v2164, 1e-05
    %v2167 = vadd.f32 %v2165, 1e-05
    %v2168 = vrsqrt.pop %v2166
    %v2169 = vrsqrt.pop %v2167
    %v2170 = vmul.f32 %v2154, %v2168
    %v2171 = vmul.f32 %v2155, %v2169
    %v2173 = vlaneseq
    %v2174 = vshrl.u32 %v2173, 7
    %v2175 = vsub.s32 0, %v2174
    %v2176 = vrot.slane %v2143, %v2175
    %v2178 = vmul.f32 %v2170, %v2176
    %v2179 = vmul.f32 %v2171, %v2176
    %v2181 = vlaneseq
    %v2182 = vshrl.u32 %v2181, 7
    %v2183 = vsub.s32 0, %v2182
    %v2184 = vrot.slane %v2145, %v2183
    %v2186 = vadd.f32 %v2178, %v2184
    %v2187 = vadd.f32 %v2179, %v2184
    %v2188 = vpack.c.bf16 %v2187, %v2186
    %s2189 = scalar_lea.vmem [#allocation4], 128
    %v2190 = vld [vmem:[%s2189] sm:$0xff]
    %v2191 = vld [vmem:[%s2189 + $0x8] sm:$0xff]
    %v2192 = vld [vmem:[%s2189 + $0x10] sm:$0xff]
    %v2193 = vld [vmem:[%s2189 + $0x18] sm:$0xff]
    %v2194 = vld [vmem:[%s2189 + $0x20] sm:$0xff]
    %v2195 = vld [vmem:[%s2189 + $0x28] sm:$0xff]
    %v2196 = vld [vmem:[%s2189 + $0x30] sm:$0xff]
    %v2197 = vld [vmem:[%s2189 + $0x38] sm:$0xff]
    %s2198 = scalar_lea.vmem [#allocation6], 4
    %v2199 = vld [vmem:[%s2198] sm:$0x3]
    %v2201 = vlaneseq
    %v2202 = vshrl.u32 %v2201, 7
    %v2203 = vsub.s32 0, %v2202
    %v2204 = vrot.slane %v2199, %v2203
    %v2205 = vlaneseq
    %v2206 = vshrl.u32 %v2205, 7
    %v2207 = vsub.s32 1, %v2206
    %v2208 = vrot.slane %v2199, %v2207
    %v2219 = vunpack.c.l.b16 %v2190
    %v2220 = vunpack.c.h.b16 %v2190
    %v2221 = vunpack.c.l.b16 %v2191
    %v2222 = vunpack.c.h.b16 %v2191
    %v2223 = vunpack.c.l.b16 %v2192
    %v2224 = vunpack.c.h.b16 %v2192
    %v2225 = vunpack.c.l.b16 %v2193
    %v2226 = vunpack.c.h.b16 %v2193
    %v2227 = vunpack.c.l.b16 %v2194
    %v2228 = vunpack.c.h.b16 %v2194
    %v2229 = vunpack.c.l.b16 %v2195
    %v2230 = vunpack.c.h.b16 %v2195
    %v2231 = vunpack.c.l.b16 %v2196
    %v2232 = vunpack.c.h.b16 %v2196
    %v2233 = vunpack.c.l.b16 %v2197
    %v2234 = vunpack.c.h.b16 %v2197
    %v2235 = vpack.c.b16 %v2221, %v2219
    %v2236 = vpack.c.b16 %v2222, %v2220
    %v2237 = vpack.c.b16 %v2225, %v2223
    %v2238 = vpack.c.b16 %v2226, %v2224
    %v2239 = vpack.c.b16 %v2229, %v2227
    %v2240 = vpack.c.b16 %v2230, %v2228
    %v2241 = vpack.c.b16 %v2233, %v2231
    %v2242 = vpack.c.b16 %v2234, %v2232
    %v2252 = vsel %vm261, %v2188, 0
    %2254 = vmatprep.subr.bf16.mxu0 %v2236
    %2255 = vmatpush1.bf16.msra.mxu0 %v2235
    %2256 = vmatprep.subr.bf16.mxu0 %v2238
    %2257 = vmatpush1.bf16.msra.mxu0 %v2237
    %2258 = vmatprep.subr.bf16.mxu0 %v2240
    %2259 = vmatpush1.bf16.msra.mxu0 %v2239
    %2260 = vmatprep.subr.bf16.mxu0 %v2242
    %2261 = vmatpush1.bf16.msra.mxu0 %v2241
    %2262 = vmatprep.subr.bf16.mxu0 0
    %2263 = vmatpush1.bf16.msra.mxu0 0
    %2264 = vmatprep.subr.bf16.mxu0 0
    %2265 = vmatpush1.bf16.msra.mxu0 0
    %2266 = vmatprep.subr.bf16.mxu0 0
    %2267 = vmatpush1.bf16.msra.mxu0 0
    %2268 = vmatprep.subr.bf16.mxu0 0
    %2269 = vmatpush1.bf16.msra.mxu0 0
    %2270 = vmatprep.subr.bf16.mxu0 0
    %2271 = vmatpush1.bf16.msra.mxu0 0
    %2272 = vmatprep.subr.bf16.mxu0 0
    %2273 = vmatpush1.bf16.msra.mxu0 0
    %2274 = vmatprep.subr.bf16.mxu0 0
    %2275 = vmatpush1.bf16.msra.mxu0 0
    %2276 = vmatprep.subr.bf16.mxu0 0
    %2277 = vmatpush1.bf16.msra.mxu0 0
    %2278 = vmatprep.subr.bf16.mxu0 0
    %2279 = vmatpush1.bf16.msra.mxu0 0
    %2280 = vmatprep.subr.bf16.mxu0 0
    %2281 = vmatpush1.bf16.msra.mxu0 0
    %2282 = vmatprep.subr.bf16.mxu0 0
    %2283 = vmatpush1.bf16.msra.mxu0 0
    %2284 = vmatprep.subr.bf16.mxu0 0
    %2285 = vmatpush1.bf16.msra.mxu0 0
    %2286 = vmatprep.mubr.bf16.mxu0 0
    %2287 = vmatmul.mubr.bf16.gmra.mrb[0].mxu0 %v2252
    %v2288 = vpop.f32.mrb[0].mxu0
    %v2289 = vadd.f32 %v2204, %v2288
    %v2290 = vpop.f32.mrb[0].mxu0
    %v2291 = vadd.f32 %v2208, %v2290
    %v2292 = vpop.f32.mrb[0].mxu0
    %v2293 = vadd.f32 %v2204, %v2292
    %v2294 = vpop.f32.mrb[0].mxu0
    %v2295 = vadd.f32 %v2208, %v2294
    %2296 = vdwg.mxu0
    %v2297 = vmul.f32 %v2289, %v184
    %v2298 = vmul.f32 %v2293, %v185
    %v2299 = vmul.f32 %v2289, %v186
    %v2300 = vmul.f32 %v2293, %v187
    %v2301 = vmul.f32 %v2289, %v188
    %v2302 = vmul.f32 %v2293, %v189
    %v2303 = vmul.f32 %v2289, %v190
    %v2304 = vmul.f32 %v2293, %v191
    %v2305 = vmul.f32 %v2289, %v192
    %v2306 = vmul.f32 %v2293, %v193
    %v2307 = vmul.f32 %v2289, %v194
    %v2308 = vmul.f32 %v2293, %v195
    %v2309 = vmul.f32 %v2289, %v196
    %v2310 = vmul.f32 %v2293, %v197
    %v2311 = vmul.f32 %v2289, %v198
    %v2312 = vmul.f32 %v2293, %v199
    %v2313 = vpack.c.bf16 %v2298, %v2297
    %v2314 = vpack.c.bf16 %v2300, %v2299
    %v2315 = vpack.c.bf16 %v2302, %v2301
    %v2316 = vpack.c.bf16 %v2304, %v2303
    %v2317 = vpack.c.bf16 %v2306, %v2305
    %v2318 = vpack.c.bf16 %v2308, %v2307
    %v2319 = vpack.c.bf16 %v2310, %v2309
    %v2320 = vpack.c.bf16 %v2312, %v2311
    %v2321 = vpack.c.bf16 %v2293, %v2289
    %2323 = vrot.lane.b32.xlu0 %v2321, 64
    %v2324 = vpop.permute.xlu0 %2323
    %v2326 = vsel %vm261, %v2313, 0
    %v2329 = vsel %vm261, %v2314, 0
    %v2332 = vsel %vm261, %v2315, 0
    %v2335 = vsel %vm261, %v2316, 0
    %v2338 = vsel %vm261, %v2317, 0
    %v2341 = vsel %vm261, %v2318, 0
    %v2344 = vsel %vm261, %v2319, 0
    %v2347 = vsel %vm261, %v2320, 0
    %v2350 = vsel %vm261, %v2324, 0
    %2352 = vmatprep.subr.bf16.mxu0 0
    %2353 = vmatpush1.bf16.xpose.msra.mxu0 %v2350
    %2354 = vmatprep.subr.bf16.mxu0 0
    %2355 = vmatpush1.bf16.xpose.msra.mxu0 %v2350
    %2356 = vmatprep.subr.bf16.mxu0 0
    %2357 = vmatpush1.bf16.xpose.msra.mxu0 %v2350
    %2358 = vmatprep.subr.bf16.mxu0 0
    %2359 = vmatpush1.bf16.xpose.msra.mxu0 %v2350
    %2360 = vmatprep.subr.bf16.mxu0 0
    %2361 = vmatpush1.bf16.xpose.msra.mxu0 %v2350
    %2362 = vmatprep.subr.bf16.mxu0 0
    %2363 = vmatpush1.bf16.xpose.msra.mxu0 %v2350
    %2364 = vmatprep.subr.bf16.mxu0 0
    %2365 = vmatpush1.bf16.xpose.msra.mxu0 %v2350
    %2366 = vmatprep.subr.bf16.mxu0 0
    %2367 = vmatpush1.bf16.xpose.msra.mxu0 %v2350
    %2368 = vmatprep.subr.bf16.mxu0 0
    %2369 = vmatpush1.bf16.xpose.msra.mxu0 0
    %2370 = vmatprep.subr.bf16.mxu0 0
    %2371 = vmatpush1.bf16.xpose.msra.mxu0 0
    %2372 = vmatprep.subr.bf16.mxu0 0
    %2373 = vmatpush1.bf16.xpose.msra.mxu0 0
    %2374 = vmatprep.subr.bf16.mxu0 0
    %2375 = vmatpush1.bf16.xpose.msra.mxu0 0
    %2376 = vmatprep.subr.bf16.mxu0 0
    %2377 = vmatpush1.bf16.xpose.msra.mxu0 0
    %2378 = vmatprep.subr.bf16.mxu0 0
    %2379 = vmatpush1.bf16.xpose.msra.mxu0 0
    %2380 = vmatprep.subr.bf16.mxu0 0
    %2381 = vmatpush1.bf16.xpose.msra.mxu0 0
    %2382 = vmatprep.subr.bf16.mxu0 0
    %2383 = vmatpush1.bf16.xpose.msra.mxu0 0
    %2384 = vmatprep.mubr.bf16.mxu0 0
    %2385 = vmatmul.mubr.bf16.gmra.mrb[0].mxu0 %v2326
    %v2386 = vpop.f32.mrb[0].mxu0
    %v2387 = vadd.f32 %v168, %v2386
    %v2388 = vpop.f32.mrb[0].mxu0
    %v2389 = vpop.f32.mrb[0].mxu0
    %v2390 = vadd.f32 %v169, %v2389
    %v2391 = vpop.f32.mrb[0].mxu0
    %2392 = vmatprep.mubr.bf16.mxu0 0
    %2393 = vmatmul.mubr.bf16.gmra.mrb[0].mxu0 %v2329
    %v2394 = vpop.f32.mrb[0].mxu0
    %v2395 = vadd.f32 %v170, %v2394
    %v2396 = vpop.f32.mrb[0].mxu0
    %v2397 = vpop.f32.mrb[0].mxu0
    %v2398 = vadd.f32 %v171, %v2397
    %v2399 = vpop.f32.mrb[0].mxu0
    %2400 = vmatprep.mubr.bf16.mxu0 0
    %2401 = vmatmul.mubr.bf16.gmra.mrb[0].mxu0 %v2332
    %v2402 = vpop.f32.mrb[0].mxu0
    %v2403 = vadd.f32 %v172, %v2402
    %v2404 = vpop.f32.mrb[0].mxu0
    %v2405 = vpop.f32.mrb[0].mxu0
    %v2406 = vadd.f32 %v173, %v2405
    %v2407 = vpop.f32.mrb[0].mxu0
    %2408 = vmatprep.mubr.bf16.mxu0 0
    %2409 = vmatmul.mubr.bf16.gmra.mrb[0].mxu0 %v2335
    %v2410 = vpop.f32.mrb[0].mxu0
    %v2411 = vadd.f32 %v174, %v2410
    %v2412 = vpop.f32.mrb[0].mxu0
    %v2413 = vpop.f32.mrb[0].mxu0
    %v2414 = vadd.f32 %v175, %v2413
    %v2415 = vpop.f32.mrb[0].mxu0
    %2416 = vmatprep.mubr.bf16.mxu0 0
    %2417 = vmatmul.mubr.bf16.gmra.mrb[0].mxu0 %v2338
    %v2418 = vpop.f32.mrb[0].mxu0
    %v2419 = vadd.f32 %v176, %v2418
    %v2420 = vpop.f32.mrb[0].mxu0
    %v2421 = vpop.f32.mrb[0].mxu0
    %v2422 = vadd.f32 %v177, %v2421
    %v2423 = vpop.f32.mrb[0].mxu0
    %2424 = vmatprep.mubr.bf16.mxu0 0
    %2425 = vmatmul.mubr.bf16.gmra.mrb[0].mxu0 %v2341
    %v2426 = vpop.f32.mrb[0].mxu0
    %v2427 = vadd.f32 %v178, %v2426
    %v2428 = vpop.f32.mrb[0].mxu0
    %v2429 = vpop.f32.mrb[0].mxu0
    %v2430 = vadd.f32 %v179, %v2429
    %v2431 = vpop.f32.mrb[0].mxu0
    %2432 = vmatprep.mubr.bf16.mxu0 0
    %2433 = vmatmul.mubr.bf16.gmra.mrb[0].mxu0 %v2344
    %v2434 = vpop.f32.mrb[0].mxu0
    %v2435 = vadd.f32 %v180, %v2434
    %v2436 = vpop.f32.mrb[0].mxu0
    %v2437 = vpop.f32.mrb[0].mxu0
    %v2438 = vadd.f32 %v181, %v2437
    %v2439 = vpop.f32.mrb[0].mxu0
    %2440 = vmatprep.mubr.bf16.mxu0 0
    %2441 = vmatmul.mubr.bf16.gmra.mrb[0].mxu0 %v2347
    %v2442 = vpop.f32.mrb[0].mxu0
    %v2443 = vadd.f32 %v182, %v2442
    %v2444 = vpop.f32.mrb[0].mxu0
    %v2445 = vpop.f32.mrb[0].mxu0
    %v2446 = vadd.f32 %v183, %v2445
    %v2447 = vpop.f32.mrb[0].mxu0
    %2448 = vdwg.mxu0
    %2449 = vmax.xlane.f32.xlu0 %v2387
    %v2450 = vpop.xlane.xlu0 %2449
    %2451 = vmax.xlane.f32.xlu0 %v2390
    %v2452 = vpop.xlane.xlu0 %2451
    %2453 = vmax.xlane.f32.xlu0 %v2395
    %v2454 = vpop.xlane.xlu0 %2453
    %2455 = vmax.xlane.f32.xlu0 %v2398
    %v2456 = vpop.xlane.xlu0 %2455
    %2457 = vmax.xlane.f32.xlu0 %v2403
    %v2458 = vpop.xlane.xlu0 %2457
    %2459 = vmax.xlane.f32.xlu0 %v2406
    %v2460 = vpop.xlane.xlu0 %2459
    %2461 = vmax.xlane.f32.xlu0 %v2411
    %v2462 = vpop.xlane.xlu0 %2461
    %2463 = vmax.xlane.f32.xlu0 %v2414
    %v2464 = vpop.xlane.xlu0 %2463
    %2465 = vmax.xlane.f32.xlu0 %v2419
    %v2466 = vpop.xlane.xlu0 %2465
    %2467 = vmax.xlane.f32.xlu0 %v2422
    %v2468 = vpop.xlane.xlu0 %2467
    %2469 = vmax.xlane.f32.xlu0 %v2427
    %v2470 = vpop.xlane.xlu0 %2469
    %2471 = vmax.xlane.f32.xlu0 %v2430
    %v2472 = vpop.xlane.xlu0 %2471
    %2473 = vmax.xlane.f32.xlu0 %v2435
    %v2474 = vpop.xlane.xlu0 %2473
    %2475 = vmax.xlane.f32.xlu0 %v2438
    %v2476 = vpop.xlane.xlu0 %2475
    %2477 = vmax.xlane.f32.xlu0 %v2443
    %v2478 = vpop.xlane.xlu0 %2477
    %2479 = vmax.xlane.f32.xlu0 %v2446
    %v2480 = vpop.xlane.xlu0 %2479
    %v2481 = vsub.f32 %v2387, %v2450
    %v2482 = vsub.f32 %v2390, %v2452
    %v2483 = vsub.f32 %v2395, %v2454
    %v2484 = vsub.f32 %v2398, %v2456
    %v2485 = vsub.f32 %v2403, %v2458
    %v2486 = vsub.f32 %v2406, %v2460
    %v2487 = vsub.f32 %v2411, %v2462
    %v2488 = vsub.f32 %v2414, %v2464
    %v2489 = vsub.f32 %v2419, %v2466
    %v2490 = vsub.f32 %v2422, %v2468
    %v2491 = vsub.f32 %v2427, %v2470
    %v2492 = vsub.f32 %v2430, %v2472
    %v2493 = vsub.f32 %v2435, %v2474
    %v2494 = vsub.f32 %v2438, %v2476
    %v2495 = vsub.f32 %v2443, %v2478
    %v2496 = vsub.f32 %v2446, %v2480
    %v2497 = vmul.f32 %v2481, 1.442695
    %v2498 = vpow.pop %v2497
    %v2499 = vmul.f32 %v2482, 1.442695
    %v2500 = vpow.pop %v2499
    %v2501 = vmul.f32 %v2483, 1.442695
    %v2502 = vpow.pop %v2501
    %v2503 = vmul.f32 %v2484, 1.442695
    %v2504 = vpow.pop %v2503
    %v2505 = vmul.f32 %v2485, 1.442695
    %v2506 = vpow.pop %v2505
    %v2507 = vmul.f32 %v2486, 1.442695
    %v2508 = vpow.pop %v2507
    %v2509 = vmul.f32 %v2487, 1.442695
    %v2510 = vpow.pop %v2509
    %v2511 = vmul.f32 %v2488, 1.442695
    %v2512 = vpow.pop %v2511
    %v2513 = vmul.f32 %v2489, 1.442695
    %v2514 = vpow.pop %v2513
    %v2515 = vmul.f32 %v2490, 1.442695
    %v2516 = vpow.pop %v2515
    %v2517 = vmul.f32 %v2491, 1.442695
    %v2518 = vpow.pop %v2517
    %v2519 = vmul.f32 %v2492, 1.442695
    %v2520 = vpow.pop %v2519
    %v2521 = vmul.f32 %v2493, 1.442695
    %v2522 = vpow.pop %v2521
    %v2523 = vmul.f32 %v2494, 1.442695
    %v2524 = vpow.pop %v2523
    %v2525 = vmul.f32 %v2495, 1.442695
    %v2526 = vpow.pop %v2525
    %v2527 = vmul.f32 %v2496, 1.442695
    %v2528 = vpow.pop %v2527
    %2529 = vadd.xlane.f32.xlu0 %v2498
    %v2530 = vpop.xlane.xlu0 %2529
    %2531 = vadd.xlane.f32.xlu0 %v2500
    %v2532 = vpop.xlane.xlu0 %2531
    %2533 = vadd.xlane.f32.xlu0 %v2502
    %v2534 = vpop.xlane.xlu0 %2533
    %2535 = vadd.xlane.f32.xlu0 %v2504
    %v2536 = vpop.xlane.xlu0 %2535
    %2537 = vadd.xlane.f32.xlu0 %v2506
    %v2538 = vpop.xlane.xlu0 %2537
    %2539 = vadd.xlane.f32.xlu0 %v2508
    %v2540 = vpop.xlane.xlu0 %2539
    %2541 = vadd.xlane.f32.xlu0 %v2510
    %v2542 = vpop.xlane.xlu0 %2541
    %2543 = vadd.xlane.f32.xlu0 %v2512
    %v2544 = vpop.xlane.xlu0 %2543
    %2545 = vadd.xlane.f32.xlu0 %v2514
    %v2546 = vpop.xlane.xlu0 %2545
    %2547 = vadd.xlane.f32.xlu0 %v2516
    %v2548 = vpop.xlane.xlu0 %2547
    %2549 = vadd.xlane.f32.xlu0 %v2518
    %v2550 = vpop.xlane.xlu0 %2549
    %2551 = vadd.xlane.f32.xlu0 %v2520
    %v2552 = vpop.xlane.xlu0 %2551
    %2553 = vadd.xlane.f32.xlu0 %v2522
    %v2554 = vpop.xlane.xlu0 %2553
    %2555 = vadd.xlane.f32.xlu0 %v2524
    %v2556 = vpop.xlane.xlu0 %2555
    %2557 = vadd.xlane.f32.xlu0 %v2526
    %v2558 = vpop.xlane.xlu0 %2557
    %2559 = vadd.xlane.f32.xlu0 %v2528
    %v2560 = vpop.xlane.xlu0 %2559
    %v2561 = vrcp.pop %v2530
    %v2562 = vrcp.pop %v2532
    %v2563 = vrcp.pop %v2534
    %v2564 = vrcp.pop %v2536
    %v2565 = vrcp.pop %v2538
    %v2566 = vrcp.pop %v2540
    %v2567 = vrcp.pop %v2542
    %v2568 = vrcp.pop %v2544
    %v2569 = vrcp.pop %v2546
    %v2570 = vrcp.pop %v2548
    %v2571 = vrcp.pop %v2550
    %v2572 = vrcp.pop %v2552
    %v2573 = vrcp.pop %v2554
    %v2574 = vrcp.pop %v2556
    %v2575 = vrcp.pop %v2558
    %v2576 = vrcp.pop %v2560
    %v2577 = vmul.f32 %v2498, %v2561
    %v2578 = vmul.f32 %v2500, %v2562
    %v2579 = vmul.f32 %v2502, %v2563
    %v2580 = vmul.f32 %v2504, %v2564
    %v2581 = vmul.f32 %v2506, %v2565
    %v2582 = vmul.f32 %v2508, %v2566
    %v2583 = vmul.f32 %v2510, %v2567
    %v2584 = vmul.f32 %v2512, %v2568
    %v2585 = vmul.f32 %v2514, %v2569
    %v2586 = vmul.f32 %v2516, %v2570
    %v2587 = vmul.f32 %v2518, %v2571
    %v2588 = vmul.f32 %v2520, %v2572
    %v2589 = vmul.f32 %v2522, %v2573
    %v2590 = vmul.f32 %v2524, %v2574
    %v2591 = vmul.f32 %v2526, %v2575
    %v2592 = vmul.f32 %v2528, %v2576
    %v2593 = vpack.c.bf16 %v2578, %v2577
    %v2594 = vpack.c.bf16 %v2580, %v2579
    %v2595 = vpack.c.bf16 %v2582, %v2581
    %v2596 = vpack.c.bf16 %v2584, %v2583
    %v2597 = vpack.c.bf16 %v2586, %v2585
    %v2598 = vpack.c.bf16 %v2588, %v2587
    %v2599 = vpack.c.bf16 %v2590, %v2589
    %v2600 = vpack.c.bf16 %v2592, %v2591
    %v2601 = vpack.c.bf16 %v2295, %v2291
    %2602 = vmatprep.subr.bf16.mxu0 0
    %2603 = vmatpush1.bf16.msra.mxu0 %v2601
    %2604 = vmatprep.subr.bf16.mxu0 0
    %2605 = vmatpush1.bf16.msra.mxu0 %v2601
    %2606 = vmatprep.subr.bf16.mxu0 0
    %2607 = vmatpush1.bf16.msra.mxu0 %v2601
    %2608 = vmatprep.subr.bf16.mxu0 0
    %2609 = vmatpush1.bf16.msra.mxu0 %v2601
    %2610 = vmatprep.subr.bf16.mxu0 0
    %2611 = vmatpush1.bf16.msra.mxu0 %v2601
    %2612 = vmatprep.subr.bf16.mxu0 0
    %2613 = vmatpush1.bf16.msra.mxu0 %v2601
    %2614 = vmatprep.subr.bf16.mxu0 0
    %2615 = vmatpush1.bf16.msra.mxu0 %v2601
    %2616 = vmatprep.subr.bf16.mxu0 0
    %2617 = vmatpush1.bf16.msra.mxu0 %v2601
    %2618 = vmatprep.subr.bf16.mxu0 0
    %2619 = vmatpush1.bf16.msra.mxu0 0
    %2620 = vmatprep.subr.bf16.mxu0 0
    %2621 = vmatpush1.bf16.msra.mxu0 0
    %2622 = vmatprep.subr.bf16.mxu0 0
    %2623 = vmatpush1.bf16.msra.mxu0 0
    %2624 = vmatprep.subr.bf16.mxu0 0
    %2625 = vmatpush1.bf16.msra.mxu0 0
    %2626 = vmatprep.subr.bf16.mxu0 0
    %2627 = vmatpush1.bf16.msra.mxu0 0
    %2628 = vmatprep.subr.bf16.mxu0 0
    %2629 = vmatpush1.bf16.msra.mxu0 0
    %2630 = vmatprep.subr.bf16.mxu0 0
    %2631 = vmatpush1.bf16.msra.mxu0 0
    %2632 = vmatprep.subr.bf16.mxu0 0
    %2633 = vmatpush1.bf16.msra.mxu0 0
    %2634 = vmatprep.mubr.bf16.mxu0 0
    %2635 = vmatmul.mubr.bf16.gmra.mrb[0].mxu0 %v2593
    %v2636 = vpop.f32.mrb[0].mxu0
    %v2637 = vadd.f32 0.0, %v2636
    %v2638 = vpop.f32.mrb[0].mxu0
    %v2639 = vpop.f32.mrb[0].mxu0
    %v2640 = vadd.f32 0.0, %v2639
    %v2641 = vpop.f32.mrb[0].mxu0
    %2642 = vmatprep.mubr.bf16.mxu0 0
    %2643 = vmatmul.mubr.bf16.gmra.mrb[0].mxu0 %v2594
    %v2644 = vpop.f32.mrb[0].mxu0
    %v2645 = vadd.f32 0.0, %v2644
    %v2646 = vpop.f32.mrb[0].mxu0
    %v2647 = vpop.f32.mrb[0].mxu0
    %v2648 = vadd.f32 0.0, %v2647
    %v2649 = vpop.f32.mrb[0].mxu0
    %2650 = vmatprep.mubr.bf16.mxu0 0
    %2651 = vmatmul.mubr.bf16.gmra.mrb[0].mxu0 %v2595
    %v2652 = vpop.f32.mrb[0].mxu0
    %v2653 = vadd.f32 0.0, %v2652
    %v2654 = vpop.f32.mrb[0].mxu0
    %v2655 = vpop.f32.mrb[0].mxu0
    %v2656 = vadd.f32 0.0, %v2655
    %v2657 = vpop.f32.mrb[0].mxu0
    %2658 = vmatprep.mubr.bf16.mxu0 0
    %2659 = vmatmul.mubr.bf16.gmra.mrb[0].mxu0 %v2596
    %v2660 = vpop.f32.mrb[0].mxu0
    %v2661 = vadd.f32 0.0, %v2660
    %v2662 = vpop.f32.mrb[0].mxu0
    %v2663 = vpop.f32.mrb[0].mxu0
    %v2664 = vadd.f32 0.0, %v2663
    %v2665 = vpop.f32.mrb[0].mxu0
    %2666 = vmatprep.mubr.bf16.mxu0 0
    %2667 = vmatmul.mubr.bf16.gmra.mrb[0].mxu0 %v2597
    %v2668 = vpop.f32.mrb[0].mxu0
    %v2669 = vadd.f32 0.0, %v2668
    %v2670 = vpop.f32.mrb[0].mxu0
    %v2671 = vpop.f32.mrb[0].mxu0
    %v2672 = vadd.f32 0.0, %v2671
    %v2673 = vpop.f32.mrb[0].mxu0
    %2674 = vmatprep.mubr.bf16.mxu0 0
    %2675 = vmatmul.mubr.bf16.gmra.mrb[0].mxu0 %v2598
    %v2676 = vpop.f32.mrb[0].mxu0
    %v2677 = vadd.f32 0.0, %v2676
    %v2678 = vpop.f32.mrb[0].mxu0
    %v2679 = vpop.f32.mrb[0].mxu0
    %v2680 = vadd.f32 0.0, %v2679
    %v2681 = vpop.f32.mrb[0].mxu0
    %2682 = vmatprep.mubr.bf16.mxu0 0
    %2683 = vmatmul.mubr.bf16.gmra.mrb[0].mxu0 %v2599
    %v2684 = vpop.f32.mrb[0].mxu0
    %v2685 = vadd.f32 0.0, %v2684
    %v2686 = vpop.f32.mrb[0].mxu0
    %v2687 = vpop.f32.mrb[0].mxu0
    %v2688 = vadd.f32 0.0, %v2687
    %v2689 = vpop.f32.mrb[0].mxu0
    %2690 = vmatprep.mubr.bf16.mxu0 0
    %2691 = vmatmul.mubr.bf16.gmra.mrb[0].mxu0 %v2600
    %v2692 = vpop.f32.mrb[0].mxu0
    %v2693 = vadd.f32 0.0, %v2692
    %v2694 = vpop.f32.mrb[0].mxu0
    %v2695 = vpop.f32.mrb[0].mxu0
    %v2696 = vadd.f32 0.0, %v2695
    %v2697 = vpop.f32.mrb[0].mxu0
    %2698 = vdwg.mxu0
    %v2699 = vmul.f32 %v2637, %v184
    %v2700 = vmul.f32 %v2640, %v185
    %v2701 = vmul.f32 %v2645, %v186
    %v2702 = vmul.f32 %v2648, %v187
    %v2703 = vmul.f32 %v2653, %v188
    %v2704 = vmul.f32 %v2656, %v189
    %v2705 = vmul.f32 %v2661, %v190
    %v2706 = vmul.f32 %v2664, %v191
    %v2707 = vmul.f32 %v2669, %v192
    %v2708 = vmul.f32 %v2672, %v193
    %v2709 = vmul.f32 %v2677, %v194
    %v2710 = vmul.f32 %v2680, %v195
    %v2711 = vmul.f32 %v2685, %v196
    %v2712 = vmul.f32 %v2688, %v197
    %v2713 = vmul.f32 %v2693, %v198
    %v2714 = vmul.f32 %v2696, %v199
    %v2715 = vpack.c.bf16 %v2700, %v2699
    %v2716 = vpack.c.bf16 %v2702, %v2701
    %v2717 = vpack.c.bf16 %v2704, %v2703
    %v2718 = vpack.c.bf16 %v2706, %v2705
    %v2719 = vpack.c.bf16 %v2708, %v2707
    %v2720 = vpack.c.bf16 %v2710, %v2709
    %v2721 = vpack.c.bf16 %v2712, %v2711
    %v2722 = vpack.c.bf16 %v2714, %v2713
    %s2723 = scalar_lea.vmem [#allocation7], 64
    %v2724 = vld [vmem:[%s2723] sm:$0xf]
    %v2725 = vld [vmem:[%s2723 + $0x4] sm:$0xf]
    %v2726 = vld [vmem:[%s2723 + $0x8] sm:$0xf]
    %v2727 = vld [vmem:[%s2723 + $0xc] sm:$0xf]
    %v2728 = vld [vmem:[%s2723 + $0x10] sm:$0xf]
    %v2729 = vld [vmem:[%s2723 + $0x14] sm:$0xf]
    %v2730 = vld [vmem:[%s2723 + $0x18] sm:$0xf]
    %v2731 = vld [vmem:[%s2723 + $0x1c] sm:$0xf]
    %v2740 = vunpack.c.l.b16 %v2724
    %v2741 = vunpack.c.l.b16 %v2725
    %v2742 = vunpack.c.l.b16 %v2726
    %v2743 = vunpack.c.l.b16 %v2727
    %v2744 = vunpack.c.l.b16 %v2728
    %v2745 = vunpack.c.l.b16 %v2729
    %v2746 = vunpack.c.l.b16 %v2730
    %v2747 = vunpack.c.l.b16 %v2731
    %v2748 = vpack.c.b16 %v2741, %v2740
    %v2749 = vpack.c.b16 %v2743, %v2742
    %v2750 = vpack.c.b16 %v2745, %v2744
    %v2751 = vpack.c.b16 %v2747, %v2746
    %v2757 = vsel %vm261, %v2715, 0
    %v2760 = vsel %vm261, %v2716, 0
    %v2763 = vsel %vm261, %v2717, 0
    %v2766 = vsel %vm261, %v2718, 0
    %v2769 = vsel %vm261, %v2719, 0
    %v2772 = vsel %vm261, %v2720, 0
    %v2775 = vsel %vm261, %v2721, 0
    %v2778 = vsel %vm261, %v2722, 0
    %2780 = vmatprep.subr.bf16.mxu0 0
    %2781 = vmatpush1.bf16.msra.mxu0 %v2748
    %2782 = vmatprep.subr.bf16.mxu0 0
    %2783 = vmatpush1.bf16.msra.mxu0 %v2749
    %2784 = vmatprep.subr.bf16.mxu0 0
    %2785 = vmatpush1.bf16.msra.mxu0 %v2750
    %2786 = vmatprep.subr.bf16.mxu0 0
    %2787 = vmatpush1.bf16.msra.mxu0 %v2751
    %2788 = vmatprep.subr.bf16.mxu0 0
    %2789 = vmatpush1.bf16.msra.mxu0 0
    %2790 = vmatprep.subr.bf16.mxu0 0
    %2791 = vmatpush1.bf16.msra.mxu0 0
    %2792 = vmatprep.subr.bf16.mxu0 0
    %2793 = vmatpush1.bf16.msra.mxu0 0
    %2794 = vmatprep.subr.bf16.mxu0 0
    %2795 = vmatpush1.bf16.msra.mxu0 0
    %2796 = vmatprep.subr.bf16.mxu0 0
    %2797 = vmatpush1.bf16.msra.mxu0 0
    %2798 = vmatprep.subr.bf16.mxu0 0
    %2799 = vmatpush1.bf16.msra.mxu0 0
    %2800 = vmatprep.subr.bf16.mxu0 0
    %2801 = vmatpush1.bf16.msra.mxu0 0
    %2802 = vmatprep.subr.bf16.mxu0 0
    %2803 = vmatpush1.bf16.msra.mxu0 0
    %2804 = vmatprep.subr.bf16.mxu0 0
    %2805 = vmatpush1.bf16.msra.mxu0 0
    %2806 = vmatprep.subr.bf16.mxu0 0
    %2807 = vmatpush1.bf16.msra.mxu0 0
    %2808 = vmatprep.subr.bf16.mxu0 0
    %2809 = vmatpush1.bf16.msra.mxu0 0
    %2810 = vmatprep.subr.bf16.mxu0 0
    %2811 = vmatpush1.bf16.msra.mxu0 0
    %2812 = vmatprep.mubr.bf16.mxu0 0
    %2813 = vmatmul.mubr.bf16.gmra.mrb[0].mxu0 %v2757
    %v2814 = vpop.f32.mrb[0].mxu0
    %v2815 = vadd.f32 0.0, %v2814
    %v2816 = vpop.f32.mrb[0].mxu0
    %v2817 = vpop.f32.mrb[0].mxu0
    %v2818 = vadd.f32 0.0, %v2817
    %v2819 = vpop.f32.mrb[0].mxu0
    %2820 = vmatprep.mubr.bf16.mxu0 0
    %2821 = vmatmul.mubr.bf16.gmra.mrb[0].mxu0 %v2760
    %v2822 = vpop.f32.mrb[0].mxu0
    %v2823 = vadd.f32 0.0, %v2822
    %v2824 = vpop.f32.mrb[0].mxu0
    %v2825 = vpop.f32.mrb[0].mxu0
    %v2826 = vadd.f32 0.0, %v2825
    %v2827 = vpop.f32.mrb[0].mxu0
    %2828 = vmatprep.mubr.bf16.mxu0 0
    %2829 = vmatmul.mubr.bf16.gmra.mrb[0].mxu0 %v2763
    %v2830 = vpop.f32.mrb[0].mxu0
    %v2831 = vadd.f32 0.0, %v2830
    %v2832 = vpop.f32.mrb[0].mxu0
    %v2833 = vpop.f32.mrb[0].mxu0
    %v2834 = vadd.f32 0.0, %v2833
    %v2835 = vpop.f32.mrb[0].mxu0
    %2836 = vmatprep.mubr.bf16.mxu0 0
    %2837 = vmatmul.mubr.bf16.gmra.mrb[0].mxu0 %v2766
    %v2838 = vpop.f32.mrb[0].mxu0
    %v2839 = vadd.f32 0.0, %v2838
    %v2840 = vpop.f32.mrb[0].mxu0
    %v2841 = vpop.f32.mrb[0].mxu0
    %v2842 = vadd.f32 0.0, %v2841
    %v2843 = vpop.f32.mrb[0].mxu0
    %2844 = vmatprep.mubr.bf16.mxu0 0
    %2845 = vmatmul.mubr.bf16.gmra.mrb[0].mxu0 %v2769
    %v2846 = vpop.f32.mrb[0].mxu0
    %v2847 = vadd.f32 0.0, %v2846
    %v2848 = vpop.f32.mrb[0].mxu0
    %v2849 = vpop.f32.mrb[0].mxu0
    %v2850 = vadd.f32 0.0, %v2849
    %v2851 = vpop.f32.mrb[0].mxu0
    %2852 = vmatprep.mubr.bf16.mxu0 0
    %2853 = vmatmul.mubr.bf16.gmra.mrb[0].mxu0 %v2772
    %v2854 = vpop.f32.mrb[0].mxu0
    %v2855 = vadd.f32 0.0, %v2854
    %v2856 = vpop.f32.mrb[0].mxu0
    %v2857 = vpop.f32.mrb[0].mxu0
    %v2858 = vadd.f32 0.0, %v2857
    %v2859 = vpop.f32.mrb[0].mxu0
    %2860 = vmatprep.mubr.bf16.mxu0 0
    %2861 = vmatmul.mubr.bf16.gmra.mrb[0].mxu0 %v2775
    %v2862 = vpop.f32.mrb[0].mxu0
    %v2863 = vadd.f32 0.0, %v2862
    %v2864 = vpop.f32.mrb[0].mxu0
    %v2865 = vpop.f32.mrb[0].mxu0
    %v2866 = vadd.f32 0.0, %v2865
    %v2867 = vpop.f32.mrb[0].mxu0
    %2868 = vmatprep.mubr.bf16.mxu0 0
    %2869 = vmatmul.mubr.bf16.gmra.mrb[0].mxu0 %v2778
    %v2870 = vpop.f32.mrb[0].mxu0
    %v2871 = vadd.f32 0.0, %v2870
    %v2872 = vpop.f32.mrb[0].mxu0
    %v2873 = vpop.f32.mrb[0].mxu0
    %v2874 = vadd.f32 0.0, %v2873
    %v2875 = vpop.f32.mrb[0].mxu0
    %2876 = vdwg.mxu0
    %v2877 = vsel %vm261, %v2815, 0.0
    %v2878 = vsel %vm261, %v2823, 0.0
    %v2879 = vadd.f32 %v2877, %v2878
    %v2880 = vsel %vm261, %v2831, 0.0
    %v2881 = vadd.f32 %v2879, %v2880
    %v2882 = vsel %vm261, %v2839, 0.0
    %v2883 = vadd.f32 %v2881, %v2882
    %v2884 = vsel %vm261, %v2847, 0.0
    %v2885 = vadd.f32 %v2883, %v2884
    %v2886 = vsel %vm261, %v2855, 0.0
    %v2887 = vadd.f32 %v2885, %v2886
    %v2888 = vsel %vm261, %v2863, 0.0
    %v2889 = vadd.f32 %v2887, %v2888
    %v2890 = vsel %vm261, %v2871, 0.0
    %v2891 = vadd.f32 %v2889, %v2890
    %v2892 = vsel %vm261, %v2818, 0.0
    %v2893 = vsel %vm261, %v2826, 0.0
    %v2894 = vadd.f32 %v2892, %v2893
    %v2895 = vsel %vm261, %v2834, 0.0
    %v2896 = vadd.f32 %v2894, %v2895
    %v2897 = vsel %vm261, %v2842, 0.0
    %v2898 = vadd.f32 %v2896, %v2897
    %v2899 = vsel %vm261, %v2850, 0.0
    %v2900 = vadd.f32 %v2898, %v2899
    %v2901 = vsel %vm261, %v2858, 0.0
    %v2902 = vadd.f32 %v2900, %v2901
    %v2903 = vsel %vm261, %v2866, 0.0
    %v2904 = vadd.f32 %v2902, %v2903
    %v2905 = vsel %vm261, %v2874, 0.0
    %v2906 = vadd.f32 %v2904, %v2905
    %s2907 = scalar_lea.vmem [#allocation9], 2
    %v2908 = vld [vmem:[%s2907] sm:$0x1]
    %v2910 = vlaneseq
    %v2911 = vshrl.u32 %v2910, 7
    %v2912 = vsub.s32 0, %v2911
    %v2913 = vrot.slane %v2908, %v2912
    %v2915 = vadd.f32 %v2891, %v2913
    %v2916 = vadd.f32 %v2906, %v2913
    %v2917 = vadd.f32 %v2186, %v2915
    %v2918 = vadd.f32 %v2187, %v2916
    %s2919 = scalar_lea.vmem [#allocation10], 2
    %v2920 = vld [vmem:[%s2919] sm:$0x1]
    %s2921 = scalar_lea.vmem [#allocation12], 2
    %v2922 = vld [vmem:[%s2921] sm:$0x1]
    %v2923 = vsel %vm261, %v2917, 0.0
    %2924 = vadd.xlane.f32.xlu0 %v2923
    %v2925 = vpop.xlane.xlu0 %2924
    %v2926 = vsel %vm261, %v2918, 0.0
    %2927 = vadd.xlane.f32.xlu0 %v2926
    %v2928 = vpop.xlane.xlu0 %2927
    %v2929 = vmul.f32 %v2925, %v936
    %v2930 = vmul.f32 %v2928, %v936
    %v2931 = vsub.f32 %v2917, %v2929
    %v2932 = vsub.f32 %v2918, %v2930
    %v2933 = vmul.f32 %v2931, %v2931
    %v2934 = vmul.f32 %v2932, %v2932
    %v2935 = vsel %vm261, %v2933, 0.0
    %2936 = vadd.xlane.f32.xlu0 %v2935
    %v2937 = vpop.xlane.xlu0 %2936
    %v2938 = vsel %vm261, %v2934, 0.0
    %2939 = vadd.xlane.f32.xlu0 %v2938
    %v2940 = vpop.xlane.xlu0 %2939
    %v2941 = vmul.f32 %v2937, %v936
    %v2942 = vmul.f32 %v2940, %v936
    %v2943 = vadd.f32 %v2941, 1e-05
    %v2944 = vadd.f32 %v2942, 1e-05
    %v2945 = vrsqrt.pop %v2943
    %v2946 = vrsqrt.pop %v2944
    %v2947 = vmul.f32 %v2931, %v2945
    %v2948 = vmul.f32 %v2932, %v2946
    %v2950 = vlaneseq
    %v2951 = vshrl.u32 %v2950, 7
    %v2952 = vsub.s32 0, %v2951
    %v2953 = vrot.slane %v2920, %v2952
    %v2955 = vmul.f32 %v2947, %v2953
    %v2956 = vmul.f32 %v2948, %v2953
    %v2958 = vlaneseq
    %v2959 = vshrl.u32 %v2958, 7
    %v2960 = vsub.s32 0, %v2959
    %v2961 = vrot.slane %v2922, %v2960
    %v2963 = vadd.f32 %v2955, %v2961
    %v2964 = vadd.f32 %v2956, %v2961
    %v2965 = vpack.c.bf16 %v2964, %v2963
    %s2966 = scalar_lea.vmem %s9, 64
    %v2967 = vld [vmem:[%s2966] sm:$0xf]
    %v2968 = vld [vmem:[%s2966 + $0x4] sm:$0xf]
    %v2969 = vld [vmem:[%s2966 + $0x8] sm:$0xf]
    %v2970 = vld [vmem:[%s2966 + $0xc] sm:$0xf]
    %v2971 = vld [vmem:[%s2966 + $0x10] sm:$0xf]
    %v2972 = vld [vmem:[%s2966 + $0x14] sm:$0xf]
    %v2973 = vld [vmem:[%s2966 + $0x18] sm:$0xf]
    %v2974 = vld [vmem:[%s2966 + $0x1c] sm:$0xf]
    %s2975 = scalar_lea.vmem %s10, 2
    %v2976 = vld [vmem:[%s2975] sm:$0x1]
    %v2978 = vlaneseq
    %v2979 = vshrl.u32 %v2978, 7
    %v2980 = vsub.s32 0, %v2979
    %v2981 = vrot.slane %v2976, %v2980
    %v2991 = vunpack.c.l.b16 %v2967
    %v2992 = vunpack.c.l.b16 %v2968
    %v2993 = vunpack.c.l.b16 %v2969
    %v2994 = vunpack.c.l.b16 %v2970
    %v2995 = vunpack.c.l.b16 %v2971
    %v2996 = vunpack.c.l.b16 %v2972
    %v2997 = vunpack.c.l.b16 %v2973
    %v2998 = vunpack.c.l.b16 %v2974
    %v2999 = vpack.c.b16 %v2992, %v2991
    %v3000 = vpack.c.b16 %v2994, %v2993
    %v3001 = vpack.c.b16 %v2996, %v2995
    %v3002 = vpack.c.b16 %v2998, %v2997
    %v3008 = vsel %vm261, %v2965, 0
    %3010 = vmatprep.subr.bf16.mxu0 0
    %3011 = vmatpush1.bf16.msra.mxu0 %v2999
    %3012 = vmatprep.subr.bf16.mxu0 0
    %3013 = vmatpush1.bf16.msra.mxu0 %v3000
    %3014 = vmatprep.subr.bf16.mxu0 0
    %3015 = vmatpush1.bf16.msra.mxu0 %v3001
    %3016 = vmatprep.subr.bf16.mxu0 0
    %3017 = vmatpush1.bf16.msra.mxu0 %v3002
    %3018 = vmatprep.subr.bf16.mxu0 0
    %3019 = vmatpush1.bf16.msra.mxu0 0
    %3020 = vmatprep.subr.bf16.mxu0 0
    %3021 = vmatpush1.bf16.msra.mxu0 0
    %3022 = vmatprep.subr.bf16.mxu0 0
    %3023 = vmatpush1.bf16.msra.mxu0 0
    %3024 = vmatprep.subr.bf16.mxu0 0
    %3025 = vmatpush1.bf16.msra.mxu0 0
    %3026 = vmatprep.subr.bf16.mxu0 0
    %3027 = vmatpush1.bf16.msra.mxu0 0
    %3028 = vmatprep.subr.bf16.mxu0 0
    %3029 = vmatpush1.bf16.msra.mxu0 0
    %3030 = vmatprep.subr.bf16.mxu0 0
    %3031 = vmatpush1.bf16.msra.mxu0 0
    %3032 = vmatprep.subr.bf16.mxu0 0
    %3033 = vmatpush1.bf16.msra.mxu0 0
    %3034 = vmatprep.subr.bf16.mxu0 0
    %3035 = vmatpush1.bf16.msra.mxu0 0
    %3036 = vmatprep.subr.bf16.mxu0 0
    %3037 = vmatpush1.bf16.msra.mxu0 0
    %3038 = vmatprep.subr.bf16.mxu0 0
    %3039 = vmatpush1.bf16.msra.mxu0 0
    %3040 = vmatprep.subr.bf16.mxu0 0
    %3041 = vmatpush1.bf16.msra.mxu0 0
    %3042 = vmatprep.mubr.bf16.mxu0 0
    %3043 = vmatmul.mubr.bf16.gmra.mrb[0].mxu0 %v3008
    %v3044 = vpop.f32.mrb[0].mxu0
    %v3045 = vadd.f32 %v2981, %v3044
    %v3046 = vpop.f32.mrb[0].mxu0
    %v3047 = vpop.f32.mrb[0].mxu0
    %v3048 = vadd.f32 %v2981, %v3047
    %v3049 = vpop.f32.mrb[0].mxu0
    %3050 = vdwg.mxu0
    %v3051 = vmax.f32 %v3045, 0.0
    %v3052 = vmax.f32 %v3048, 0.0
    %v3053 = vpack.c.bf16 %v3052, %v3051
    %s3054 = scalar_lea.vmem [#allocation13], 64
    %v3055 = vld [vmem:[%s3054] sm:$0xf]
    %v3056 = vld [vmem:[%s3054 + $0x4] sm:$0xf]
    %v3057 = vld [vmem:[%s3054 + $0x8] sm:$0xf]
    %v3058 = vld [vmem:[%s3054 + $0xc] sm:$0xf]
    %v3059 = vld [vmem:[%s3054 + $0x10] sm:$0xf]
    %v3060 = vld [vmem:[%s3054 + $0x14] sm:$0xf]
    %v3061 = vld [vmem:[%s3054 + $0x18] sm:$0xf]
    %v3062 = vld [vmem:[%s3054 + $0x1c] sm:$0xf]
    %s3063 = scalar_lea.vmem %s12, 2
    %v3064 = vld [vmem:[%s3063] sm:$0x1]
    %v3066 = vlaneseq
    %v3067 = vshrl.u32 %v3066, 7
    %v3068 = vsub.s32 0, %v3067
    %v3069 = vrot.slane %v3064, %v3068
    %v3079 = vunpack.c.l.b16 %v3055
    %v3080 = vunpack.c.l.b16 %v3056
    %v3081 = vunpack.c.l.b16 %v3057
    %v3082 = vunpack.c.l.b16 %v3058
    %v3083 = vunpack.c.l.b16 %v3059
    %v3084 = vunpack.c.l.b16 %v3060
    %v3085 = vunpack.c.l.b16 %v3061
    %v3086 = vunpack.c.l.b16 %v3062
    %v3087 = vpack.c.b16 %v3080, %v3079
    %v3088 = vpack.c.b16 %v3082, %v3081
    %v3089 = vpack.c.b16 %v3084, %v3083
    %v3090 = vpack.c.b16 %v3086, %v3085
    %v3096 = vsel %vm261, %v3053, 0
    %3098 = vmatprep.subr.bf16.mxu0 0
    %3099 = vmatpush1.bf16.msra.mxu0 %v3087
    %3100 = vmatprep.subr.bf16.mxu0 0
    %3101 = vmatpush1.bf16.msra.mxu0 %v3088
    %3102 = vmatprep.subr.bf16.mxu0 0
    %3103 = vmatpush1.bf16.msra.mxu0 %v3089
    %3104 = vmatprep.subr.bf16.mxu0 0
    %3105 = vmatpush1.bf16.msra.mxu0 %v3090
    %3106 = vmatprep.subr.bf16.mxu0 0
    %3107 = vmatpush1.bf16.msra.mxu0 0
    %3108 = vmatprep.subr.bf16.mxu0 0
    %3109 = vmatpush1.bf16.msra.mxu0 0
    %3110 = vmatprep.subr.bf16.mxu0 0
    %3111 = vmatpush1.bf16.msra.mxu0 0
    %3112 = vmatprep.subr.bf16.mxu0 0
    %3113 = vmatpush1.bf16.msra.mxu0 0
    %3114 = vmatprep.subr.bf16.mxu0 0
    %3115 = vmatpush1.bf16.msra.mxu0 0
    %3116 = vmatprep.subr.bf16.mxu0 0
    %3117 = vmatpush1.bf16.msra.mxu0 0
    %3118 = vmatprep.subr.bf16.mxu0 0
    %3119 = vmatpush1.bf16.msra.mxu0 0
    %3120 = vmatprep.subr.bf16.mxu0 0
    %3121 = vmatpush1.bf16.msra.mxu0 0
    %3122 = vmatprep.subr.bf16.mxu0 0
    %3123 = vmatpush1.bf16.msra.mxu0 0
    %3124 = vmatprep.subr.bf16.mxu0 0
    %3125 = vmatpush1.bf16.msra.mxu0 0
    %3126 = vmatprep.subr.bf16.mxu0 0
    %3127 = vmatpush1.bf16.msra.mxu0 0
    %3128 = vmatprep.subr.bf16.mxu0 0
    %3129 = vmatpush1.bf16.msra.mxu0 0
    %3130 = vmatprep.mubr.bf16.mxu0 0
    %3131 = vmatmul.mubr.bf16.gmra.mrb[0].mxu0 %v3096
    %v3132 = vpop.f32.mrb[0].mxu0
    %v3133 = vadd.f32 %v3069, %v3132
    %v3134 = vpop.f32.mrb[0].mxu0
    %v3135 = vpop.f32.mrb[0].mxu0
    %v3136 = vadd.f32 %v3069, %v3135
    %v3137 = vpop.f32.mrb[0].mxu0
    %3138 = vdwg.mxu0
    %v3139 = vadd.f32 %v2963, %v3133
    %v3140 = vadd.f32 %v2964, %v3136
    %s3141 = scalar_lea.vmem %s13, 2
    %v3142 = vld [vmem:[%s3141] sm:$0x1]
    %s3143 = scalar_lea.vmem %s14, 2
    %v3144 = vld [vmem:[%s3143] sm:$0x1]
    %v3145 = vsel %vm261, %v3139, 0.0
    %3146 = vadd.xlane.f32.xlu0 %v3145
    %v3147 = vpop.xlane.xlu0 %3146
    %v3148 = vsel %vm261, %v3140, 0.0
    %3149 = vadd.xlane.f32.xlu0 %v3148
    %v3150 = vpop.xlane.xlu0 %3149
    %v3151 = vmul.f32 %v3147, %v936
    %v3152 = vmul.f32 %v3150, %v936
    %v3153 = vsub.f32 %v3139, %v3151
    %v3154 = vsub.f32 %v3140, %v3152
    %v3155 = vmul.f32 %v3153, %v3153
    %v3156 = vmul.f32 %v3154, %v3154
    %v3157 = vsel %vm261, %v3155, 0.0
    %3158 = vadd.xlane.f32.xlu0 %v3157
    %v3159 = vpop.xlane.xlu0 %3158
    %v3160 = vsel %vm261, %v3156, 0.0
    %3161 = vadd.xlane.f32.xlu0 %v3160
    %v3162 = vpop.xlane.xlu0 %3161
    %v3163 = vmul.f32 %v3159, %v936
    %v3164 = vmul.f32 %v3162, %v936
    %v3165 = vadd.f32 %v3163, 1e-05
    %v3166 = vadd.f32 %v3164, 1e-05
    %v3167 = vrsqrt.pop %v3165
    %v3168 = vrsqrt.pop %v3166
    %v3169 = vmul.f32 %v3153, %v3167
    %v3170 = vmul.f32 %v3154, %v3168
    %v3172 = vlaneseq
    %v3173 = vshrl.u32 %v3172, 7
    %v3174 = vsub.s32 0, %v3173
    %v3175 = vrot.slane %v3142, %v3174
    %v3177 = vmul.f32 %v3169, %v3175
    %v3178 = vmul.f32 %v3170, %v3175
    %v3180 = vlaneseq
    %v3181 = vshrl.u32 %v3180, 7
    %v3182 = vsub.s32 0, %v3181
    %v3183 = vrot.slane %v3144, %v3182
    %v3185 = vadd.f32 %v3177, %v3183
    %v3186 = vadd.f32 %v3178, %v3183
    %v3187 = vpack.c.bf16 %v3186, %v3185
    %s3188 = scalar_lea.vmem [#allocation4], 192
    %v3189 = vld [vmem:[%s3188] sm:$0xff]
    %v3190 = vld [vmem:[%s3188 + $0x8] sm:$0xff]
    %v3191 = vld [vmem:[%s3188 + $0x10] sm:$0xff]
    %v3192 = vld [vmem:[%s3188 + $0x18] sm:$0xff]
    %v3193 = vld [vmem:[%s3188 + $0x20] sm:$0xff]
    %v3194 = vld [vmem:[%s3188 + $0x28] sm:$0xff]
    %v3195 = vld [vmem:[%s3188 + $0x30] sm:$0xff]
    %v3196 = vld [vmem:[%s3188 + $0x38] sm:$0xff]
    %s3197 = scalar_lea.vmem [#allocation6], 6
    %v3198 = vld [vmem:[%s3197] sm:$0x3]
    %v3200 = vlaneseq
    %v3201 = vshrl.u32 %v3200, 7
    %v3202 = vsub.s32 0, %v3201
    %v3203 = vrot.slane %v3198, %v3202
    %v3204 = vlaneseq
    %v3205 = vshrl.u32 %v3204, 7
    %v3206 = vsub.s32 1, %v3205
    %v3207 = vrot.slane %v3198, %v3206
    %v3218 = vunpack.c.l.b16 %v3189
    %v3219 = vunpack.c.h.b16 %v3189
    %v3220 = vunpack.c.l.b16 %v3190
    %v3221 = vunpack.c.h.b16 %v3190
    %v3222 = vunpack.c.l.b16 %v3191
    %v3223 = vunpack.c.h.b16 %v3191
    %v3224 = vunpack.c.l.b16 %v3192
    %v3225 = vunpack.c.h.b16 %v3192
    %v3226 = vunpack.c.l.b16 %v3193
    %v3227 = vunpack.c.h.b16 %v3193
    %v3228 = vunpack.c.l.b16 %v3194
    %v3229 = vunpack.c.h.b16 %v3194
    %v3230 = vunpack.c.l.b16 %v3195
    %v3231 = vunpack.c.h.b16 %v3195
    %v3232 = vunpack.c.l.b16 %v3196
    %v3233 = vunpack.c.h.b16 %v3196
    %v3234 = vpack.c.b16 %v3220, %v3218
    %v3235 = vpack.c.b16 %v3221, %v3219
    %v3236 = vpack.c.b16 %v3224, %v3222
    %v3237 = vpack.c.b16 %v3225, %v3223
    %v3238 = vpack.c.b16 %v3228, %v3226
    %v3239 = vpack.c.b16 %v3229, %v3227
    %v3240 = vpack.c.b16 %v3232, %v3230
    %v3241 = vpack.c.b16 %v3233, %v3231
    %v3251 = vsel %vm261, %v3187, 0
    %3253 = vmatprep.subr.bf16.mxu0 %v3235
    %3254 = vmatpush1.bf16.msra.mxu0 %v3234
    %3255 = vmatprep.subr.bf16.mxu0 %v3237
    %3256 = vmatpush1.bf16.msra.mxu0 %v3236
    %3257 = vmatprep.subr.bf16.mxu0 %v3239
    %3258 = vmatpush1.bf16.msra.mxu0 %v3238
    %3259 = vmatprep.subr.bf16.mxu0 %v3241
    %3260 = vmatpush1.bf16.msra.mxu0 %v3240
    %3261 = vmatprep.subr.bf16.mxu0 0
    %3262 = vmatpush1.bf16.msra.mxu0 0
    %3263 = vmatprep.subr.bf16.mxu0 0
    %3264 = vmatpush1.bf16.msra.mxu0 0
    %3265 = vmatprep.subr.bf16.mxu0 0
    %3266 = vmatpush1.bf16.msra.mxu0 0
    %3267 = vmatprep.subr.bf16.mxu0 0
    %3268 = vmatpush1.bf16.msra.mxu0 0
    %3269 = vmatprep.subr.bf16.mxu0 0
    %3270 = vmatpush1.bf16.msra.mxu0 0
    %3271 = vmatprep.subr.bf16.mxu0 0
    %3272 = vmatpush1.bf16.msra.mxu0 0
    %3273 = vmatprep.subr.bf16.mxu0 0
    %3274 = vmatpush1.bf16.msra.mxu0 0
    %3275 = vmatprep.subr.bf16.mxu0 0
    %3276 = vmatpush1.bf16.msra.mxu0 0
    %3277 = vmatprep.subr.bf16.mxu0 0
    %3278 = vmatpush1.bf16.msra.mxu0 0
    %3279 = vmatprep.subr.bf16.mxu0 0
    %3280 = vmatpush1.bf16.msra.mxu0 0
    %3281 = vmatprep.subr.bf16.mxu0 0
    %3282 = vmatpush1.bf16.msra.mxu0 0
    %3283 = vmatprep.subr.bf16.mxu0 0
    %3284 = vmatpush1.bf16.msra.mxu0 0
    %3285 = vmatprep.mubr.bf16.mxu0 0
    %3286 = vmatmul.mubr.bf16.gmra.mrb[0].mxu0 %v3251
    %v3287 = vpop.f32.mrb[0].mxu0
    %v3288 = vadd.f32 %v3203, %v3287
    %v3289 = vpop.f32.mrb[0].mxu0
    %v3290 = vadd.f32 %v3207, %v3289
    %v3291 = vpop.f32.mrb[0].mxu0
    %v3292 = vadd.f32 %v3203, %v3291
    %v3293 = vpop.f32.mrb[0].mxu0
    %v3294 = vadd.f32 %v3207, %v3293
    %3295 = vdwg.mxu0
    %v3296 = vmul.f32 %v3288, %v184
    %v3297 = vmul.f32 %v3292, %v185
    %v3298 = vmul.f32 %v3288, %v186
    %v3299 = vmul.f32 %v3292, %v187
    %v3300 = vmul.f32 %v3288, %v188
    %v3301 = vmul.f32 %v3292, %v189
    %v3302 = vmul.f32 %v3288, %v190
    %v3303 = vmul.f32 %v3292, %v191
    %v3304 = vmul.f32 %v3288, %v192
    %v3305 = vmul.f32 %v3292, %v193
    %v3306 = vmul.f32 %v3288, %v194
    %v3307 = vmul.f32 %v3292, %v195
    %v3308 = vmul.f32 %v3288, %v196
    %v3309 = vmul.f32 %v3292, %v197
    %v3310 = vmul.f32 %v3288, %v198
    %v3311 = vmul.f32 %v3292, %v199
    %v3312 = vpack.c.bf16 %v3297, %v3296
    %v3313 = vpack.c.bf16 %v3299, %v3298
    %v3314 = vpack.c.bf16 %v3301, %v3300
    %v3315 = vpack.c.bf16 %v3303, %v3302
    %v3316 = vpack.c.bf16 %v3305, %v3304
    %v3317 = vpack.c.bf16 %v3307, %v3306
    %v3318 = vpack.c.bf16 %v3309, %v3308
    %v3319 = vpack.c.bf16 %v3311, %v3310
    %v3320 = vpack.c.bf16 %v3292, %v3288
    %3322 = vrot.lane.b32.xlu0 %v3320, 64
    %v3323 = vpop.permute.xlu0 %3322
    %v3325 = vsel %vm261, %v3312, 0
    %v3328 = vsel %vm261, %v3313, 0
    %v3331 = vsel %vm261, %v3314, 0
    %v3334 = vsel %vm261, %v3315, 0
    %v3337 = vsel %vm261, %v3316, 0
    %v3340 = vsel %vm261, %v3317, 0
    %v3343 = vsel %vm261, %v3318, 0
    %v3346 = vsel %vm261, %v3319, 0
    %v3349 = vsel %vm261, %v3323, 0
    %3351 = vmatprep.subr.bf16.mxu0 0
    %3352 = vmatpush1.bf16.xpose.msra.mxu0 %v3349
    %3353 = vmatprep.subr.bf16.mxu0 0
    %3354 = vmatpush1.bf16.xpose.msra.mxu0 %v3349
    %3355 = vmatprep.subr.bf16.mxu0 0
    %3356 = vmatpush1.bf16.xpose.msra.mxu0 %v3349
    %3357 = vmatprep.subr.bf16.mxu0 0
    %3358 = vmatpush1.bf16.xpose.msra.mxu0 %v3349
    %3359 = vmatprep.subr.bf16.mxu0 0
    %3360 = vmatpush1.bf16.xpose.msra.mxu0 %v3349
    %3361 = vmatprep.subr.bf16.mxu0 0
    %3362 = vmatpush1.bf16.xpose.msra.mxu0 %v3349
    %3363 = vmatprep.subr.bf16.mxu0 0
    %3364 = vmatpush1.bf16.xpose.msra.mxu0 %v3349
    %3365 = vmatprep.subr.bf16.mxu0 0
    %3366 = vmatpush1.bf16.xpose.msra.mxu0 %v3349
    %3367 = vmatprep.subr.bf16.mxu0 0
    %3368 = vmatpush1.bf16.xpose.msra.mxu0 0
    %3369 = vmatprep.subr.bf16.mxu0 0
    %3370 = vmatpush1.bf16.xpose.msra.mxu0 0
    %3371 = vmatprep.subr.bf16.mxu0 0
    %3372 = vmatpush1.bf16.xpose.msra.mxu0 0
    %3373 = vmatprep.subr.bf16.mxu0 0
    %3374 = vmatpush1.bf16.xpose.msra.mxu0 0
    %3375 = vmatprep.subr.bf16.mxu0 0
    %3376 = vmatpush1.bf16.xpose.msra.mxu0 0
    %3377 = vmatprep.subr.bf16.mxu0 0
    %3378 = vmatpush1.bf16.xpose.msra.mxu0 0
    %3379 = vmatprep.subr.bf16.mxu0 0
    %3380 = vmatpush1.bf16.xpose.msra.mxu0 0
    %3381 = vmatprep.subr.bf16.mxu0 0
    %3382 = vmatpush1.bf16.xpose.msra.mxu0 0
    %3383 = vmatprep.mubr.bf16.mxu0 0
    %3384 = vmatmul.mubr.bf16.gmra.mrb[0].mxu0 %v3325
    %v3385 = vpop.f32.mrb[0].mxu0
    %v3386 = vadd.f32 %v168, %v3385
    %v3387 = vpop.f32.mrb[0].mxu0
    %v3388 = vpop.f32.mrb[0].mxu0
    %v3389 = vadd.f32 %v169, %v3388
    %v3390 = vpop.f32.mrb[0].mxu0
    %3391 = vmatprep.mubr.bf16.mxu0 0
    %3392 = vmatmul.mubr.bf16.gmra.mrb[0].mxu0 %v3328
    %v3393 = vpop.f32.mrb[0].mxu0
    %v3394 = vadd.f32 %v170, %v3393
    %v3395 = vpop.f32.mrb[0].mxu0
    %v3396 = vpop.f32.mrb[0].mxu0
    %v3397 = vadd.f32 %v171, %v3396
    %v3398 = vpop.f32.mrb[0].mxu0
    %3399 = vmatprep.mubr.bf16.mxu0 0
    %3400 = vmatmul.mubr.bf16.gmra.mrb[0].mxu0 %v3331
    %v3401 = vpop.f32.mrb[0].mxu0
    %v3402 = vadd.f32 %v172, %v3401
    %v3403 = vpop.f32.mrb[0].mxu0
    %v3404 = vpop.f32.mrb[0].mxu0
    %v3405 = vadd.f32 %v173, %v3404
    %v3406 = vpop.f32.mrb[0].mxu0
    %3407 = vmatprep.mubr.bf16.mxu0 0
    %3408 = vmatmul.mubr.bf16.gmra.mrb[0].mxu0 %v3334
    %v3409 = vpop.f32.mrb[0].mxu0
    %v3410 = vadd.f32 %v174, %v3409
    %v3411 = vpop.f32.mrb[0].mxu0
    %v3412 = vpop.f32.mrb[0].mxu0
    %v3413 = vadd.f32 %v175, %v3412
    %v3414 = vpop.f32.mrb[0].mxu0
    %3415 = vmatprep.mubr.bf16.mxu0 0
    %3416 = vmatmul.mubr.bf16.gmra.mrb[0].mxu0 %v3337
    %v3417 = vpop.f32.mrb[0].mxu0
    %v3418 = vadd.f32 %v176, %v3417
    %v3419 = vpop.f32.mrb[0].mxu0
    %v3420 = vpop.f32.mrb[0].mxu0
    %v3421 = vadd.f32 %v177, %v3420
    %v3422 = vpop.f32.mrb[0].mxu0
    %3423 = vmatprep.mubr.bf16.mxu0 0
    %3424 = vmatmul.mubr.bf16.gmra.mrb[0].mxu0 %v3340
    %v3425 = vpop.f32.mrb[0].mxu0
    %v3426 = vadd.f32 %v178, %v3425
    %v3427 = vpop.f32.mrb[0].mxu0
    %v3428 = vpop.f32.mrb[0].mxu0
    %v3429 = vadd.f32 %v179, %v3428
    %v3430 = vpop.f32.mrb[0].mxu0
    %3431 = vmatprep.mubr.bf16.mxu0 0
    %3432 = vmatmul.mubr.bf16.gmra.mrb[0].mxu0 %v3343
    %v3433 = vpop.f32.mrb[0].mxu0
    %v3434 = vadd.f32 %v180, %v3433
    %v3435 = vpop.f32.mrb[0].mxu0
    %v3436 = vpop.f32.mrb[0].mxu0
    %v3437 = vadd.f32 %v181, %v3436
    %v3438 = vpop.f32.mrb[0].mxu0
    %3439 = vmatprep.mubr.bf16.mxu0 0
    %3440 = vmatmul.mubr.bf16.gmra.mrb[0].mxu0 %v3346
    %v3441 = vpop.f32.mrb[0].mxu0
    %v3442 = vadd.f32 %v182, %v3441
    %v3443 = vpop.f32.mrb[0].mxu0
    %v3444 = vpop.f32.mrb[0].mxu0
    %v3445 = vadd.f32 %v183, %v3444
    %v3446 = vpop.f32.mrb[0].mxu0
    %3447 = vdwg.mxu0
    %3448 = vmax.xlane.f32.xlu0 %v3386
    %v3449 = vpop.xlane.xlu0 %3448
    %3450 = vmax.xlane.f32.xlu0 %v3389
    %v3451 = vpop.xlane.xlu0 %3450
    %3452 = vmax.xlane.f32.xlu0 %v3394
    %v3453 = vpop.xlane.xlu0 %3452
    %3454 = vmax.xlane.f32.xlu0 %v3397
    %v3455 = vpop.xlane.xlu0 %3454
    %3456 = vmax.xlane.f32.xlu0 %v3402
    %v3457 = vpop.xlane.xlu0 %3456
    %3458 = vmax.xlane.f32.xlu0 %v3405
    %v3459 = vpop.xlane.xlu0 %3458
    %3460 = vmax.xlane.f32.xlu0 %v3410
    %v3461 = vpop.xlane.xlu0 %3460
    %3462 = vmax.xlane.f32.xlu0 %v3413
    %v3463 = vpop.xlane.xlu0 %3462
    %3464 = vmax.xlane.f32.xlu0 %v3418
    %v3465 = vpop.xlane.xlu0 %3464
    %3466 = vmax.xlane.f32.xlu0 %v3421
    %v3467 = vpop.xlane.xlu0 %3466
    %3468 = vmax.xlane.f32.xlu0 %v3426
    %v3469 = vpop.xlane.xlu0 %3468
    %3470 = vmax.xlane.f32.xlu0 %v3429
    %v3471 = vpop.xlane.xlu0 %3470
    %3472 = vmax.xlane.f32.xlu0 %v3434
    %v3473 = vpop.xlane.xlu0 %3472
    %3474 = vmax.xlane.f32.xlu0 %v3437
    %v3475 = vpop.xlane.xlu0 %3474
    %3476 = vmax.xlane.f32.xlu0 %v3442
    %v3477 = vpop.xlane.xlu0 %3476
    %3478 = vmax.xlane.f32.xlu0 %v3445
    %v3479 = vpop.xlane.xlu0 %3478
    %v3480 = vsub.f32 %v3386, %v3449
    %v3481 = vsub.f32 %v3389, %v3451
    %v3482 = vsub.f32 %v3394, %v3453
    %v3483 = vsub.f32 %v3397, %v3455
    %v3484 = vsub.f32 %v3402, %v3457
    %v3485 = vsub.f32 %v3405, %v3459
    %v3486 = vsub.f32 %v3410, %v3461
    %v3487 = vsub.f32 %v3413, %v3463
    %v3488 = vsub.f32 %v3418, %v3465
    %v3489 = vsub.f32 %v3421, %v3467
    %v3490 = vsub.f32 %v3426, %v3469
    %v3491 = vsub.f32 %v3429, %v3471
    %v3492 = vsub.f32 %v3434, %v3473
    %v3493 = vsub.f32 %v3437, %v3475
    %v3494 = vsub.f32 %v3442, %v3477
    %v3495 = vsub.f32 %v3445, %v3479
    %v3496 = vmul.f32 %v3480, 1.442695
    %v3497 = vpow.pop %v3496
    %v3498 = vmul.f32 %v3481, 1.442695
    %v3499 = vpow.pop %v3498
    %v3500 = vmul.f32 %v3482, 1.442695
    %v3501 = vpow.pop %v3500
    %v3502 = vmul.f32 %v3483, 1.442695
    %v3503 = vpow.pop %v3502
    %v3504 = vmul.f32 %v3484, 1.442695
    %v3505 = vpow.pop %v3504
    %v3506 = vmul.f32 %v3485, 1.442695
    %v3507 = vpow.pop %v3506
    %v3508 = vmul.f32 %v3486, 1.442695
    %v3509 = vpow.pop %v3508
    %v3510 = vmul.f32 %v3487, 1.442695
    %v3511 = vpow.pop %v3510
    %v3512 = vmul.f32 %v3488, 1.442695
    %v3513 = vpow.pop %v3512
    %v3514 = vmul.f32 %v3489, 1.442695
    %v3515 = vpow.pop %v3514
    %v3516 = vmul.f32 %v3490, 1.442695
    %v3517 = vpow.pop %v3516
    %v3518 = vmul.f32 %v3491, 1.442695
    %v3519 = vpow.pop %v3518
    %v3520 = vmul.f32 %v3492, 1.442695
    %v3521 = vpow.pop %v3520
    %v3522 = vmul.f32 %v3493, 1.442695
    %v3523 = vpow.pop %v3522
    %v3524 = vmul.f32 %v3494, 1.442695
    %v3525 = vpow.pop %v3524
    %v3526 = vmul.f32 %v3495, 1.442695
    %v3527 = vpow.pop %v3526
    %3528 = vadd.xlane.f32.xlu0 %v3497
    %v3529 = vpop.xlane.xlu0 %3528
    %3530 = vadd.xlane.f32.xlu0 %v3499
    %v3531 = vpop.xlane.xlu0 %3530
    %3532 = vadd.xlane.f32.xlu0 %v3501
    %v3533 = vpop.xlane.xlu0 %3532
    %3534 = vadd.xlane.f32.xlu0 %v3503
    %v3535 = vpop.xlane.xlu0 %3534
    %3536 = vadd.xlane.f32.xlu0 %v3505
    %v3537 = vpop.xlane.xlu0 %3536
    %3538 = vadd.xlane.f32.xlu0 %v3507
    %v3539 = vpop.xlane.xlu0 %3538
    %3540 = vadd.xlane.f32.xlu0 %v3509
    %v3541 = vpop.xlane.xlu0 %3540
    %3542 = vadd.xlane.f32.xlu0 %v3511
    %v3543 = vpop.xlane.xlu0 %3542
    %3544 = vadd.xlane.f32.xlu0 %v3513
    %v3545 = vpop.xlane.xlu0 %3544
    %3546 = vadd.xlane.f32.xlu0 %v3515
    %v3547 = vpop.xlane.xlu0 %3546
    %3548 = vadd.xlane.f32.xlu0 %v3517
    %v3549 = vpop.xlane.xlu0 %3548
    %3550 = vadd.xlane.f32.xlu0 %v3519
    %v3551 = vpop.xlane.xlu0 %3550
    %3552 = vadd.xlane.f32.xlu0 %v3521
    %v3553 = vpop.xlane.xlu0 %3552
    %3554 = vadd.xlane.f32.xlu0 %v3523
    %v3555 = vpop.xlane.xlu0 %3554
    %3556 = vadd.xlane.f32.xlu0 %v3525
    %v3557 = vpop.xlane.xlu0 %3556
    %3558 = vadd.xlane.f32.xlu0 %v3527
    %v3559 = vpop.xlane.xlu0 %3558
    %v3560 = vrcp.pop %v3529
    %v3561 = vrcp.pop %v3531
    %v3562 = vrcp.pop %v3533
    %v3563 = vrcp.pop %v3535
    %v3564 = vrcp.pop %v3537
    %v3565 = vrcp.pop %v3539
    %v3566 = vrcp.pop %v3541
    %v3567 = vrcp.pop %v3543
    %v3568 = vrcp.pop %v3545
    %v3569 = vrcp.pop %v3547
    %v3570 = vrcp.pop %v3549
    %v3571 = vrcp.pop %v3551
    %v3572 = vrcp.pop %v3553
    %v3573 = vrcp.pop %v3555
    %v3574 = vrcp.pop %v3557
    %v3575 = vrcp.pop %v3559
    %v3576 = vmul.f32 %v3497, %v3560
    %v3577 = vmul.f32 %v3499, %v3561
    %v3578 = vmul.f32 %v3501, %v3562
    %v3579 = vmul.f32 %v3503, %v3563
    %v3580 = vmul.f32 %v3505, %v3564
    %v3581 = vmul.f32 %v3507, %v3565
    %v3582 = vmul.f32 %v3509, %v3566
    %v3583 = vmul.f32 %v3511, %v3567
    %v3584 = vmul.f32 %v3513, %v3568
    %v3585 = vmul.f32 %v3515, %v3569
    %v3586 = vmul.f32 %v3517, %v3570
    %v3587 = vmul.f32 %v3519, %v3571
    %v3588 = vmul.f32 %v3521, %v3572
    %v3589 = vmul.f32 %v3523, %v3573
    %v3590 = vmul.f32 %v3525, %v3574
    %v3591 = vmul.f32 %v3527, %v3575
    %v3592 = vpack.c.bf16 %v3577, %v3576
    %v3593 = vpack.c.bf16 %v3579, %v3578
    %v3594 = vpack.c.bf16 %v3581, %v3580
    %v3595 = vpack.c.bf16 %v3583, %v3582
    %v3596 = vpack.c.bf16 %v3585, %v3584
    %v3597 = vpack.c.bf16 %v3587, %v3586
    %v3598 = vpack.c.bf16 %v3589, %v3588
    %v3599 = vpack.c.bf16 %v3591, %v3590
    %v3600 = vpack.c.bf16 %v3294, %v3290
    %3601 = vmatprep.subr.bf16.mxu0 0
    %3602 = vmatpush1.bf16.msra.mxu0 %v3600
    %3603 = vmatprep.subr.bf16.mxu0 0
    %3604 = vmatpush1.bf16.msra.mxu0 %v3600
    %3605 = vmatprep.subr.bf16.mxu0 0
    %3606 = vmatpush1.bf16.msra.mxu0 %v3600
    %3607 = vmatprep.subr.bf16.mxu0 0
    %3608 = vmatpush1.bf16.msra.mxu0 %v3600
    %3609 = vmatprep.subr.bf16.mxu0 0
    %3610 = vmatpush1.bf16.msra.mxu0 %v3600
    %3611 = vmatprep.subr.bf16.mxu0 0
    %3612 = vmatpush1.bf16.msra.mxu0 %v3600
    %3613 = vmatprep.subr.bf16.mxu0 0
    %3614 = vmatpush1.bf16.msra.mxu0 %v3600
    %3615 = vmatprep.subr.bf16.mxu0 0
    %3616 = vmatpush1.bf16.msra.mxu0 %v3600
    %3617 = vmatprep.subr.bf16.mxu0 0
    %3618 = vmatpush1.bf16.msra.mxu0 0
    %3619 = vmatprep.subr.bf16.mxu0 0
    %3620 = vmatpush1.bf16.msra.mxu0 0
    %3621 = vmatprep.subr.bf16.mxu0 0
    %3622 = vmatpush1.bf16.msra.mxu0 0
    %3623 = vmatprep.subr.bf16.mxu0 0
    %3624 = vmatpush1.bf16.msra.mxu0 0
    %3625 = vmatprep.subr.bf16.mxu0 0
    %3626 = vmatpush1.bf16.msra.mxu0 0
    %3627 = vmatprep.subr.bf16.mxu0 0
    %3628 = vmatpush1.bf16.msra.mxu0 0
    %3629 = vmatprep.subr.bf16.mxu0 0
    %3630 = vmatpush1.bf16.msra.mxu0 0
    %3631 = vmatprep.subr.bf16.mxu0 0
    %3632 = vmatpush1.bf16.msra.mxu0 0
    %3633 = vmatprep.mubr.bf16.mxu0 0
    %3634 = vmatmul.mubr.bf16.gmra.mrb[0].mxu0 %v3592
    %v3635 = vpop.f32.mrb[0].mxu0
    %v3636 = vadd.f32 0.0, %v3635
    %v3637 = vpop.f32.mrb[0].mxu0
    %v3638 = vpop.f32.mrb[0].mxu0
    %v3639 = vadd.f32 0.0, %v3638
    %v3640 = vpop.f32.mrb[0].mxu0
    %3641 = vmatprep.mubr.bf16.mxu0 0
    %3642 = vmatmul.mubr.bf16.gmra.mrb[0].mxu0 %v3593
    %v3643 = vpop.f32.mrb[0].mxu0
    %v3644 = vadd.f32 0.0, %v3643
    %v3645 = vpop.f32.mrb[0].mxu0
    %v3646 = vpop.f32.mrb[0].mxu0
    %v3647 = vadd.f32 0.0, %v3646
    %v3648 = vpop.f32.mrb[0].mxu0
    %3649 = vmatprep.mubr.bf16.mxu0 0
    %3650 = vmatmul.mubr.bf16.gmra.mrb[0].mxu0 %v3594
    %v3651 = vpop.f32.mrb[0].mxu0
    %v3652 = vadd.f32 0.0, %v3651
    %v3653 = vpop.f32.mrb[0].mxu0
    %v3654 = vpop.f32.mrb[0].mxu0
    %v3655 = vadd.f32 0.0, %v3654
    %v3656 = vpop.f32.mrb[0].mxu0
    %3657 = vmatprep.mubr.bf16.mxu0 0
    %3658 = vmatmul.mubr.bf16.gmra.mrb[0].mxu0 %v3595
    %v3659 = vpop.f32.mrb[0].mxu0
    %v3660 = vadd.f32 0.0, %v3659
    %v3661 = vpop.f32.mrb[0].mxu0
    %v3662 = vpop.f32.mrb[0].mxu0
    %v3663 = vadd.f32 0.0, %v3662
    %v3664 = vpop.f32.mrb[0].mxu0
    %3665 = vmatprep.mubr.bf16.mxu0 0
    %3666 = vmatmul.mubr.bf16.gmra.mrb[0].mxu0 %v3596
    %v3667 = vpop.f32.mrb[0].mxu0
    %v3668 = vadd.f32 0.0, %v3667
    %v3669 = vpop.f32.mrb[0].mxu0
    %v3670 = vpop.f32.mrb[0].mxu0
    %v3671 = vadd.f32 0.0, %v3670
    %v3672 = vpop.f32.mrb[0].mxu0
    %3673 = vmatprep.mubr.bf16.mxu0 0
    %3674 = vmatmul.mubr.bf16.gmra.mrb[0].mxu0 %v3597
    %v3675 = vpop.f32.mrb[0].mxu0
    %v3676 = vadd.f32 0.0, %v3675
    %v3677 = vpop.f32.mrb[0].mxu0
    %v3678 = vpop.f32.mrb[0].mxu0
    %v3679 = vadd.f32 0.0, %v3678
    %v3680 = vpop.f32.mrb[0].mxu0
    %3681 = vmatprep.mubr.bf16.mxu0 0
    %3682 = vmatmul.mubr.bf16.gmra.mrb[0].mxu0 %v3598
    %v3683 = vpop.f32.mrb[0].mxu0
    %v3684 = vadd.f32 0.0, %v3683
    %v3685 = vpop.f32.mrb[0].mxu0
    %v3686 = vpop.f32.mrb[0].mxu0
    %v3687 = vadd.f32 0.0, %v3686
    %v3688 = vpop.f32.mrb[0].mxu0
    %3689 = vmatprep.mubr.bf16.mxu0 0
    %3690 = vmatmul.mubr.bf16.gmra.mrb[0].mxu0 %v3599
    %v3691 = vpop.f32.mrb[0].mxu0
    %v3692 = vadd.f32 0.0, %v3691
    %v3693 = vpop.f32.mrb[0].mxu0
    %v3694 = vpop.f32.mrb[0].mxu0
    %v3695 = vadd.f32 0.0, %v3694
    %v3696 = vpop.f32.mrb[0].mxu0
    %3697 = vdwg.mxu0
    %v3698 = vmul.f32 %v3636, %v184
    %v3699 = vmul.f32 %v3639, %v185
    %v3700 = vmul.f32 %v3644, %v186
    %v3701 = vmul.f32 %v3647, %v187
    %v3702 = vmul.f32 %v3652, %v188
    %v3703 = vmul.f32 %v3655, %v189
    %v3704 = vmul.f32 %v3660, %v190
    %v3705 = vmul.f32 %v3663, %v191
    %v3706 = vmul.f32 %v3668, %v192
    %v3707 = vmul.f32 %v3671, %v193
    %v3708 = vmul.f32 %v3676, %v194
    %v3709 = vmul.f32 %v3679, %v195
    %v3710 = vmul.f32 %v3684, %v196
    %v3711 = vmul.f32 %v3687, %v197
    %v3712 = vmul.f32 %v3692, %v198
    %v3713 = vmul.f32 %v3695, %v199
    %v3714 = vpack.c.bf16 %v3699, %v3698
    %v3715 = vpack.c.bf16 %v3701, %v3700
    %v3716 = vpack.c.bf16 %v3703, %v3702
    %v3717 = vpack.c.bf16 %v3705, %v3704
    %v3718 = vpack.c.bf16 %v3707, %v3706
    %v3719 = vpack.c.bf16 %v3709, %v3708
    %v3720 = vpack.c.bf16 %v3711, %v3710
    %v3721 = vpack.c.bf16 %v3713, %v3712
    %s3722 = scalar_lea.vmem [#allocation7], 96
    %v3723 = vld [vmem:[%s3722] sm:$0xf]
    %v3724 = vld [vmem:[%s3722 + $0x4] sm:$0xf]
    %v3725 = vld [vmem:[%s3722 + $0x8] sm:$0xf]
    %v3726 = vld [vmem:[%s3722 + $0xc] sm:$0xf]
    %v3727 = vld [vmem:[%s3722 + $0x10] sm:$0xf]
    %v3728 = vld [vmem:[%s3722 + $0x14] sm:$0xf]
    %v3729 = vld [vmem:[%s3722 + $0x18] sm:$0xf]
    %v3730 = vld [vmem:[%s3722 + $0x1c] sm:$0xf]
    %v3739 = vunpack.c.l.b16 %v3723
    %v3740 = vunpack.c.l.b16 %v3724
    %v3741 = vunpack.c.l.b16 %v3725
    %v3742 = vunpack.c.l.b16 %v3726
    %v3743 = vunpack.c.l.b16 %v3727
    %v3744 = vunpack.c.l.b16 %v3728
    %v3745 = vunpack.c.l.b16 %v3729
    %v3746 = vunpack.c.l.b16 %v3730
    %v3747 = vpack.c.b16 %v3740, %v3739
    %v3748 = vpack.c.b16 %v3742, %v3741
    %v3749 = vpack.c.b16 %v3744, %v3743
    %v3750 = vpack.c.b16 %v3746, %v3745
    %v3756 = vsel %vm261, %v3714, 0
    %v3759 = vsel %vm261, %v3715, 0
    %v3762 = vsel %vm261, %v3716, 0
    %v3765 = vsel %vm261, %v3717, 0
    %v3768 = vsel %vm261, %v3718, 0
    %v3771 = vsel %vm261, %v3719, 0
    %v3774 = vsel %vm261, %v3720, 0
    %v3777 = vsel %vm261, %v3721, 0
    %3779 = vmatprep.subr.bf16.mxu0 0
    %3780 = vmatpush1.bf16.msra.mxu0 %v3747
    %3781 = vmatprep.subr.bf16.mxu0 0
    %3782 = vmatpush1.bf16.msra.mxu0 %v3748
    %3783 = vmatprep.subr.bf16.mxu0 0
    %3784 = vmatpush1.bf16.msra.mxu0 %v3749
    %3785 = vmatprep.subr.bf16.mxu0 0
    %3786 = vmatpush1.bf16.msra.mxu0 %v3750
    %3787 = vmatprep.subr.bf16.mxu0 0
    %3788 = vmatpush1.bf16.msra.mxu0 0
    %3789 = vmatprep.subr.bf16.mxu0 0
    %3790 = vmatpush1.bf16.msra.mxu0 0
    %3791 = vmatprep.subr.bf16.mxu0 0
    %3792 = vmatpush1.bf16.msra.mxu0 0
    %3793 = vmatprep.subr.bf16.mxu0 0
    %3794 = vmatpush1.bf16.msra.mxu0 0
    %3795 = vmatprep.subr.bf16.mxu0 0
    %3796 = vmatpush1.bf16.msra.mxu0 0
    %3797 = vmatprep.subr.bf16.mxu0 0
    %3798 = vmatpush1.bf16.msra.mxu0 0
    %3799 = vmatprep.subr.bf16.mxu0 0
    %3800 = vmatpush1.bf16.msra.mxu0 0
    %3801 = vmatprep.subr.bf16.mxu0 0
    %3802 = vmatpush1.bf16.msra.mxu0 0
    %3803 = vmatprep.subr.bf16.mxu0 0
    %3804 = vmatpush1.bf16.msra.mxu0 0
    %3805 = vmatprep.subr.bf16.mxu0 0
    %3806 = vmatpush1.bf16.msra.mxu0 0
    %3807 = vmatprep.subr.bf16.mxu0 0
    %3808 = vmatpush1.bf16.msra.mxu0 0
    %3809 = vmatprep.subr.bf16.mxu0 0
    %3810 = vmatpush1.bf16.msra.mxu0 0
    %3811 = vmatprep.mubr.bf16.mxu0 0
    %3812 = vmatmul.mubr.bf16.gmra.mrb[0].mxu0 %v3756
    %v3813 = vpop.f32.mrb[0].mxu0
    %v3814 = vadd.f32 0.0, %v3813
    %v3815 = vpop.f32.mrb[0].mxu0
    %v3816 = vpop.f32.mrb[0].mxu0
    %v3817 = vadd.f32 0.0, %v3816
    %v3818 = vpop.f32.mrb[0].mxu0
    %3819 = vmatprep.mubr.bf16.mxu0 0
    %3820 = vmatmul.mubr.bf16.gmra.mrb[0].mxu0 %v3759
    %v3821 = vpop.f32.mrb[0].mxu0
    %v3822 = vadd.f32 0.0, %v3821
    %v3823 = vpop.f32.mrb[0].mxu0
    %v3824 = vpop.f32.mrb[0].mxu0
    %v3825 = vadd.f32 0.0, %v3824
    %v3826 = vpop.f32.mrb[0].mxu0
    %3827 = vmatprep.mubr.bf16.mxu0 0
    %3828 = vmatmul.mubr.bf16.gmra.mrb[0].mxu0 %v3762
    %v3829 = vpop.f32.mrb[0].mxu0
    %v3830 = vadd.f32 0.0, %v3829
    %v3831 = vpop.f32.mrb[0].mxu0
    %v3832 = vpop.f32.mrb[0].mxu0
    %v3833 = vadd.f32 0.0, %v3832
    %v3834 = vpop.f32.mrb[0].mxu0
    %3835 = vmatprep.mubr.bf16.mxu0 0
    %3836 = vmatmul.mubr.bf16.gmra.mrb[0].mxu0 %v3765
    %v3837 = vpop.f32.mrb[0].mxu0
    %v3838 = vadd.f32 0.0, %v3837
    %v3839 = vpop.f32.mrb[0].mxu0
    %v3840 = vpop.f32.mrb[0].mxu0
    %v3841 = vadd.f32 0.0, %v3840
    %v3842 = vpop.f32.mrb[0].mxu0
    %3843 = vmatprep.mubr.bf16.mxu0 0
    %3844 = vmatmul.mubr.bf16.gmra.mrb[0].mxu0 %v3768
    %v3845 = vpop.f32.mrb[0].mxu0
    %v3846 = vadd.f32 0.0, %v3845
    %v3847 = vpop.f32.mrb[0].mxu0
    %v3848 = vpop.f32.mrb[0].mxu0
    %v3849 = vadd.f32 0.0, %v3848
    %v3850 = vpop.f32.mrb[0].mxu0
    %3851 = vmatprep.mubr.bf16.mxu0 0
    %3852 = vmatmul.mubr.bf16.gmra.mrb[0].mxu0 %v3771
    %v3853 = vpop.f32.mrb[0].mxu0
    %v3854 = vadd.f32 0.0, %v3853
    %v3855 = vpop.f32.mrb[0].mxu0
    %v3856 = vpop.f32.mrb[0].mxu0
    %v3857 = vadd.f32 0.0, %v3856
    %v3858 = vpop.f32.mrb[0].mxu0
    %3859 = vmatprep.mubr.bf16.mxu0 0
    %3860 = vmatmul.mubr.bf16.gmra.mrb[0].mxu0 %v3774
    %v3861 = vpop.f32.mrb[0].mxu0
    %v3862 = vadd.f32 0.0, %v3861
    %v3863 = vpop.f32.mrb[0].mxu0
    %v3864 = vpop.f32.mrb[0].mxu0
    %v3865 = vadd.f32 0.0, %v3864
    %v3866 = vpop.f32.mrb[0].mxu0
    %3867 = vmatprep.mubr.bf16.mxu0 0
    %3868 = vmatmul.mubr.bf16.gmra.mrb[0].mxu0 %v3777
    %v3869 = vpop.f32.mrb[0].mxu0
    %v3870 = vadd.f32 0.0, %v3869
    %v3871 = vpop.f32.mrb[0].mxu0
    %v3872 = vpop.f32.mrb[0].mxu0
    %v3873 = vadd.f32 0.0, %v3872
    %v3874 = vpop.f32.mrb[0].mxu0
    %3875 = vdwg.mxu0
    %v3876 = vsel %vm261, %v3814, 0.0
    %v3877 = vsel %vm261, %v3822, 0.0
    %v3878 = vadd.f32 %v3876, %v3877
    %v3879 = vsel %vm261, %v3830, 0.0
    %v3880 = vadd.f32 %v3878, %v3879
    %v3881 = vsel %vm261, %v3838, 0.0
    %v3882 = vadd.f32 %v3880, %v3881
    %v3883 = vsel %vm261, %v3846, 0.0
    %v3884 = vadd.f32 %v3882, %v3883
    %v3885 = vsel %vm261, %v3854, 0.0
    %v3886 = vadd.f32 %v3884, %v3885
    %v3887 = vsel %vm261, %v3862, 0.0
    %v3888 = vadd.f32 %v3886, %v3887
    %v3889 = vsel %vm261, %v3870, 0.0
    %v3890 = vadd.f32 %v3888, %v3889
    %v3891 = vsel %vm261, %v3817, 0.0
    %v3892 = vsel %vm261, %v3825, 0.0
    %v3893 = vadd.f32 %v3891, %v3892
    %v3894 = vsel %vm261, %v3833, 0.0
    %v3895 = vadd.f32 %v3893, %v3894
    %v3896 = vsel %vm261, %v3841, 0.0
    %v3897 = vadd.f32 %v3895, %v3896
    %v3898 = vsel %vm261, %v3849, 0.0
    %v3899 = vadd.f32 %v3897, %v3898
    %v3900 = vsel %vm261, %v3857, 0.0
    %v3901 = vadd.f32 %v3899, %v3900
    %v3902 = vsel %vm261, %v3865, 0.0
    %v3903 = vadd.f32 %v3901, %v3902
    %v3904 = vsel %vm261, %v3873, 0.0
    %v3905 = vadd.f32 %v3903, %v3904
    %s3906 = scalar_lea.vmem [#allocation9], 3
    %v3907 = vld [vmem:[%s3906] sm:$0x1]
    %v3909 = vlaneseq
    %v3910 = vshrl.u32 %v3909, 7
    %v3911 = vsub.s32 0, %v3910
    %v3912 = vrot.slane %v3907, %v3911
    %v3914 = vadd.f32 %v3890, %v3912
    %v3915 = vadd.f32 %v3905, %v3912
    %v3916 = vadd.f32 %v3185, %v3914
    %v3917 = vadd.f32 %v3186, %v3915
    %s3918 = scalar_lea.vmem [#allocation10], 3
    %v3919 = vld [vmem:[%s3918] sm:$0x1]
    %s3920 = scalar_lea.vmem [#allocation12], 3
    %v3921 = vld [vmem:[%s3920] sm:$0x1]
    %v3922 = vsel %vm261, %v3916, 0.0
    %3923 = vadd.xlane.f32.xlu0 %v3922
    %v3924 = vpop.xlane.xlu0 %3923
    %v3925 = vsel %vm261, %v3917, 0.0
    %3926 = vadd.xlane.f32.xlu0 %v3925
    %v3927 = vpop.xlane.xlu0 %3926
    %v3928 = vmul.f32 %v3924, %v936
    %v3929 = vmul.f32 %v3927, %v936
    %v3930 = vsub.f32 %v3916, %v3928
    %v3931 = vsub.f32 %v3917, %v3929
    %v3932 = vmul.f32 %v3930, %v3930
    %v3933 = vmul.f32 %v3931, %v3931
    %v3934 = vsel %vm261, %v3932, 0.0
    %3935 = vadd.xlane.f32.xlu0 %v3934
    %v3936 = vpop.xlane.xlu0 %3935
    %v3937 = vsel %vm261, %v3933, 0.0
    %3938 = vadd.xlane.f32.xlu0 %v3937
    %v3939 = vpop.xlane.xlu0 %3938
    %v3940 = vmul.f32 %v3936, %v936
    %v3941 = vmul.f32 %v3939, %v936
    %v3942 = vadd.f32 %v3940, 1e-05
    %v3943 = vadd.f32 %v3941, 1e-05
    %v3944 = vrsqrt.pop %v3942
    %v3945 = vrsqrt.pop %v3943
    %v3946 = vmul.f32 %v3930, %v3944
    %v3947 = vmul.f32 %v3931, %v3945
    %v3949 = vlaneseq
    %v3950 = vshrl.u32 %v3949, 7
    %v3951 = vsub.s32 0, %v3950
    %v3952 = vrot.slane %v3919, %v3951
    %v3954 = vmul.f32 %v3946, %v3952
    %v3955 = vmul.f32 %v3947, %v3952
    %v3957 = vlaneseq
    %v3958 = vshrl.u32 %v3957, 7
    %v3959 = vsub.s32 0, %v3958
    %v3960 = vrot.slane %v3921, %v3959
    %v3962 = vadd.f32 %v3954, %v3960
    %v3963 = vadd.f32 %v3955, %v3960
    %v3964 = vpack.c.bf16 %v3963, %v3962
    %s3965 = scalar_lea.vmem %s9, 96
    %v3966 = vld [vmem:[%s3965] sm:$0xf]
    %v3967 = vld [vmem:[%s3965 + $0x4] sm:$0xf]
    %v3968 = vld [vmem:[%s3965 + $0x8] sm:$0xf]
    %v3969 = vld [vmem:[%s3965 + $0xc] sm:$0xf]
    %v3970 = vld [vmem:[%s3965 + $0x10] sm:$0xf]
    %v3971 = vld [vmem:[%s3965 + $0x14] sm:$0xf]
    %v3972 = vld [vmem:[%s3965 + $0x18] sm:$0xf]
    %v3973 = vld [vmem:[%s3965 + $0x1c] sm:$0xf]
    %s3974 = scalar_lea.vmem %s10, 3
    %v3975 = vld [vmem:[%s3974] sm:$0x1]
    %v3977 = vlaneseq
    %v3978 = vshrl.u32 %v3977, 7
    %v3979 = vsub.s32 0, %v3978
    %v3980 = vrot.slane %v3975, %v3979
    %v3990 = vunpack.c.l.b16 %v3966
    %v3991 = vunpack.c.l.b16 %v3967
    %v3992 = vunpack.c.l.b16 %v3968
    %v3993 = vunpack.c.l.b16 %v3969
    %v3994 = vunpack.c.l.b16 %v3970
    %v3995 = vunpack.c.l.b16 %v3971
    %v3996 = vunpack.c.l.b16 %v3972
    %v3997 = vunpack.c.l.b16 %v3973
    %v3998 = vpack.c.b16 %v3991, %v3990
    %v3999 = vpack.c.b16 %v3993, %v3992
    %v4000 = vpack.c.b16 %v3995, %v3994
    %v4001 = vpack.c.b16 %v3997, %v3996
    %v4007 = vsel %vm261, %v3964, 0
    %4009 = vmatprep.subr.bf16.mxu0 0
    %4010 = vmatpush1.bf16.msra.mxu0 %v3998
    %4011 = vmatprep.subr.bf16.mxu0 0
    %4012 = vmatpush1.bf16.msra.mxu0 %v3999
    %4013 = vmatprep.subr.bf16.mxu0 0
    %4014 = vmatpush1.bf16.msra.mxu0 %v4000
    %4015 = vmatprep.subr.bf16.mxu0 0
    %4016 = vmatpush1.bf16.msra.mxu0 %v4001
    %4017 = vmatprep.subr.bf16.mxu0 0
    %4018 = vmatpush1.bf16.msra.mxu0 0
    %4019 = vmatprep.subr.bf16.mxu0 0
    %4020 = vmatpush1.bf16.msra.mxu0 0
    %4021 = vmatprep.subr.bf16.mxu0 0
    %4022 = vmatpush1.bf16.msra.mxu0 0
    %4023 = vmatprep.subr.bf16.mxu0 0
    %4024 = vmatpush1.bf16.msra.mxu0 0
    %4025 = vmatprep.subr.bf16.mxu0 0
    %4026 = vmatpush1.bf16.msra.mxu0 0
    %4027 = vmatprep.subr.bf16.mxu0 0
    %4028 = vmatpush1.bf16.msra.mxu0 0
    %4029 = vmatprep.subr.bf16.mxu0 0
    %4030 = vmatpush1.bf16.msra.mxu0 0
    %4031 = vmatprep.subr.bf16.mxu0 0
    %4032 = vmatpush1.bf16.msra.mxu0 0
    %4033 = vmatprep.subr.bf16.mxu0 0
    %4034 = vmatpush1.bf16.msra.mxu0 0
    %4035 = vmatprep.subr.bf16.mxu0 0
    %4036 = vmatpush1.bf16.msra.mxu0 0
    %4037 = vmatprep.subr.bf16.mxu0 0
    %4038 = vmatpush1.bf16.msra.mxu0 0
    %4039 = vmatprep.subr.bf16.mxu0 0
    %4040 = vmatpush1.bf16.msra.mxu0 0
    %4041 = vmatprep.mubr.bf16.mxu0 0
    %4042 = vmatmul.mubr.bf16.gmra.mrb[0].mxu0 %v4007
    %v4043 = vpop.f32.mrb[0].mxu0
    %v4044 = vadd.f32 %v3980, %v4043
    %v4045 = vpop.f32.mrb[0].mxu0
    %v4046 = vpop.f32.mrb[0].mxu0
    %v4047 = vadd.f32 %v3980, %v4046
    %v4048 = vpop.f32.mrb[0].mxu0
    %4049 = vdwg.mxu0
    %v4050 = vmax.f32 %v4044, 0.0
    %v4051 = vmax.f32 %v4047, 0.0
    %v4052 = vpack.c.bf16 %v4051, %v4050
    %s4053 = scalar_lea.vmem [#allocation13], 96
    %v4054 = vld [vmem:[%s4053] sm:$0xf]
    %v4055 = vld [vmem:[%s4053 + $0x4] sm:$0xf]
    %v4056 = vld [vmem:[%s4053 + $0x8] sm:$0xf]
    %v4057 = vld [vmem:[%s4053 + $0xc] sm:$0xf]
    %v4058 = vld [vmem:[%s4053 + $0x10] sm:$0xf]
    %v4059 = vld [vmem:[%s4053 + $0x14] sm:$0xf]
    %v4060 = vld [vmem:[%s4053 + $0x18] sm:$0xf]
    %v4061 = vld [vmem:[%s4053 + $0x1c] sm:$0xf]
    %s4062 = scalar_lea.vmem %s12, 3
    %v4063 = vld [vmem:[%s4062] sm:$0x1]
    %v4065 = vlaneseq
    %v4066 = vshrl.u32 %v4065, 7
    %v4067 = vsub.s32 0, %v4066
    %v4068 = vrot.slane %v4063, %v4067
    %v4078 = vunpack.c.l.b16 %v4054
    %v4079 = vunpack.c.l.b16 %v4055
    %v4080 = vunpack.c.l.b16 %v4056
    %v4081 = vunpack.c.l.b16 %v4057
    %v4082 = vunpack.c.l.b16 %v4058
    %v4083 = vunpack.c.l.b16 %v4059
    %v4084 = vunpack.c.l.b16 %v4060
    %v4085 = vunpack.c.l.b16 %v4061
    %v4086 = vpack.c.b16 %v4079, %v4078
    %v4087 = vpack.c.b16 %v4081, %v4080
    %v4088 = vpack.c.b16 %v4083, %v4082
    %v4089 = vpack.c.b16 %v4085, %v4084
    %v4095 = vsel %vm261, %v4052, 0
    %4097 = vmatprep.subr.bf16.mxu0 0
    %4098 = vmatpush1.bf16.msra.mxu0 %v4086
    %4099 = vmatprep.subr.bf16.mxu0 0
    %4100 = vmatpush1.bf16.msra.mxu0 %v4087
    %4101 = vmatprep.subr.bf16.mxu0 0
    %4102 = vmatpush1.bf16.msra.mxu0 %v4088
    %4103 = vmatprep.subr.bf16.mxu0 0
    %4104 = vmatpush1.bf16.msra.mxu0 %v4089
    %4105 = vmatprep.subr.bf16.mxu0 0
    %4106 = vmatpush1.bf16.msra.mxu0 0
    %4107 = vmatprep.subr.bf16.mxu0 0
    %4108 = vmatpush1.bf16.msra.mxu0 0
    %4109 = vmatprep.subr.bf16.mxu0 0
    %4110 = vmatpush1.bf16.msra.mxu0 0
    %4111 = vmatprep.subr.bf16.mxu0 0
    %4112 = vmatpush1.bf16.msra.mxu0 0
    %4113 = vmatprep.subr.bf16.mxu0 0
    %4114 = vmatpush1.bf16.msra.mxu0 0
    %4115 = vmatprep.subr.bf16.mxu0 0
    %4116 = vmatpush1.bf16.msra.mxu0 0
    %4117 = vmatprep.subr.bf16.mxu0 0
    %4118 = vmatpush1.bf16.msra.mxu0 0
    %4119 = vmatprep.subr.bf16.mxu0 0
    %4120 = vmatpush1.bf16.msra.mxu0 0
    %4121 = vmatprep.subr.bf16.mxu0 0
    %4122 = vmatpush1.bf16.msra.mxu0 0
    %4123 = vmatprep.subr.bf16.mxu0 0
    %4124 = vmatpush1.bf16.msra.mxu0 0
    %4125 = vmatprep.subr.bf16.mxu0 0
    %4126 = vmatpush1.bf16.msra.mxu0 0
    %4127 = vmatprep.subr.bf16.mxu0 0
    %4128 = vmatpush1.bf16.msra.mxu0 0
    %4129 = vmatprep.mubr.bf16.mxu0 0
    %4130 = vmatmul.mubr.bf16.gmra.mrb[0].mxu0 %v4095
    %v4131 = vpop.f32.mrb[0].mxu0
    %v4132 = vadd.f32 %v4068, %v4131
    %v4133 = vpop.f32.mrb[0].mxu0
    %v4134 = vpop.f32.mrb[0].mxu0
    %v4135 = vadd.f32 %v4068, %v4134
    %v4136 = vpop.f32.mrb[0].mxu0
    %4137 = vdwg.mxu0
    %v4138 = vadd.f32 %v3962, %v4132
    %v4139 = vadd.f32 %v3963, %v4135
    %s4140 = scalar_lea.vmem %s13, 3
    %v4141 = vld [vmem:[%s4140] sm:$0x1]
    %s4142 = scalar_lea.vmem %s14, 3
    %v4143 = vld [vmem:[%s4142] sm:$0x1]
    %v4144 = vsel %vm261, %v4138, 0.0
    %4145 = vadd.xlane.f32.xlu0 %v4144
    %v4146 = vpop.xlane.xlu0 %4145
    %v4147 = vsel %vm261, %v4139, 0.0
    %4148 = vadd.xlane.f32.xlu0 %v4147
    %v4149 = vpop.xlane.xlu0 %4148
    %v4150 = vmul.f32 %v4146, %v936
    %v4151 = vmul.f32 %v4149, %v936
    %v4152 = vsub.f32 %v4138, %v4150
    %v4153 = vsub.f32 %v4139, %v4151
    %v4154 = vmul.f32 %v4152, %v4152
    %v4155 = vmul.f32 %v4153, %v4153
    %v4156 = vsel %vm261, %v4154, 0.0
    %4157 = vadd.xlane.f32.xlu0 %v4156
    %v4158 = vpop.xlane.xlu0 %4157
    %v4159 = vsel %vm261, %v4155, 0.0
    %4160 = vadd.xlane.f32.xlu0 %v4159
    %v4161 = vpop.xlane.xlu0 %4160
    %v4162 = vmul.f32 %v4158, %v936
    %v4163 = vmul.f32 %v4161, %v936
    %v4164 = vadd.f32 %v4162, 1e-05
    %v4165 = vadd.f32 %v4163, 1e-05
    %v4166 = vrsqrt.pop %v4164
    %v4167 = vrsqrt.pop %v4165
    %v4168 = vmul.f32 %v4152, %v4166
    %v4169 = vmul.f32 %v4153, %v4167
    %v4171 = vlaneseq
    %v4172 = vshrl.u32 %v4171, 7
    %v4173 = vsub.s32 0, %v4172
    %v4174 = vrot.slane %v4141, %v4173
    %v4176 = vmul.f32 %v4168, %v4174
    %v4177 = vmul.f32 %v4169, %v4174
    %v4179 = vlaneseq
    %v4180 = vshrl.u32 %v4179, 7
    %v4181 = vsub.s32 0, %v4180
    %v4182 = vrot.slane %v4143, %v4181
    %v4184 = vadd.f32 %v4176, %v4182
    %v4185 = vadd.f32 %v4177, %v4182
    %v4186 = vpack.c.bf16 %v4185, %v4184
    %v4187 = vld [vmem:[%s15] sm:$0xf]
    %v4188 = vld [vmem:[%s15 + $0x4] sm:$0xf]
    %v4189 = vld [vmem:[%s15 + $0x8] sm:$0xf]
    %v4190 = vld [vmem:[%s15 + $0xc] sm:$0xf]
    %v4191 = vld [vmem:[%s15 + $0x10] sm:$0xf]
    %v4192 = vld [vmem:[%s15 + $0x14] sm:$0xf]
    %v4193 = vld [vmem:[%s15 + $0x18] sm:$0xf]
    %v4194 = vld [vmem:[%s15 + $0x1c] sm:$0xf]
    %v4195 = vld [vmem:[%s16] sm:$0x1]
    %v4197 = vlaneseq
    %v4198 = vshrl.u32 %v4197, 7
    %v4199 = vsub.s32 0, %v4198
    %v4200 = vrot.slane %v4195, %v4199
    %v4210 = vunpack.c.l.b16 %v4187
    %v4211 = vunpack.c.l.b16 %v4188
    %v4212 = vunpack.c.l.b16 %v4189
    %v4213 = vunpack.c.l.b16 %v4190
    %v4214 = vunpack.c.l.b16 %v4191
    %v4215 = vunpack.c.l.b16 %v4192
    %v4216 = vunpack.c.l.b16 %v4193
    %v4217 = vunpack.c.l.b16 %v4194
    %v4218 = vpack.c.b16 %v4211, %v4210
    %v4219 = vpack.c.b16 %v4213, %v4212
    %v4220 = vpack.c.b16 %v4215, %v4214
    %v4221 = vpack.c.b16 %v4217, %v4216
    %v4227 = vsel %vm261, %v4186, 0
    %4229 = vmatprep.subr.bf16.mxu0 0
    %4230 = vmatpush1.bf16.msra.mxu0 %v4218
    %4231 = vmatprep.subr.bf16.mxu0 0
    %4232 = vmatpush1.bf16.msra.mxu0 %v4219
    %4233 = vmatprep.subr.bf16.mxu0 0
    %4234 = vmatpush1.bf16.msra.mxu0 %v4220
    %4235 = vmatprep.subr.bf16.mxu0 0
    %4236 = vmatpush1.bf16.msra.mxu0 %v4221
    %4237 = vmatprep.subr.bf16.mxu0 0
    %4238 = vmatpush1.bf16.msra.mxu0 0
    %4239 = vmatprep.subr.bf16.mxu0 0
    %4240 = vmatpush1.bf16.msra.mxu0 0
    %4241 = vmatprep.subr.bf16.mxu0 0
    %4242 = vmatpush1.bf16.msra.mxu0 0
    %4243 = vmatprep.subr.bf16.mxu0 0
    %4244 = vmatpush1.bf16.msra.mxu0 0
    %4245 = vmatprep.subr.bf16.mxu0 0
    %4246 = vmatpush1.bf16.msra.mxu0 0
    %4247 = vmatprep.subr.bf16.mxu0 0
    %4248 = vmatpush1.bf16.msra.mxu0 0
    %4249 = vmatprep.subr.bf16.mxu0 0
    %4250 = vmatpush1.bf16.msra.mxu0 0
    %4251 = vmatprep.subr.bf16.mxu0 0
    %4252 = vmatpush1.bf16.msra.mxu0 0
    %4253 = vmatprep.subr.bf16.mxu0 0
    %4254 = vmatpush1.bf16.msra.mxu0 0
    %4255 = vmatprep.subr.bf16.mxu0 0
    %4256 = vmatpush1.bf16.msra.mxu0 0
    %4257 = vmatprep.subr.bf16.mxu0 0
    %4258 = vmatpush1.bf16.msra.mxu0 0
    %4259 = vmatprep.subr.bf16.mxu0 0
    %4260 = vmatpush1.bf16.msra.mxu0 0
    %4261 = vmatprep.mubr.bf16.mxu0 0
    %4262 = vmatmul.mubr.bf16.gmra.mrb[0].mxu0 %v4227
    %v4263 = vpop.f32.mrb[0].mxu0
    %v4264 = vadd.f32 %v4200, %v4263
    %v4265 = vpop.f32.mrb[0].mxu0
    %v4266 = vpop.f32.mrb[0].mxu0
    %v4267 = vadd.f32 %v4200, %v4266
    %v4268 = vpop.f32.mrb[0].mxu0
    %4269 = vdwg.mxu0
    %vm4270 = vcmask 64512
    %4271 = vst.msk [vmem:[%s17] sm:$0xff] %vm4270, %v4264
    %4272 = vst.msk [vmem:[%s17 + $0x8] sm:$0xff] %vm4270, %v4267
    // Predicated region
    $region102: #{tpu_custom_call.1} parent=1 // pred_check
      _
    $region103: #{tpu_custom_call.1} parent=1 // pred_check_branch
      %4274 = sbr.rel (0) target = $region105
    $region104: #{tpu_custom_call.1} parent=1 // pred_region
      _
    $region105: #{tpu_custom_call.1} parent=1 // pred_fallthru
      _
    // Predicated region
    $region106: #{tpu_custom_call.1} parent=1 // pred_check
      _
    $region107: #{tpu_custom_call.1} parent=1 // pred_check_branch
      %4276 = sbr.rel (0) target = $region109
    $region108: #{tpu_custom_call.1} parent=1 // pred_region
      _
    $region109: #{tpu_custom_call.1} parent=1 // pred_fallthru
      _
    %4277 = vsyncpa [#allocation3], 1
    %4278 = vsyncpa [#allocation5], 1
    %4279 = vsyncpa [#allocation8], 1
    %4280 = vsyncpa [#allocation11], 1
    %4281 = vsyncpa [#allocation14], 1

</llo_original>
